<compile_context>
chip_gen: v6e
topology: v6e:2x2x1
jax: 0.10.0
libtpu: 0.0.40
codegen_flags: <defaults>
</compile_context>

<pallas_src>
import functools

import jax
import jax.numpy as jnp
from jax.experimental import pallas as pl
from jax.experimental.pallas import tpu as pltpu


def _round_up(x, m):
    return ((x + m - 1) // m) * m


def _nail_cls_kernel(x_ref, w1t_ref, b1_ref, w2t_ref, b2_ref, out_ref, acc_ref,
                     *, n_lane_chunks, inv_hw):
    """Grid = (batch tiles, HW tiles); the HW axis is the reduction ('arbitrary') axis."""
    k = pl.program_id(1)

    # Zero the persistent pooling accumulator at the start of each batch tile.
    @pl.when(k == 0)
    def _():
        acc_ref[...] = jnp.zeros_like(acc_ref)

    # Partial pooling for this HW tile: pure VPU adds of lane-aligned 128-wide
    # chunks (balanced tree) into the (TB, C, 128) accumulator; no cross-lane
    # reduce on the hot path.
    x = x_ref[...]                                               # (TB, C, THW) f32
    chunks = [x[:, :, s * 128:(s + 1) * 128] for s in range(n_lane_chunks)]
    while len(chunks) > 1:
        nxt = [chunks[i] + chunks[i + 1] for i in range(0, len(chunks) - 1, 2)]
        if len(chunks) % 2:
            nxt.append(chunks[-1])
        chunks = nxt
    acc_ref[...] += chunks[0]

    # Finalize once per batch tile: single cross-lane reduce, scale, fc1, fc2.
    @pl.when(k == pl.num_programs(1) - 1)
    def _():
        pooled = jnp.sum(acc_ref[...], axis=-1) * inv_hw                   # (TB, C)
        h = jnp.dot(pooled, w1t_ref[...],
                    preferred_element_type=jnp.float32) + b1_ref[...]      # (TB, Hp)
        out = jnp.dot(h, w2t_ref[...],
                      preferred_element_type=jnp.float32) + b2_ref[...]    # (TB, NCp)
        out_ref[...] = out.astype(out_ref.dtype)


def nail_cls_forward(x_nchw, w1, b1, w2, b2, *, tb=8, thw_max=1024):
    """x_nchw: [B, 256, H, W] float32. Returns [B, num_classes] float32."""
    B, C, H, W = x_nchw.shape
    assert C == w1.shape[1], "fc1 expects in_features == C"
    hidden = w1.shape[0]                                    # 64
    NC = w2.shape[0]
    HW = H * W

    # Tiling / padding (all static at trace time).
    TB = tb                                                 # sublane-friendly batch tile
    B_pad = _round_up(max(B, TB), TB)
    THW = min(thw_max, _round_up(HW, 128))                  # lane tile, multiple of 128
    HW_pad = _round_up(HW, THW)
    H_pad = _round_up(hidden, 128)                          # lane-dense fc1 output
    NC_pad = _round_up(NC, 128)                             # lane-dense fc2 output

    # Layout: NCHW -> [B, C, HW]; zero-pad batch & spatial (zeros don't change the
    # sum; we divide by the true H*W).
    x = x_nchw.reshape(B, C, HW)
    if (B_pad, HW_pad) != (B, HW):
        x = jnp.pad(x, ((0, B_pad - B), (0, 0), (0, HW_pad - HW)))

    # Pre-transpose + zero-pad weights in the wrapper (one-time XLA ops, no
    # in-kernel transpose).  Zero-padded hidden columns / rows contribute 0.
    w1t = jnp.pad(w1.T, ((0, 0), (0, H_pad - hidden)))                      # (C, Hp)
    b1_row = jnp.pad(b1.reshape(1, -1), ((0, 0), (0, H_pad - hidden)))      # (1, Hp)
    w2t = jnp.pad(w2.T, ((0, H_pad - hidden), (0, NC_pad - NC)))            # (Hp, NCp)
    b2_row = jnp.pad(b2.reshape(1, -1), ((0, 0), (0, NC_pad - NC)))         # (1, NCp)

    n_b = B_pad // TB
    n_hw = HW_pad // THW

    kernel = functools.partial(
        _nail_cls_kernel,
        n_lane_chunks=THW // 128,
        inv_hw=1.0 / float(HW),
    )

    # Explicit VMEM budget: double-buffered x tile + accumulator + weights + slack.
    x_tile_bytes = TB * C * THW * 4
    weight_bytes = 2 * (C * H_pad + H_pad + H_pad * NC_pad + NC_pad) * 4
    vmem_limit = min(2 * x_tile_bytes + TB * C * 128 * 4 + weight_bytes + (8 << 20),
                     48 << 20)

    cost = pl.CostEstimate(
        flops=B_pad * C * HW_pad                                   # pooling adds
              + 2 * B_pad * (C * H_pad + H_pad * NC_pad),          # fc1 + fc2
        transcendentals=0,
        bytes_accessed=(B_pad * C * HW_pad * 4
                        + (C * H_pad + H_pad + H_pad * NC_pad + NC_pad) * 4
                        + B_pad * NC_pad * 4),
    )

    out_padded = pl.pallas_call(
        kernel,
        out_shape=jax.ShapeDtypeStruct((B_pad, NC_pad), jnp.float32),
        grid_spec=pltpu.PrefetchScalarGridSpec(
            num_scalar_prefetch=0,
            grid=(n_b, n_hw),
            in_specs=[
                pl.BlockSpec((TB, C, THW), lambda i, k: (i, 0, k)),    # x tiles (pipelined)
                pl.BlockSpec((C, H_pad), lambda i, k: (0, 0)),         # W1^T, VMEM-resident
                pl.BlockSpec((1, H_pad), lambda i, k: (0, 0)),         # b1
                pl.BlockSpec((H_pad, NC_pad), lambda i, k: (0, 0)),    # W2^T
                pl.BlockSpec((1, NC_pad), lambda i, k: (0, 0)),        # b2
            ],
            out_specs=pl.BlockSpec((TB, NC_pad), lambda i, k: (i, 0)),  # resident over k
            scratch_shapes=[pltpu.VMEM((TB, C, 128), jnp.float32)],     # pooling accumulator
        ),
        compiler_params=pltpu.CompilerParams(
            dimension_semantics=("parallel", "arbitrary"),
            vmem_limit_bytes=vmem_limit,
        ),
        cost_estimate=cost,
    )(x, w1t, b1_row, w2t, b2_row)

    return out_padded[:B, :NC]


def init_params(key, num_classes):
    """Deterministic init matching PyTorch nn.Linear shapes (uniform +/- 1/sqrt(fan_in))."""
    k1, k2, k3, k4 = jax.random.split(key, 4)
    bound1 = 1.0 / (256.0 ** 0.5)
    bound2 = 1.0 / (64.0 ** 0.5)
    w1 = jax.random.uniform(k1, (64, 256), jnp.float32, -bound1, bound1)
    b1 = jax.random.uniform(k2, (64,), jnp.float32, -bound1, bound1)
    w2 = jax.random.uniform(k3, (num_classes, 64), jnp.float32, -bound2, bound2)
    b2 = jax.random.uniform(k4, (num_classes,), jnp.float32, -bound2, bound2)
    return w1, b1, w2, b2


if __name__ == "__main__":
    key = jax.random.PRNGKey(0)
    kx, kp = jax.random.split(key)

    num_classes = 10
    B, C, H, W = 2, 256, 16, 16          # C must be 256 to match fc1 in_features
    x = jax.random.normal(kx, (B, C, H, W), jnp.float32)
    w1, b1, w2, b2 = init_params(kp, num_classes)

    out = nail_cls_forward(x, w1, b1, w2, b2)
    out = jax.block_until_ready(out)

    # Pure-JAX reference check
    pooled_ref = jnp.mean(x, axis=(2, 3))
    h_ref = pooled_ref @ w1.T + b1
    out_ref = h_ref @ w2.T + b2
    assert out.shape == (B, num_classes)
    assert jnp.allclose(out, out_ref, atol=1e-4, rtol=1e-4)

    print("KERNEL_OK")
</pallas_src>

<mosaic_0001>
module attributes {stable_mosaic.version = 11 : i64} {
  func.func @_nail_cls_kernel(%arg0: i32, %arg1: i32, %arg2: memref<8x256x256xf32, #tpu.memory_space<vmem>>, %arg3: memref<256x128xf32, #tpu.memory_space<vmem>>, %arg4: memref<1x128xf32, #tpu.memory_space<vmem>>, %arg5: memref<128x128xf32, #tpu.memory_space<vmem>>, %arg6: memref<1x128xf32, #tpu.memory_space<vmem>>, %arg7: memref<8x128xf32, #tpu.memory_space<vmem>>, %arg8: memref<8x256x128xf32, #tpu.memory_space<vmem>>) attributes {dimension_semantics = [#tpu.dimension_semantics<parallel>, #tpu.dimension_semantics<arbitrary>], iteration_bounds = array<i64: 1, 1>, scalar_prefetch = 0 : i64, scratch_operands = 1 : i64, tpu.core_type = #tpu.core_type<tc>, window_params = [{transform_indices = @transform_0, window_bounds = array<i64: 8, 256, 256>}, {pipeline_mode = #tpu.pipeline_mode<synchronous>, transform_indices = @transform_1, window_bounds = array<i64: 256, 128>}, {pipeline_mode = #tpu.pipeline_mode<synchronous>, transform_indices = @transform_2, window_bounds = array<i64: 1, 128>}, {pipeline_mode = #tpu.pipeline_mode<synchronous>, transform_indices = @transform_3, window_bounds = array<i64: 128, 128>}, {pipeline_mode = #tpu.pipeline_mode<synchronous>, transform_indices = @transform_4, window_bounds = array<i64: 1, 128>}, {transform_indices = @transform_5, window_bounds = array<i64: 8, 128>}]} {
    %c0_i32 = arith.constant 0 : i32
    %0 = arith.cmpi eq, %arg1, %c0_i32 : i32
    %1 = arith.extui %0 : i1 to i32
    %c0_i32_0 = arith.constant 0 : i32
    %2 = arith.cmpi ne, %1, %c0_i32_0 : i32
    scf.if %2 {
      %cst = arith.constant 0.000000e+00 : f32
      %13 = vector.broadcast %cst : f32 to vector<8x256x128xf32>
      %c0_11 = arith.constant 0 : index
      %c0_12 = arith.constant 0 : index
      %c0_13 = arith.constant 0 : index
      %14 = vector.load %arg8[%c0_11, %c0_12, %c0_13] : memref<8x256x128xf32, #tpu.memory_space<vmem>>, vector<8x256x128xf32>
      tpu.vector_store %arg8[%c0_11, %c0_12, %c0_13], %13 {strides = array<i32>} : memref<8x256x128xf32, #tpu.memory_space<vmem>>, vector<8x256x128xf32>,
    } else {
    }
    %c0 = arith.constant 0 : index
    %c0_1 = arith.constant 0 : index
    %c0_2 = arith.constant 0 : index
    %3 = vector.load %arg2[%c0, %c0_1, %c0_2] : memref<8x256x256xf32, #tpu.memory_space<vmem>>, vector<8x256x256xf32>
    %4 = vector.extract_strided_slice %3 {offsets = [0, 0, 0], sizes = [8, 256, 128], strides = [1, 1, 1]} : vector<8x256x256xf32> to vector<8x256x128xf32>
    %5 = vector.extract_strided_slice %3 {offsets = [0, 0, 128], sizes = [8, 256, 128], strides = [1, 1, 1]} : vector<8x256x256xf32> to vector<8x256x128xf32>
    %6 = arith.addf %4, %5 : vector<8x256x128xf32>
    %c0_3 = arith.constant 0 : index
    %c0_4 = arith.constant 0 : index
    %c0_5 = arith.constant 0 : index
    %7 = vector.load %arg8[%c0_3, %c0_4, %c0_5] : memref<8x256x128xf32, #tpu.memory_space<vmem>>, vector<8x256x128xf32>
    %8 = arith.addf %7, %6 : vector<8x256x128xf32>
    %c0_6 = arith.constant 0 : index
    %c0_7 = arith.constant 0 : index
    %c0_8 = arith.constant 0 : index
    %9 = vector.load %arg8[%c0_6, %c0_7, %c0_8] : memref<8x256x128xf32, #tpu.memory_space<vmem>>, vector<8x256x128xf32>
    tpu.vector_store %arg8[%c0_6, %c0_7, %c0_8], %8 {strides = array<i32>} : memref<8x256x128xf32, #tpu.memory_space<vmem>>, vector<8x256x128xf32>,
    %c0_i32_9 = arith.constant 0 : i32
    %10 = arith.cmpi eq, %arg1, %c0_i32_9 : i32
    %11 = arith.extui %10 : i1 to i32
    %c0_i32_10 = arith.constant 0 : i32
    %12 = arith.cmpi ne, %11, %c0_i32_10 : i32
    scf.if %12 {
      %c0_11 = arith.constant 0 : index
      %c0_12 = arith.constant 0 : index
      %c0_13 = arith.constant 0 : index
      %13 = vector.load %arg8[%c0_11, %c0_12, %c0_13] : memref<8x256x128xf32, #tpu.memory_space<vmem>>, vector<8x256x128xf32>
      %cst = arith.constant dense<0.000000e+00> : vector<8x256xf32>
      %14 = vector.multi_reduction <add>, %13, %cst [2] : vector<8x256x128xf32> to vector<8x256xf32>
      %cst_14 = arith.constant 3.906250e-03 : f32
      %15 = vector.broadcast %cst_14 : f32 to vector<8x256xf32>
      %16 = arith.mulf %14, %15 : vector<8x256xf32>
      %c0_15 = arith.constant 0 : index
      %c0_16 = arith.constant 0 : index
      %17 = vector.load %arg3[%c0_15, %c0_16] : memref<256x128xf32, #tpu.memory_space<vmem>>, vector<256x128xf32>
      %cst_17 = arith.constant dense<0.000000e+00> : vector<8x128xf32>
      %18 = tpu.matmul %16, %17, %cst_17 {dimension_numbers = #tpu.dot_dimension_numbers<[1], [0], [0], [1], [0, 0, 1, 1], [], []>} : vector<8x256xf32>, vector<256x128xf32>, vector<8x128xf32> -> vector<8x128xf32>
      %c0_18 = arith.constant 0 : index
      %c0_19 = arith.constant 0 : index
      %19 = vector.load %arg4[%c0_18, %c0_19] : memref<1x128xf32, #tpu.memory_space<vmem>>, vector<1x128xf32>
      %20 = vector.broadcast %19 : vector<1x128xf32> to vector<8x128xf32>
      %21 = arith.addf %18, %20 : vector<8x128xf32>
      %c0_20 = arith.constant 0 : index
      %c0_21 = arith.constant 0 : index
      %22 = vector.load %arg5[%c0_20, %c0_21] : memref<128x128xf32, #tpu.memory_space<vmem>>, vector<128x128xf32>
      %cst_22 = arith.constant dense<0.000000e+00> : vector<8x128xf32>
      %23 = tpu.matmul %21, %22, %cst_22 {dimension_numbers = #tpu.dot_dimension_numbers<[1], [0], [0], [1], [0, 0, 1, 1], [], []>} : vector<8x128xf32>, vector<128x128xf32>, vector<8x128xf32> -> vector<8x128xf32>
      %c0_23 = arith.constant 0 : index
      %c0_24 = arith.constant 0 : index
      %24 = vector.load %arg6[%c0_23, %c0_24] : memref<1x128xf32, #tpu.memory_space<vmem>>, vector<1x128xf32>
      %25 = vector.broadcast %24 : vector<1x128xf32> to vector<8x128xf32>
      %26 = arith.addf %23, %25 : vector<8x128xf32>
      %c0_25 = arith.constant 0 : index
      %c0_26 = arith.constant 0 : index
      %27 = vector.load %arg7[%c0_25, %c0_26] : memref<8x128xf32, #tpu.memory_space<vmem>>, vector<8x128xf32>
      tpu.vector_store %arg7[%c0_25, %c0_26], %26 {strides = array<i32>} : memref<8x128xf32, #tpu.memory_space<vmem>>, vector<8x128xf32>,
    } else {
    }
    return
  }
  func.func @transform_0(%arg0: i32, %arg1: i32) -> (i32, i32, i32) {
    %c0_i32 = arith.constant 0 : i32
    %c0_i32_0 = arith.constant 0 : i32
    return %arg0, %c0_i32, %arg1 : i32, i32, i32
  }
  func.func @transform_1(%arg0: i32, %arg1: i32) -> (i32, i32) {
    %c0_i32 = arith.constant 0 : i32
    %c0_i32_0 = arith.constant 0 : i32
    %c0_i32_1 = arith.constant 0 : i32
    return %c0_i32, %c0_i32_0 : i32, i32
  }
  func.func @transform_2(%arg0: i32, %arg1: i32) -> (i32, i32) {
    %c0_i32 = arith.constant 0 : i32
    %c0_i32_0 = arith.constant 0 : i32
    %c0_i32_1 = arith.constant 0 : i32
    return %c0_i32, %c0_i32_0 : i32, i32
  }
  func.func @transform_3(%arg0: i32, %arg1: i32) -> (i32, i32) {
    %c0_i32 = arith.constant 0 : i32
    %c0_i32_0 = arith.constant 0 : i32
    %c0_i32_1 = arith.constant 0 : i32
    return %c0_i32, %c0_i32_0 : i32, i32
  }
  func.func @transform_4(%arg0: i32, %arg1: i32) -> (i32, i32) {
    %c0_i32 = arith.constant 0 : i32
    %c0_i32_0 = arith.constant 0 : i32
    %c0_i32_1 = arith.constant 0 : i32
    return %c0_i32, %c0_i32_0 : i32, i32
  }
  func.func @transform_5(%arg0: i32, %arg1: i32) -> (i32, i32) {
    %c0_i32 = arith.constant 0 : i32
    %c0_i32_0 = arith.constant 0 : i32
    return %arg0, %c0_i32 : i32, i32
  }
}

</mosaic_0001>

<llo_original>
// kernel: tpu_custom_call.1
$region0: #{tpu_custom_call.1}
  #allocation0 [shape = 'u32[]', space=smem, size = 0x4, offset = 0x4, fixed_abs, tag = 'smem constant byte address 0x4 - core index']
  #allocation1 [shape = 'u32[144,128]{1,0:T(1,128)}', space=vmem, size = 0x12000, scoped, tag = 'internal scratch']
  #allocation2 [shape = 'f32[8,256,128]{2,1,0:T(8,128)}', space=vmem, size = 0x100000, scoped, tag = 'scratch operand']
  %s0 = inlined_call_operand.hbm [shape: f32[8,256,256], index: 0, kind: input, shape index: {}]
  %s1 = inlined_call_operand.hbm [shape: f32[256,128], index: 1, kind: input, shape index: {}]
  %s2 = inlined_call_operand.hbm [shape: f32[1,128], index: 2, kind: input, shape index: {}]
  %s3 = inlined_call_operand.hbm [shape: f32[128,128], index: 3, kind: input, shape index: {}]
  %s4 = inlined_call_operand.hbm [shape: f32[1,128], index: 4, kind: input, shape index: {}]
  %s5 = inlined_call_operand.hbm [shape: f32[8,128], index: 5, kind: output, shape index: {}]
  %s6 = sld [smem:[#allocation0]]
  $region58: #{tpu_custom_call.1} parent=0
    _
  %s8 = ssub.s32 1, %s6
  %s9 = scalar_select 0, %s8, %s6
  $region1: #{tpu_custom_call.1} parent=0
    #allocation3 [shape = 'u8[2097152]{0}', space=vmem, size = 0x200000, scoped, tag = 'input window, operand 0, single buffered']
    #allocation4 [shape = 's32[1]{0}', space=sflag, size = 0x4, scoped, tag = 'scoped memory for tpu_custom_call.1']
    #allocation5 [shape = 's32[1]{0}', space=sflag, size = 0x4, scoped, tag = 'scoped memory for tpu_custom_call.1']
    #allocation6 [shape = 'u8[131072]{0}', space=vmem, size = 0x20000, scoped, tag = 'input window, operand 1, single buffered']
    #allocation7 [shape = 's32[1]{0}', space=sflag, size = 0x4, scoped, tag = 'scoped memory for tpu_custom_call.1']
    #allocation8 [shape = 'u8[512]{0}', space=vmem, size = 0x400, scoped, tag = 'input window, operand 2, single buffered']
    #allocation9 [shape = 'u8[65536]{0}', space=vmem, size = 0x10000, scoped, tag = 'input window, operand 3, single buffered']
    #allocation10 [shape = 's32[1]{0}', space=sflag, size = 0x4, scoped, tag = 'scoped memory for tpu_custom_call.1']
    #allocation11 [shape = 'u8[512]{0}', space=vmem, size = 0x400, scoped, tag = 'input window, operand 4, single buffered']
    #allocation12 [shape = 'u8[4096]{0}', space=vmem, size = 0x1000, scoped, tag = 'output window, operand 0, single buffered']
    %10 = vsyncpa [#allocation4], 0
    %11 = vsyncpa [#allocation7], 0
    %12 = vsyncpa [#allocation10], 0
    %13 = vsyncpa [#allocation5], 0
    // Predicated region
    $region2: #{tpu_custom_call.1} parent=1 // pred_check
      _
    $region3: #{tpu_custom_call.1} parent=1 // pred_check_branch
      %15 = sbr.rel (0) target = $region5
    $region4: #{tpu_custom_call.1} parent=1 // pred_region
      %s17 = ssub.s32 65536, 65536
      %18 = vsyncadd [#allocation4], %s17
      %s19 = sshll.u32 [#allocation3], 4
      %s20 = int_to_ptr.vmem [resolvable:$true] %s19
      %25 = dma.hbm_to_vmem [thread:$0]  %s0, 65536, %s20, [#allocation4], 256, 256, 16
    $region5: #{tpu_custom_call.1} parent=1 // pred_fallthru
      _
    // Predicated region
    $region6: #{tpu_custom_call.1} parent=1 // pred_check
      _
    $region7: #{tpu_custom_call.1} parent=1 // pred_check_branch
      %27 = sbr.rel (0) target = $region9
    $region8: #{tpu_custom_call.1} parent=1 // pred_region
      %s29 = ssub.s32 4096, 4096
      %30 = vsyncadd [#allocation7], %s29
      %s31 = sshll.u32 [#allocation6], 4
      %s32 = int_to_ptr.vmem [resolvable:$true] %s31
      %37 = dma.hbm_to_vmem [thread:$0]  %s1, 4096, %s32, [#allocation7], 128, 128, 8
    $region9: #{tpu_custom_call.1} parent=1 // pred_fallthru
      _
    // Predicated region
    $region10: #{tpu_custom_call.1} parent=1 // pred_check
      _
    $region11: #{tpu_custom_call.1} parent=1 // pred_check_branch
      %39 = sbr.rel (0) target = $region13
    $region12: #{tpu_custom_call.1} parent=1 // pred_region
      %s41 = ssub.s32 16, 16
      %42 = vsyncadd [#allocation7], %s41
      %s44 = sshll.u32 [#allocation8], 4
      %s45 = int_to_ptr.vmem [resolvable:$true] %s44
      %47 = dma.hbm_to_vmem [thread:$0]  %s2, 16, %s45, [#allocation7]
    $region13: #{tpu_custom_call.1} parent=1 // pred_fallthru
      _
    // Predicated region
    $region14: #{tpu_custom_call.1} parent=1 // pred_check
      _
    $region15: #{tpu_custom_call.1} parent=1 // pred_check_branch
      %49 = sbr.rel (0) target = $region17
    $region16: #{tpu_custom_call.1} parent=1 // pred_region
      %s51 = ssub.s32 2048, 2048
      %52 = vsyncadd [#allocation10], %s51
      %s53 = sshll.u32 [#allocation9], 4
      %s54 = int_to_ptr.vmem [resolvable:$true] %s53
      %59 = dma.hbm_to_vmem [thread:$0]  %s3, 2048, %s54, [#allocation10], 128, 128, 8
    $region17: #{tpu_custom_call.1} parent=1 // pred_fallthru
      _
    // Predicated region
    $region18: #{tpu_custom_call.1} parent=1 // pred_check
      _
    $region19: #{tpu_custom_call.1} parent=1 // pred_check_branch
      %61 = sbr.rel (0) target = $region21
    $region20: #{tpu_custom_call.1} parent=1 // pred_region
      %s63 = ssub.s32 16, 16
      %64 = vsyncadd [#allocation10], %s63
      %s66 = sshll.u32 [#allocation11], 4
      %s67 = int_to_ptr.vmem [resolvable:$true] %s66
      %69 = dma.hbm_to_vmem [thread:$0]  %s4, 16, %s67, [#allocation10]
    $region21: #{tpu_custom_call.1} parent=1 // pred_fallthru
      _
    // Predicated region
    $region22: #{tpu_custom_call.1} parent=1 // pred_check
      _
    $region23: #{tpu_custom_call.1} parent=1 // pred_check_branch
      %71 = sbr.rel (0) target = $region25
    $region24: #{tpu_custom_call.1} parent=1 // pred_region
      %72 = dma.done [#allocation4], 65536
    $region25: #{tpu_custom_call.1} parent=1 // pred_fallthru
      _
    // Predicated region
    $region26: #{tpu_custom_call.1} parent=1 // pred_check
      _
    $region27: #{tpu_custom_call.1} parent=1 // pred_check_branch
      %74 = sbr.rel (0) target = $region29
    $region28: #{tpu_custom_call.1} parent=1 // pred_region
      %75 = dma.done [#allocation7], 4096
    $region29: #{tpu_custom_call.1} parent=1 // pred_fallthru
      _
    // Predicated region
    $region30: #{tpu_custom_call.1} parent=1 // pred_check
      _
    $region31: #{tpu_custom_call.1} parent=1 // pred_check_branch
      %77 = sbr.rel (0) target = $region33
    $region32: #{tpu_custom_call.1} parent=1 // pred_region
      %78 = dma.done [#allocation7], 16
    $region33: #{tpu_custom_call.1} parent=1 // pred_fallthru
      _
    // Predicated region
    $region34: #{tpu_custom_call.1} parent=1 // pred_check
      _
    $region35: #{tpu_custom_call.1} parent=1 // pred_check_branch
      %80 = sbr.rel (0) target = $region37
    $region36: #{tpu_custom_call.1} parent=1 // pred_region
      %81 = dma.done [#allocation10], 2048
    $region37: #{tpu_custom_call.1} parent=1 // pred_fallthru
      _
    // Predicated region
    $region38: #{tpu_custom_call.1} parent=1 // pred_check
      _
    $region39: #{tpu_custom_call.1} parent=1 // pred_check_branch
      %83 = sbr.rel (0) target = $region41
    $region40: #{tpu_custom_call.1} parent=1 // pred_region
      %84 = dma.done [#allocation10], 16
    $region41: #{tpu_custom_call.1} parent=1 // pred_fallthru
      _
    %p85 = scmp.eq.s32.totalorder 0, 0
    // Predicated region
    $region42: #{tpu_custom_call.1} parent=1 // pred_check
      %p86 = pneg %p85
    $region43: #{tpu_custom_call.1} parent=1 // pred_check_branch
      %88 = sbr.rel (%p86) target = $region45
    $region44: #{tpu_custom_call.1} parent=1 // pred_region
      %89 = vst [vmem:[#allocation2] sm:$0xff] 0.0
      %90 = vst [vmem:[#allocation2 + $0x8] sm:$0xff] 0.0
      %91 = vst [vmem:[#allocation2 + $0x10] sm:$0xff] 0.0
      %92 = vst [vmem:[#allocation2 + $0x18] sm:$0xff] 0.0
      %93 = vst [vmem:[#allocation2 + $0x20] sm:$0xff] 0.0
      %94 = vst [vmem:[#allocation2 + $0x28] sm:$0xff] 0.0
      %95 = vst [vmem:[#allocation2 + $0x30] sm:$0xff] 0.0
      %96 = vst [vmem:[#allocation2 + $0x38] sm:$0xff] 0.0
      %97 = vst [vmem:[#allocation2 + $0x40] sm:$0xff] 0.0
      %98 = vst [vmem:[#allocation2 + $0x48] sm:$0xff] 0.0
      %99 = vst [vmem:[#allocation2 + $0x50] sm:$0xff] 0.0
      %100 = vst [vmem:[#allocation2 + $0x58] sm:$0xff] 0.0
      %101 = vst [vmem:[#allocation2 + $0x60] sm:$0xff] 0.0
      %102 = vst [vmem:[#allocation2 + $0x68] sm:$0xff] 0.0
      %103 = vst [vmem:[#allocation2 + $0x70] sm:$0xff] 0.0
      %104 = vst [vmem:[#allocation2 + $0x78] sm:$0xff] 0.0
      %105 = vst [vmem:[#allocation2 + $0x80] sm:$0xff] 0.0
      %106 = vst [vmem:[#allocation2 + $0x88] sm:$0xff] 0.0
      %107 = vst [vmem:[#allocation2 + $0x90] sm:$0xff] 0.0
      %108 = vst [vmem:[#allocation2 + $0x98] sm:$0xff] 0.0
      %109 = vst [vmem:[#allocation2 + $0xa0] sm:$0xff] 0.0
      %110 = vst [vmem:[#allocation2 + $0xa8] sm:$0xff] 0.0
      %111 = vst [vmem:[#allocation2 + $0xb0] sm:$0xff] 0.0
      %112 = vst [vmem:[#allocation2 + $0xb8] sm:$0xff] 0.0
      %113 = vst [vmem:[#allocation2 + $0xc0] sm:$0xff] 0.0
      %114 = vst [vmem:[#allocation2 + $0xc8] sm:$0xff] 0.0
      %115 = vst [vmem:[#allocation2 + $0xd0] sm:$0xff] 0.0
      %116 = vst [vmem:[#allocation2 + $0xd8] sm:$0xff] 0.0
      %117 = vst [vmem:[#allocation2 + $0xe0] sm:$0xff] 0.0
      %118 = vst [vmem:[#allocation2 + $0xe8] sm:$0xff] 0.0
      %119 = vst [vmem:[#allocation2 + $0xf0] sm:$0xff] 0.0
      %120 = vst [vmem:[#allocation2 + $0xf8] sm:$0xff] 0.0
      %121 = vst [vmem:[#allocation2 + $0x100] sm:$0xff] 0.0
      %122 = vst [vmem:[#allocation2 + $0x108] sm:$0xff] 0.0
      %123 = vst [vmem:[#allocation2 + $0x110] sm:$0xff] 0.0
      %124 = vst [vmem:[#allocation2 + $0x118] sm:$0xff] 0.0
      %125 = vst [vmem:[#allocation2 + $0x120] sm:$0xff] 0.0
      %126 = vst [vmem:[#allocation2 + $0x128] sm:$0xff] 0.0
      %127 = vst [vmem:[#allocation2 + $0x130] sm:$0xff] 0.0
      %128 = vst [vmem:[#allocation2 + $0x138] sm:$0xff] 0.0
      %129 = vst [vmem:[#allocation2 + $0x140] sm:$0xff] 0.0
      %130 = vst [vmem:[#allocation2 + $0x148] sm:$0xff] 0.0
      %131 = vst [vmem:[#allocation2 + $0x150] sm:$0xff] 0.0
      %132 = vst [vmem:[#allocation2 + $0x158] sm:$0xff] 0.0
      %133 = vst [vmem:[#allocation2 + $0x160] sm:$0xff] 0.0
      %134 = vst [vmem:[#allocation2 + $0x168] sm:$0xff] 0.0
      %135 = vst [vmem:[#allocation2 + $0x170] sm:$0xff] 0.0
      %136 = vst [vmem:[#allocation2 + $0x178] sm:$0xff] 0.0
      %137 = vst [vmem:[#allocation2 + $0x180] sm:$0xff] 0.0
      %138 = vst [vmem:[#allocation2 + $0x188] sm:$0xff] 0.0
      %139 = vst [vmem:[#allocation2 + $0x190] sm:$0xff] 0.0
      %140 = vst [vmem:[#allocation2 + $0x198] sm:$0xff] 0.0
      %141 = vst [vmem:[#allocation2 + $0x1a0] sm:$0xff] 0.0
      %142 = vst [vmem:[#allocation2 + $0x1a8] sm:$0xff] 0.0
      %143 = vst [vmem:[#allocation2 + $0x1b0] sm:$0xff] 0.0
      %144 = vst [vmem:[#allocation2 + $0x1b8] sm:$0xff] 0.0
      %145 = vst [vmem:[#allocation2 + $0x1c0] sm:$0xff] 0.0
      %146 = vst [vmem:[#allocation2 + $0x1c8] sm:$0xff] 0.0
      %147 = vst [vmem:[#allocation2 + $0x1d0] sm:$0xff] 0.0
      %148 = vst [vmem:[#allocation2 + $0x1d8] sm:$0xff] 0.0
      %149 = vst [vmem:[#allocation2 + $0x1e0] sm:$0xff] 0.0
      %150 = vst [vmem:[#allocation2 + $0x1e8] sm:$0xff] 0.0
      %151 = vst [vmem:[#allocation2 + $0x1f0] sm:$0xff] 0.0
      %152 = vst [vmem:[#allocation2 + $0x1f8] sm:$0xff] 0.0
      %153 = vst [vmem:[#allocation2 + $0x200] sm:$0xff] 0.0
      %154 = vst [vmem:[#allocation2 + $0x208] sm:$0xff] 0.0
      %155 = vst [vmem:[#allocation2 + $0x210] sm:$0xff] 0.0
      %156 = vst [vmem:[#allocation2 + $0x218] sm:$0xff] 0.0
      %157 = vst [vmem:[#allocation2 + $0x220] sm:$0xff] 0.0
      %158 = vst [vmem:[#allocation2 + $0x228] sm:$0xff] 0.0
      %159 = vst [vmem:[#allocation2 + $0x230] sm:$0xff] 0.0
      %160 = vst [vmem:[#allocation2 + $0x238] sm:$0xff] 0.0
      %161 = vst [vmem:[#allocation2 + $0x240] sm:$0xff] 0.0
      %162 = vst [vmem:[#allocation2 + $0x248] sm:$0xff] 0.0
      %163 = vst [vmem:[#allocation2 + $0x250] sm:$0xff] 0.0
      %164 = vst [vmem:[#allocation2 + $0x258] sm:$0xff] 0.0
      %165 = vst [vmem:[#allocation2 + $0x260] sm:$0xff] 0.0
      %166 = vst [vmem:[#allocation2 + $0x268] sm:$0xff] 0.0
      %167 = vst [vmem:[#allocation2 + $0x270] sm:$0xff] 0.0
      %168 = vst [vmem:[#allocation2 + $0x278] sm:$0xff] 0.0
      %169 = vst [vmem:[#allocation2 + $0x280] sm:$0xff] 0.0
      %170 = vst [vmem:[#allocation2 + $0x288] sm:$0xff] 0.0
      %171 = vst [vmem:[#allocation2 + $0x290] sm:$0xff] 0.0
      %172 = vst [vmem:[#allocation2 + $0x298] sm:$0xff] 0.0
      %173 = vst [vmem:[#allocation2 + $0x2a0] sm:$0xff] 0.0
      %174 = vst [vmem:[#allocation2 + $0x2a8] sm:$0xff] 0.0
      %175 = vst [vmem:[#allocation2 + $0x2b0] sm:$0xff] 0.0
      %176 = vst [vmem:[#allocation2 + $0x2b8] sm:$0xff] 0.0
      %177 = vst [vmem:[#allocation2 + $0x2c0] sm:$0xff] 0.0
      %178 = vst [vmem:[#allocation2 + $0x2c8] sm:$0xff] 0.0
      %179 = vst [vmem:[#allocation2 + $0x2d0] sm:$0xff] 0.0
      %180 = vst [vmem:[#allocation2 + $0x2d8] sm:$0xff] 0.0
      %181 = vst [vmem:[#allocation2 + $0x2e0] sm:$0xff] 0.0
      %182 = vst [vmem:[#allocation2 + $0x2e8] sm:$0xff] 0.0
      %183 = vst [vmem:[#allocation2 + $0x2f0] sm:$0xff] 0.0
      %184 = vst [vmem:[#allocation2 + $0x2f8] sm:$0xff] 0.0
      %185 = vst [vmem:[#allocation2 + $0x300] sm:$0xff] 0.0
      %186 = vst [vmem:[#allocation2 + $0x308] sm:$0xff] 0.0
      %187 = vst [vmem:[#allocation2 + $0x310] sm:$0xff] 0.0
      %188 = vst [vmem:[#allocation2 + $0x318] sm:$0xff] 0.0
      %189 = vst [vmem:[#allocation2 + $0x320] sm:$0xff] 0.0
      %190 = vst [vmem:[#allocation2 + $0x328] sm:$0xff] 0.0
      %191 = vst [vmem:[#allocation2 + $0x330] sm:$0xff] 0.0
      %192 = vst [vmem:[#allocation2 + $0x338] sm:$0xff] 0.0
      %193 = vst [vmem:[#allocation2 + $0x340] sm:$0xff] 0.0
      %194 = vst [vmem:[#allocation2 + $0x348] sm:$0xff] 0.0
      %195 = vst [vmem:[#allocation2 + $0x350] sm:$0xff] 0.0
      %196 = vst [vmem:[#allocation2 + $0x358] sm:$0xff] 0.0
      %197 = vst [vmem:[#allocation2 + $0x360] sm:$0xff] 0.0
      %198 = vst [vmem:[#allocation2 + $0x368] sm:$0xff] 0.0
      %199 = vst [vmem:[#allocation2 + $0x370] sm:$0xff] 0.0
      %200 = vst [vmem:[#allocation2 + $0x378] sm:$0xff] 0.0
      %201 = vst [vmem:[#allocation2 + $0x380] sm:$0xff] 0.0
      %202 = vst [vmem:[#allocation2 + $0x388] sm:$0xff] 0.0
      %203 = vst [vmem:[#allocation2 + $0x390] sm:$0xff] 0.0
      %204 = vst [vmem:[#allocation2 + $0x398] sm:$0xff] 0.0
      %205 = vst [vmem:[#allocation2 + $0x3a0] sm:$0xff] 0.0
      %206 = vst [vmem:[#allocation2 + $0x3a8] sm:$0xff] 0.0
      %207 = vst [vmem:[#allocation2 + $0x3b0] sm:$0xff] 0.0
      %208 = vst [vmem:[#allocation2 + $0x3b8] sm:$0xff] 0.0
      %209 = vst [vmem:[#allocation2 + $0x3c0] sm:$0xff] 0.0
      %210 = vst [vmem:[#allocation2 + $0x3c8] sm:$0xff] 0.0
      %211 = vst [vmem:[#allocation2 + $0x3d0] sm:$0xff] 0.0
      %212 = vst [vmem:[#allocation2 + $0x3d8] sm:$0xff] 0.0
      %213 = vst [vmem:[#allocation2 + $0x3e0] sm:$0xff] 0.0
      %214 = vst [vmem:[#allocation2 + $0x3e8] sm:$0xff] 0.0
      %215 = vst [vmem:[#allocation2 + $0x3f0] sm:$0xff] 0.0
      %216 = vst [vmem:[#allocation2 + $0x3f8] sm:$0xff] 0.0
      %217 = vst [vmem:[#allocation2 + $0x400] sm:$0xff] 0.0
      %218 = vst [vmem:[#allocation2 + $0x408] sm:$0xff] 0.0
      %219 = vst [vmem:[#allocation2 + $0x410] sm:$0xff] 0.0
      %220 = vst [vmem:[#allocation2 + $0x418] sm:$0xff] 0.0
      %221 = vst [vmem:[#allocation2 + $0x420] sm:$0xff] 0.0
      %222 = vst [vmem:[#allocation2 + $0x428] sm:$0xff] 0.0
      %223 = vst [vmem:[#allocation2 + $0x430] sm:$0xff] 0.0
      %224 = vst [vmem:[#allocation2 + $0x438] sm:$0xff] 0.0
      %225 = vst [vmem:[#allocation2 + $0x440] sm:$0xff] 0.0
      %226 = vst [vmem:[#allocation2 + $0x448] sm:$0xff] 0.0
      %227 = vst [vmem:[#allocation2 + $0x450] sm:$0xff] 0.0
      %228 = vst [vmem:[#allocation2 + $0x458] sm:$0xff] 0.0
      %229 = vst [vmem:[#allocation2 + $0x460] sm:$0xff] 0.0
      %230 = vst [vmem:[#allocation2 + $0x468] sm:$0xff] 0.0
      %231 = vst [vmem:[#allocation2 + $0x470] sm:$0xff] 0.0
      %232 = vst [vmem:[#allocation2 + $0x478] sm:$0xff] 0.0
      %233 = vst [vmem:[#allocation2 + $0x480] sm:$0xff] 0.0
      %234 = vst [vmem:[#allocation2 + $0x488] sm:$0xff] 0.0
      %235 = vst [vmem:[#allocation2 + $0x490] sm:$0xff] 0.0
      %236 = vst [vmem:[#allocation2 + $0x498] sm:$0xff] 0.0
      %237 = vst [vmem:[#allocation2 + $0x4a0] sm:$0xff] 0.0
      %238 = vst [vmem:[#allocation2 + $0x4a8] sm:$0xff] 0.0
      %239 = vst [vmem:[#allocation2 + $0x4b0] sm:$0xff] 0.0
      %240 = vst [vmem:[#allocation2 + $0x4b8] sm:$0xff] 0.0
      %241 = vst [vmem:[#allocation2 + $0x4c0] sm:$0xff] 0.0
      %242 = vst [vmem:[#allocation2 + $0x4c8] sm:$0xff] 0.0
      %243 = vst [vmem:[#allocation2 + $0x4d0] sm:$0xff] 0.0
      %244 = vst [vmem:[#allocation2 + $0x4d8] sm:$0xff] 0.0
      %245 = vst [vmem:[#allocation2 + $0x4e0] sm:$0xff] 0.0
      %246 = vst [vmem:[#allocation2 + $0x4e8] sm:$0xff] 0.0
      %247 = vst [vmem:[#allocation2 + $0x4f0] sm:$0xff] 0.0
      %248 = vst [vmem:[#allocation2 + $0x4f8] sm:$0xff] 0.0
      %249 = vst [vmem:[#allocation2 + $0x500] sm:$0xff] 0.0
      %250 = vst [vmem:[#allocation2 + $0x508] sm:$0xff] 0.0
      %251 = vst [vmem:[#allocation2 + $0x510] sm:$0xff] 0.0
      %252 = vst [vmem:[#allocation2 + $0x518] sm:$0xff] 0.0
      %253 = vst [vmem:[#allocation2 + $0x520] sm:$0xff] 0.0
      %254 = vst [vmem:[#allocation2 + $0x528] sm:$0xff] 0.0
      %255 = vst [vmem:[#allocation2 + $0x530] sm:$0xff] 0.0
      %256 = vst [vmem:[#allocation2 + $0x538] sm:$0xff] 0.0
      %257 = vst [vmem:[#allocation2 + $0x540] sm:$0xff] 0.0
      %258 = vst [vmem:[#allocation2 + $0x548] sm:$0xff] 0.0
      %259 = vst [vmem:[#allocation2 + $0x550] sm:$0xff] 0.0
      %260 = vst [vmem:[#allocation2 + $0x558] sm:$0xff] 0.0
      %261 = vst [vmem:[#allocation2 + $0x560] sm:$0xff] 0.0
      %262 = vst [vmem:[#allocation2 + $0x568] sm:$0xff] 0.0
      %263 = vst [vmem:[#allocation2 + $0x570] sm:$0xff] 0.0
      %264 = vst [vmem:[#allocation2 + $0x578] sm:$0xff] 0.0
      %265 = vst [vmem:[#allocation2 + $0x580] sm:$0xff] 0.0
      %266 = vst [vmem:[#allocation2 + $0x588] sm:$0xff] 0.0
      %267 = vst [vmem:[#allocation2 + $0x590] sm:$0xff] 0.0
      %268 = vst [vmem:[#allocation2 + $0x598] sm:$0xff] 0.0
      %269 = vst [vmem:[#allocation2 + $0x5a0] sm:$0xff] 0.0
      %270 = vst [vmem:[#allocation2 + $0x5a8] sm:$0xff] 0.0
      %271 = vst [vmem:[#allocation2 + $0x5b0] sm:$0xff] 0.0
      %272 = vst [vmem:[#allocation2 + $0x5b8] sm:$0xff] 0.0
      %273 = vst [vmem:[#allocation2 + $0x5c0] sm:$0xff] 0.0
      %274 = vst [vmem:[#allocation2 + $0x5c8] sm:$0xff] 0.0
      %275 = vst [vmem:[#allocation2 + $0x5d0] sm:$0xff] 0.0
      %276 = vst [vmem:[#allocation2 + $0x5d8] sm:$0xff] 0.0
      %277 = vst [vmem:[#allocation2 + $0x5e0] sm:$0xff] 0.0
      %278 = vst [vmem:[#allocation2 + $0x5e8] sm:$0xff] 0.0
      %279 = vst [vmem:[#allocation2 + $0x5f0] sm:$0xff] 0.0
      %280 = vst [vmem:[#allocation2 + $0x5f8] sm:$0xff] 0.0
      %281 = vst [vmem:[#allocation2 + $0x600] sm:$0xff] 0.0
      %282 = vst [vmem:[#allocation2 + $0x608] sm:$0xff] 0.0
      %283 = vst [vmem:[#allocation2 + $0x610] sm:$0xff] 0.0
      %284 = vst [vmem:[#allocation2 + $0x618] sm:$0xff] 0.0
      %285 = vst [vmem:[#allocation2 + $0x620] sm:$0xff] 0.0
      %286 = vst [vmem:[#allocation2 + $0x628] sm:$0xff] 0.0
      %287 = vst [vmem:[#allocation2 + $0x630] sm:$0xff] 0.0
      %288 = vst [vmem:[#allocation2 + $0x638] sm:$0xff] 0.0
      %289 = vst [vmem:[#allocation2 + $0x640] sm:$0xff] 0.0
      %290 = vst [vmem:[#allocation2 + $0x648] sm:$0xff] 0.0
      %291 = vst [vmem:[#allocation2 + $0x650] sm:$0xff] 0.0
      %292 = vst [vmem:[#allocation2 + $0x658] sm:$0xff] 0.0
      %293 = vst [vmem:[#allocation2 + $0x660] sm:$0xff] 0.0
      %294 = vst [vmem:[#allocation2 + $0x668] sm:$0xff] 0.0
      %295 = vst [vmem:[#allocation2 + $0x670] sm:$0xff] 0.0
      %296 = vst [vmem:[#allocation2 + $0x678] sm:$0xff] 0.0
      %297 = vst [vmem:[#allocation2 + $0x680] sm:$0xff] 0.0
      %298 = vst [vmem:[#allocation2 + $0x688] sm:$0xff] 0.0
      %299 = vst [vmem:[#allocation2 + $0x690] sm:$0xff] 0.0
      %300 = vst [vmem:[#allocation2 + $0x698] sm:$0xff] 0.0
      %301 = vst [vmem:[#allocation2 + $0x6a0] sm:$0xff] 0.0
      %302 = vst [vmem:[#allocation2 + $0x6a8] sm:$0xff] 0.0
      %303 = vst [vmem:[#allocation2 + $0x6b0] sm:$0xff] 0.0
      %304 = vst [vmem:[#allocation2 + $0x6b8] sm:$0xff] 0.0
      %305 = vst [vmem:[#allocation2 + $0x6c0] sm:$0xff] 0.0
      %306 = vst [vmem:[#allocation2 + $0x6c8] sm:$0xff] 0.0
      %307 = vst [vmem:[#allocation2 + $0x6d0] sm:$0xff] 0.0
      %308 = vst [vmem:[#allocation2 + $0x6d8] sm:$0xff] 0.0
      %309 = vst [vmem:[#allocation2 + $0x6e0] sm:$0xff] 0.0
      %310 = vst [vmem:[#allocation2 + $0x6e8] sm:$0xff] 0.0
      %311 = vst [vmem:[#allocation2 + $0x6f0] sm:$0xff] 0.0
      %312 = vst [vmem:[#allocation2 + $0x6f8] sm:$0xff] 0.0
      %313 = vst [vmem:[#allocation2 + $0x700] sm:$0xff] 0.0
      %314 = vst [vmem:[#allocation2 + $0x708] sm:$0xff] 0.0
      %315 = vst [vmem:[#allocation2 + $0x710] sm:$0xff] 0.0
      %316 = vst [vmem:[#allocation2 + $0x718] sm:$0xff] 0.0
      %317 = vst [vmem:[#allocation2 + $0x720] sm:$0xff] 0.0
      %318 = vst [vmem:[#allocation2 + $0x728] sm:$0xff] 0.0
      %319 = vst [vmem:[#allocation2 + $0x730] sm:$0xff] 0.0
      %320 = vst [vmem:[#allocation2 + $0x738] sm:$0xff] 0.0
      %321 = vst [vmem:[#allocation2 + $0x740] sm:$0xff] 0.0
      %322 = vst [vmem:[#allocation2 + $0x748] sm:$0xff] 0.0
      %323 = vst [vmem:[#allocation2 + $0x750] sm:$0xff] 0.0
      %324 = vst [vmem:[#allocation2 + $0x758] sm:$0xff] 0.0
      %325 = vst [vmem:[#allocation2 + $0x760] sm:$0xff] 0.0
      %326 = vst [vmem:[#allocation2 + $0x768] sm:$0xff] 0.0
      %327 = vst [vmem:[#allocation2 + $0x770] sm:$0xff] 0.0
      %328 = vst [vmem:[#allocation2 + $0x778] sm:$0xff] 0.0
      %329 = vst [vmem:[#allocation2 + $0x780] sm:$0xff] 0.0
      %330 = vst [vmem:[#allocation2 + $0x788] sm:$0xff] 0.0
      %331 = vst [vmem:[#allocation2 + $0x790] sm:$0xff] 0.0
      %332 = vst [vmem:[#allocation2 + $0x798] sm:$0xff] 0.0
      %333 = vst [vmem:[#allocation2 + $0x7a0] sm:$0xff] 0.0
      %334 = vst [vmem:[#allocation2 + $0x7a8] sm:$0xff] 0.0
      %335 = vst [vmem:[#allocation2 + $0x7b0] sm:$0xff] 0.0
      %336 = vst [vmem:[#allocation2 + $0x7b8] sm:$0xff] 0.0
      %337 = vst [vmem:[#allocation2 + $0x7c0] sm:$0xff] 0.0
      %338 = vst [vmem:[#allocation2 + $0x7c8] sm:$0xff] 0.0
      %339 = vst [vmem:[#allocation2 + $0x7d0] sm:$0xff] 0.0
      %340 = vst [vmem:[#allocation2 + $0x7d8] sm:$0xff] 0.0
      %341 = vst [vmem:[#allocation2 + $0x7e0] sm:$0xff] 0.0
      %342 = vst [vmem:[#allocation2 + $0x7e8] sm:$0xff] 0.0
      %343 = vst [vmem:[#allocation2 + $0x7f0] sm:$0xff] 0.0
      %344 = vst [vmem:[#allocation2 + $0x7f8] sm:$0xff] 0.0
    $region45: #{tpu_custom_call.1} parent=1 // pred_fallthru
      _
    %v345 = vld [vmem:[#allocation3] sm:$0xff]
    %v346 = vld [vmem:[#allocation3 + $0x8] sm:$0xff]
    %v347 = vld [vmem:[#allocation3 + $0x10] sm:$0xff]
    %v348 = vld [vmem:[#allocation3 + $0x18] sm:$0xff]
    %v349 = vld [vmem:[#allocation3 + $0x20] sm:$0xff]
    %v350 = vld [vmem:[#allocation3 + $0x28] sm:$0xff]
    %v351 = vld [vmem:[#allocation3 + $0x30] sm:$0xff]
    %v352 = vld [vmem:[#allocation3 + $0x38] sm:$0xff]
    %v353 = vld [vmem:[#allocation3 + $0x40] sm:$0xff]
    %v354 = vld [vmem:[#allocation3 + $0x48] sm:$0xff]
    %v355 = vld [vmem:[#allocation3 + $0x50] sm:$0xff]
    %v356 = vld [vmem:[#allocation3 + $0x58] sm:$0xff]
    %v357 = vld [vmem:[#allocation3 + $0x60] sm:$0xff]
    %v358 = vld [vmem:[#allocation3 + $0x68] sm:$0xff]
    %v359 = vld [vmem:[#allocation3 + $0x70] sm:$0xff]
    %v360 = vld [vmem:[#allocation3 + $0x78] sm:$0xff]
    %v361 = vld [vmem:[#allocation3 + $0x80] sm:$0xff]
    %v362 = vld [vmem:[#allocation3 + $0x88] sm:$0xff]
    %v363 = vld [vmem:[#allocation3 + $0x90] sm:$0xff]
    %v364 = vld [vmem:[#allocation3 + $0x98] sm:$0xff]
    %v365 = vld [vmem:[#allocation3 + $0xa0] sm:$0xff]
    %v366 = vld [vmem:[#allocation3 + $0xa8] sm:$0xff]
    %v367 = vld [vmem:[#allocation3 + $0xb0] sm:$0xff]
    %v368 = vld [vmem:[#allocation3 + $0xb8] sm:$0xff]
    %v369 = vld [vmem:[#allocation3 + $0xc0] sm:$0xff]
    %v370 = vld [vmem:[#allocation3 + $0xc8] sm:$0xff]
    %v371 = vld [vmem:[#allocation3 + $0xd0] sm:$0xff]
    %v372 = vld [vmem:[#allocation3 + $0xd8] sm:$0xff]
    %v373 = vld [vmem:[#allocation3 + $0xe0] sm:$0xff]
    %v374 = vld [vmem:[#allocation3 + $0xe8] sm:$0xff]
    %v375 = vld [vmem:[#allocation3 + $0xf0] sm:$0xff]
    %v376 = vld [vmem:[#allocation3 + $0xf8] sm:$0xff]
    %v377 = vld [vmem:[#allocation3 + $0x100] sm:$0xff]
    %v378 = vld [vmem:[#allocation3 + $0x108] sm:$0xff]
    %v379 = vld [vmem:[#allocation3 + $0x110] sm:$0xff]
    %v380 = vld [vmem:[#allocation3 + $0x118] sm:$0xff]
    %v381 = vld [vmem:[#allocation3 + $0x120] sm:$0xff]
    %v382 = vld [vmem:[#allocation3 + $0x128] sm:$0xff]
    %v383 = vld [vmem:[#allocation3 + $0x130] sm:$0xff]
    %v384 = vld [vmem:[#allocation3 + $0x138] sm:$0xff]
    %v385 = vld [vmem:[#allocation3 + $0x140] sm:$0xff]
    %v386 = vld [vmem:[#allocation3 + $0x148] sm:$0xff]
    %v387 = vld [vmem:[#allocation3 + $0x150] sm:$0xff]
    %v388 = vld [vmem:[#allocation3 + $0x158] sm:$0xff]
    %v389 = vld [vmem:[#allocation3 + $0x160] sm:$0xff]
    %v390 = vld [vmem:[#allocation3 + $0x168] sm:$0xff]
    %v391 = vld [vmem:[#allocation3 + $0x170] sm:$0xff]
    %v392 = vld [vmem:[#allocation3 + $0x178] sm:$0xff]
    %v393 = vld [vmem:[#allocation3 + $0x180] sm:$0xff]
    %v394 = vld [vmem:[#allocation3 + $0x188] sm:$0xff]
    %v395 = vld [vmem:[#allocation3 + $0x190] sm:$0xff]
    %v396 = vld [vmem:[#allocation3 + $0x198] sm:$0xff]
    %v397 = vld [vmem:[#allocation3 + $0x1a0] sm:$0xff]
    %v398 = vld [vmem:[#allocation3 + $0x1a8] sm:$0xff]
    %v399 = vld [vmem:[#allocation3 + $0x1b0] sm:$0xff]
    %v400 = vld [vmem:[#allocation3 + $0x1b8] sm:$0xff]
    %v401 = vld [vmem:[#allocation3 + $0x1c0] sm:$0xff]
    %v402 = vld [vmem:[#allocation3 + $0x1c8] sm:$0xff]
    %v403 = vld [vmem:[#allocation3 + $0x1d0] sm:$0xff]
    %v404 = vld [vmem:[#allocation3 + $0x1d8] sm:$0xff]
    %v405 = vld [vmem:[#allocation3 + $0x1e0] sm:$0xff]
    %v406 = vld [vmem:[#allocation3 + $0x1e8] sm:$0xff]
    %v407 = vld [vmem:[#allocation3 + $0x1f0] sm:$0xff]
    %v408 = vld [vmem:[#allocation3 + $0x1f8] sm:$0xff]
    %v409 = vld [vmem:[#allocation3 + $0x200] sm:$0xff]
    %v410 = vld [vmem:[#allocation3 + $0x208] sm:$0xff]
    %v411 = vld [vmem:[#allocation3 + $0x210] sm:$0xff]
    %v412 = vld [vmem:[#allocation3 + $0x218] sm:$0xff]
    %v413 = vld [vmem:[#allocation3 + $0x220] sm:$0xff]
    %v414 = vld [vmem:[#allocation3 + $0x228] sm:$0xff]
    %v415 = vld [vmem:[#allocation3 + $0x230] sm:$0xff]
    %v416 = vld [vmem:[#allocation3 + $0x238] sm:$0xff]
    %v417 = vld [vmem:[#allocation3 + $0x240] sm:$0xff]
    %v418 = vld [vmem:[#allocation3 + $0x248] sm:$0xff]
    %v419 = vld [vmem:[#allocation3 + $0x250] sm:$0xff]
    %v420 = vld [vmem:[#allocation3 + $0x258] sm:$0xff]
    %v421 = vld [vmem:[#allocation3 + $0x260] sm:$0xff]
    %v422 = vld [vmem:[#allocation3 + $0x268] sm:$0xff]
    %v423 = vld [vmem:[#allocation3 + $0x270] sm:$0xff]
    %v424 = vld [vmem:[#allocation3 + $0x278] sm:$0xff]
    %v425 = vld [vmem:[#allocation3 + $0x280] sm:$0xff]
    %v426 = vld [vmem:[#allocation3 + $0x288] sm:$0xff]
    %v427 = vld [vmem:[#allocation3 + $0x290] sm:$0xff]
    %v428 = vld [vmem:[#allocation3 + $0x298] sm:$0xff]
    %v429 = vld [vmem:[#allocation3 + $0x2a0] sm:$0xff]
    %v430 = vld [vmem:[#allocation3 + $0x2a8] sm:$0xff]
    %v431 = vld [vmem:[#allocation3 + $0x2b0] sm:$0xff]
    %v432 = vld [vmem:[#allocation3 + $0x2b8] sm:$0xff]
    %v433 = vld [vmem:[#allocation3 + $0x2c0] sm:$0xff]
    %v434 = vld [vmem:[#allocation3 + $0x2c8] sm:$0xff]
    %v435 = vld [vmem:[#allocation3 + $0x2d0] sm:$0xff]
    %v436 = vld [vmem:[#allocation3 + $0x2d8] sm:$0xff]
    %v437 = vld [vmem:[#allocation3 + $0x2e0] sm:$0xff]
    %v438 = vld [vmem:[#allocation3 + $0x2e8] sm:$0xff]
    %v439 = vld [vmem:[#allocation3 + $0x2f0] sm:$0xff]
    %v440 = vld [vmem:[#allocation3 + $0x2f8] sm:$0xff]
    %v441 = vld [vmem:[#allocation3 + $0x300] sm:$0xff]
    %v442 = vld [vmem:[#allocation3 + $0x308] sm:$0xff]
    %v443 = vld [vmem:[#allocation3 + $0x310] sm:$0xff]
    %v444 = vld [vmem:[#allocation3 + $0x318] sm:$0xff]
    %v445 = vld [vmem:[#allocation3 + $0x320] sm:$0xff]
    %v446 = vld [vmem:[#allocation3 + $0x328] sm:$0xff]
    %v447 = vld [vmem:[#allocation3 + $0x330] sm:$0xff]
    %v448 = vld [vmem:[#allocation3 + $0x338] sm:$0xff]
    %v449 = vld [vmem:[#allocation3 + $0x340] sm:$0xff]
    %v450 = vld [vmem:[#allocation3 + $0x348] sm:$0xff]
    %v451 = vld [vmem:[#allocation3 + $0x350] sm:$0xff]
    %v452 = vld [vmem:[#allocation3 + $0x358] sm:$0xff]
    %v453 = vld [vmem:[#allocation3 + $0x360] sm:$0xff]
    %v454 = vld [vmem:[#allocation3 + $0x368] sm:$0xff]
    %v455 = vld [vmem:[#allocation3 + $0x370] sm:$0xff]
    %v456 = vld [vmem:[#allocation3 + $0x378] sm:$0xff]
    %v457 = vld [vmem:[#allocation3 + $0x380] sm:$0xff]
    %v458 = vld [vmem:[#allocation3 + $0x388] sm:$0xff]
    %v459 = vld [vmem:[#allocation3 + $0x390] sm:$0xff]
    %v460 = vld [vmem:[#allocation3 + $0x398] sm:$0xff]
    %v461 = vld [vmem:[#allocation3 + $0x3a0] sm:$0xff]
    %v462 = vld [vmem:[#allocation3 + $0x3a8] sm:$0xff]
    %v463 = vld [vmem:[#allocation3 + $0x3b0] sm:$0xff]
    %v464 = vld [vmem:[#allocation3 + $0x3b8] sm:$0xff]
    %v465 = vld [vmem:[#allocation3 + $0x3c0] sm:$0xff]
    %v466 = vld [vmem:[#allocation3 + $0x3c8] sm:$0xff]
    %v467 = vld [vmem:[#allocation3 + $0x3d0] sm:$0xff]
    %v468 = vld [vmem:[#allocation3 + $0x3d8] sm:$0xff]
    %v469 = vld [vmem:[#allocation3 + $0x3e0] sm:$0xff]
    %v470 = vld [vmem:[#allocation3 + $0x3e8] sm:$0xff]
    %v471 = vld [vmem:[#allocation3 + $0x3f0] sm:$0xff]
    %v472 = vld [vmem:[#allocation3 + $0x3f8] sm:$0xff]
    %v473 = vld [vmem:[#allocation3 + $0x400] sm:$0xff]
    %v474 = vld [vmem:[#allocation3 + $0x408] sm:$0xff]
    %v475 = vld [vmem:[#allocation3 + $0x410] sm:$0xff]
    %v476 = vld [vmem:[#allocation3 + $0x418] sm:$0xff]
    %v477 = vld [vmem:[#allocation3 + $0x420] sm:$0xff]
    %v478 = vld [vmem:[#allocation3 + $0x428] sm:$0xff]
    %v479 = vld [vmem:[#allocation3 + $0x430] sm:$0xff]
    %v480 = vld [vmem:[#allocation3 + $0x438] sm:$0xff]
    %v481 = vld [vmem:[#allocation3 + $0x440] sm:$0xff]
    %v482 = vld [vmem:[#allocation3 + $0x448] sm:$0xff]
    %v483 = vld [vmem:[#allocation3 + $0x450] sm:$0xff]
    %v484 = vld [vmem:[#allocation3 + $0x458] sm:$0xff]
    %v485 = vld [vmem:[#allocation3 + $0x460] sm:$0xff]
    %v486 = vld [vmem:[#allocation3 + $0x468] sm:$0xff]
    %v487 = vld [vmem:[#allocation3 + $0x470] sm:$0xff]
    %v488 = vld [vmem:[#allocation3 + $0x478] sm:$0xff]
    %v489 = vld [vmem:[#allocation3 + $0x480] sm:$0xff]
    %v490 = vld [vmem:[#allocation3 + $0x488] sm:$0xff]
    %v491 = vld [vmem:[#allocation3 + $0x490] sm:$0xff]
    %v492 = vld [vmem:[#allocation3 + $0x498] sm:$0xff]
    %v493 = vld [vmem:[#allocation3 + $0x4a0] sm:$0xff]
    %v494 = vld [vmem:[#allocation3 + $0x4a8] sm:$0xff]
    %v495 = vld [vmem:[#allocation3 + $0x4b0] sm:$0xff]
    %v496 = vld [vmem:[#allocation3 + $0x4b8] sm:$0xff]
    %v497 = vld [vmem:[#allocation3 + $0x4c0] sm:$0xff]
    %v498 = vld [vmem:[#allocation3 + $0x4c8] sm:$0xff]
    %v499 = vld [vmem:[#allocation3 + $0x4d0] sm:$0xff]
    %v500 = vld [vmem:[#allocation3 + $0x4d8] sm:$0xff]
    %v501 = vld [vmem:[#allocation3 + $0x4e0] sm:$0xff]
    %v502 = vld [vmem:[#allocation3 + $0x4e8] sm:$0xff]
    %v503 = vld [vmem:[#allocation3 + $0x4f0] sm:$0xff]
    %v504 = vld [vmem:[#allocation3 + $0x4f8] sm:$0xff]
    %v505 = vld [vmem:[#allocation3 + $0x500] sm:$0xff]
    %v506 = vld [vmem:[#allocation3 + $0x508] sm:$0xff]
    %v507 = vld [vmem:[#allocation3 + $0x510] sm:$0xff]
    %v508 = vld [vmem:[#allocation3 + $0x518] sm:$0xff]
    %v509 = vld [vmem:[#allocation3 + $0x520] sm:$0xff]
    %v510 = vld [vmem:[#allocation3 + $0x528] sm:$0xff]
    %v511 = vld [vmem:[#allocation3 + $0x530] sm:$0xff]
    %v512 = vld [vmem:[#allocation3 + $0x538] sm:$0xff]
    %v513 = vld [vmem:[#allocation3 + $0x540] sm:$0xff]
    %v514 = vld [vmem:[#allocation3 + $0x548] sm:$0xff]
    %v515 = vld [vmem:[#allocation3 + $0x550] sm:$0xff]
    %v516 = vld [vmem:[#allocation3 + $0x558] sm:$0xff]
    %v517 = vld [vmem:[#allocation3 + $0x560] sm:$0xff]
    %v518 = vld [vmem:[#allocation3 + $0x568] sm:$0xff]
    %v519 = vld [vmem:[#allocation3 + $0x570] sm:$0xff]
    %v520 = vld [vmem:[#allocation3 + $0x578] sm:$0xff]
    %v521 = vld [vmem:[#allocation3 + $0x580] sm:$0xff]
    %v522 = vld [vmem:[#allocation3 + $0x588] sm:$0xff]
    %v523 = vld [vmem:[#allocation3 + $0x590] sm:$0xff]
    %v524 = vld [vmem:[#allocation3 + $0x598] sm:$0xff]
    %v525 = vld [vmem:[#allocation3 + $0x5a0] sm:$0xff]
    %v526 = vld [vmem:[#allocation3 + $0x5a8] sm:$0xff]
    %v527 = vld [vmem:[#allocation3 + $0x5b0] sm:$0xff]
    %v528 = vld [vmem:[#allocation3 + $0x5b8] sm:$0xff]
    %v529 = vld [vmem:[#allocation3 + $0x5c0] sm:$0xff]
    %v530 = vld [vmem:[#allocation3 + $0x5c8] sm:$0xff]
    %v531 = vld [vmem:[#allocation3 + $0x5d0] sm:$0xff]
    %v532 = vld [vmem:[#allocation3 + $0x5d8] sm:$0xff]
    %v533 = vld [vmem:[#allocation3 + $0x5e0] sm:$0xff]
    %v534 = vld [vmem:[#allocation3 + $0x5e8] sm:$0xff]
    %v535 = vld [vmem:[#allocation3 + $0x5f0] sm:$0xff]
    %v536 = vld [vmem:[#allocation3 + $0x5f8] sm:$0xff]
    %v537 = vld [vmem:[#allocation3 + $0x600] sm:$0xff]
    %v538 = vld [vmem:[#allocation3 + $0x608] sm:$0xff]
    %v539 = vld [vmem:[#allocation3 + $0x610] sm:$0xff]
    %v540 = vld [vmem:[#allocation3 + $0x618] sm:$0xff]
    %v541 = vld [vmem:[#allocation3 + $0x620] sm:$0xff]
    %v542 = vld [vmem:[#allocation3 + $0x628] sm:$0xff]
    %v543 = vld [vmem:[#allocation3 + $0x630] sm:$0xff]
    %v544 = vld [vmem:[#allocation3 + $0x638] sm:$0xff]
    %v545 = vld [vmem:[#allocation3 + $0x640] sm:$0xff]
    %v546 = vld [vmem:[#allocation3 + $0x648] sm:$0xff]
    %v547 = vld [vmem:[#allocation3 + $0x650] sm:$0xff]
    %v548 = vld [vmem:[#allocation3 + $0x658] sm:$0xff]
    %v549 = vld [vmem:[#allocation3 + $0x660] sm:$0xff]
    %v550 = vld [vmem:[#allocation3 + $0x668] sm:$0xff]
    %v551 = vld [vmem:[#allocation3 + $0x670] sm:$0xff]
    %v552 = vld [vmem:[#allocation3 + $0x678] sm:$0xff]
    %v553 = vld [vmem:[#allocation3 + $0x680] sm:$0xff]
    %v554 = vld [vmem:[#allocation3 + $0x688] sm:$0xff]
    %v555 = vld [vmem:[#allocation3 + $0x690] sm:$0xff]
    %v556 = vld [vmem:[#allocation3 + $0x698] sm:$0xff]
    %v557 = vld [vmem:[#allocation3 + $0x6a0] sm:$0xff]
    %v558 = vld [vmem:[#allocation3 + $0x6a8] sm:$0xff]
    %v559 = vld [vmem:[#allocation3 + $0x6b0] sm:$0xff]
    %v560 = vld [vmem:[#allocation3 + $0x6b8] sm:$0xff]
    %v561 = vld [vmem:[#allocation3 + $0x6c0] sm:$0xff]
    %v562 = vld [vmem:[#allocation3 + $0x6c8] sm:$0xff]
    %v563 = vld [vmem:[#allocation3 + $0x6d0] sm:$0xff]
    %v564 = vld [vmem:[#allocation3 + $0x6d8] sm:$0xff]
    %v565 = vld [vmem:[#allocation3 + $0x6e0] sm:$0xff]
    %v566 = vld [vmem:[#allocation3 + $0x6e8] sm:$0xff]
    %v567 = vld [vmem:[#allocation3 + $0x6f0] sm:$0xff]
    %v568 = vld [vmem:[#allocation3 + $0x6f8] sm:$0xff]
    %v569 = vld [vmem:[#allocation3 + $0x700] sm:$0xff]
    %v570 = vld [vmem:[#allocation3 + $0x708] sm:$0xff]
    %v571 = vld [vmem:[#allocation3 + $0x710] sm:$0xff]
    %v572 = vld [vmem:[#allocation3 + $0x718] sm:$0xff]
    %v573 = vld [vmem:[#allocation3 + $0x720] sm:$0xff]
    %v574 = vld [vmem:[#allocation3 + $0x728] sm:$0xff]
    %v575 = vld [vmem:[#allocation3 + $0x730] sm:$0xff]
    %v576 = vld [vmem:[#allocation3 + $0x738] sm:$0xff]
    %v577 = vld [vmem:[#allocation3 + $0x740] sm:$0xff]
    %v578 = vld [vmem:[#allocation3 + $0x748] sm:$0xff]
    %v579 = vld [vmem:[#allocation3 + $0x750] sm:$0xff]
    %v580 = vld [vmem:[#allocation3 + $0x758] sm:$0xff]
    %v581 = vld [vmem:[#allocation3 + $0x760] sm:$0xff]
    %v582 = vld [vmem:[#allocation3 + $0x768] sm:$0xff]
    %v583 = vld [vmem:[#allocation3 + $0x770] sm:$0xff]
    %v584 = vld [vmem:[#allocation3 + $0x778] sm:$0xff]
    %v585 = vld [vmem:[#allocation3 + $0x780] sm:$0xff]
    %v586 = vld [vmem:[#allocation3 + $0x788] sm:$0xff]
    %v587 = vld [vmem:[#allocation3 + $0x790] sm:$0xff]
    %v588 = vld [vmem:[#allocation3 + $0x798] sm:$0xff]
    %v589 = vld [vmem:[#allocation3 + $0x7a0] sm:$0xff]
    %v590 = vld [vmem:[#allocation3 + $0x7a8] sm:$0xff]
    %v591 = vld [vmem:[#allocation3 + $0x7b0] sm:$0xff]
    %v592 = vld [vmem:[#allocation3 + $0x7b8] sm:$0xff]
    %v593 = vld [vmem:[#allocation3 + $0x7c0] sm:$0xff]
    %v594 = vld [vmem:[#allocation3 + $0x7c8] sm:$0xff]
    %v595 = vld [vmem:[#allocation3 + $0x7d0] sm:$0xff]
    %v596 = vld [vmem:[#allocation3 + $0x7d8] sm:$0xff]
    %v597 = vld [vmem:[#allocation3 + $0x7e0] sm:$0xff]
    %v598 = vld [vmem:[#allocation3 + $0x7e8] sm:$0xff]
    %v599 = vld [vmem:[#allocation3 + $0x7f0] sm:$0xff]
    %v600 = vld [vmem:[#allocation3 + $0x7f8] sm:$0xff]
    %v601 = vld [vmem:[#allocation3 + $0x800] sm:$0xff]
    %v602 = vld [vmem:[#allocation3 + $0x808] sm:$0xff]
    %v603 = vld [vmem:[#allocation3 + $0x810] sm:$0xff]
    %v604 = vld [vmem:[#allocation3 + $0x818] sm:$0xff]
    %v605 = vld [vmem:[#allocation3 + $0x820] sm:$0xff]
    %v606 = vld [vmem:[#allocation3 + $0x828] sm:$0xff]
    %v607 = vld [vmem:[#allocation3 + $0x830] sm:$0xff]
    %v608 = vld [vmem:[#allocation3 + $0x838] sm:$0xff]
    %v609 = vld [vmem:[#allocation3 + $0x840] sm:$0xff]
    %v610 = vld [vmem:[#allocation3 + $0x848] sm:$0xff]
    %v611 = vld [vmem:[#allocation3 + $0x850] sm:$0xff]
    %v612 = vld [vmem:[#allocation3 + $0x858] sm:$0xff]
    %v613 = vld [vmem:[#allocation3 + $0x860] sm:$0xff]
    %v614 = vld [vmem:[#allocation3 + $0x868] sm:$0xff]
    %v615 = vld [vmem:[#allocation3 + $0x870] sm:$0xff]
    %v616 = vld [vmem:[#allocation3 + $0x878] sm:$0xff]
    %v617 = vld [vmem:[#allocation3 + $0x880] sm:$0xff]
    %v618 = vld [vmem:[#allocation3 + $0x888] sm:$0xff]
    %v619 = vld [vmem:[#allocation3 + $0x890] sm:$0xff]
    %v620 = vld [vmem:[#allocation3 + $0x898] sm:$0xff]
    %v621 = vld [vmem:[#allocation3 + $0x8a0] sm:$0xff]
    %v622 = vld [vmem:[#allocation3 + $0x8a8] sm:$0xff]
    %v623 = vld [vmem:[#allocation3 + $0x8b0] sm:$0xff]
    %v624 = vld [vmem:[#allocation3 + $0x8b8] sm:$0xff]
    %v625 = vld [vmem:[#allocation3 + $0x8c0] sm:$0xff]
    %v626 = vld [vmem:[#allocation3 + $0x8c8] sm:$0xff]
    %v627 = vld [vmem:[#allocation3 + $0x8d0] sm:$0xff]
    %v628 = vld [vmem:[#allocation3 + $0x8d8] sm:$0xff]
    %v629 = vld [vmem:[#allocation3 + $0x8e0] sm:$0xff]
    %v630 = vld [vmem:[#allocation3 + $0x8e8] sm:$0xff]
    %v631 = vld [vmem:[#allocation3 + $0x8f0] sm:$0xff]
    %v632 = vld [vmem:[#allocation3 + $0x8f8] sm:$0xff]
    %v633 = vld [vmem:[#allocation3 + $0x900] sm:$0xff]
    %v634 = vld [vmem:[#allocation3 + $0x908] sm:$0xff]
    %v635 = vld [vmem:[#allocation3 + $0x910] sm:$0xff]
    %v636 = vld [vmem:[#allocation3 + $0x918] sm:$0xff]
    %v637 = vld [vmem:[#allocation3 + $0x920] sm:$0xff]
    %v638 = vld [vmem:[#allocation3 + $0x928] sm:$0xff]
    %v639 = vld [vmem:[#allocation3 + $0x930] sm:$0xff]
    %v640 = vld [vmem:[#allocation3 + $0x938] sm:$0xff]
    %v641 = vld [vmem:[#allocation3 + $0x940] sm:$0xff]
    %v642 = vld [vmem:[#allocation3 + $0x948] sm:$0xff]
    %v643 = vld [vmem:[#allocation3 + $0x950] sm:$0xff]
    %v644 = vld [vmem:[#allocation3 + $0x958] sm:$0xff]
    %v645 = vld [vmem:[#allocation3 + $0x960] sm:$0xff]
    %v646 = vld [vmem:[#allocation3 + $0x968] sm:$0xff]
    %v647 = vld [vmem:[#allocation3 + $0x970] sm:$0xff]
    %v648 = vld [vmem:[#allocation3 + $0x978] sm:$0xff]
    %v649 = vld [vmem:[#allocation3 + $0x980] sm:$0xff]
    %v650 = vld [vmem:[#allocation3 + $0x988] sm:$0xff]
    %v651 = vld [vmem:[#allocation3 + $0x990] sm:$0xff]
    %v652 = vld [vmem:[#allocation3 + $0x998] sm:$0xff]
    %v653 = vld [vmem:[#allocation3 + $0x9a0] sm:$0xff]
    %v654 = vld [vmem:[#allocation3 + $0x9a8] sm:$0xff]
    %v655 = vld [vmem:[#allocation3 + $0x9b0] sm:$0xff]
    %v656 = vld [vmem:[#allocation3 + $0x9b8] sm:$0xff]
    %v657 = vld [vmem:[#allocation3 + $0x9c0] sm:$0xff]
    %v658 = vld [vmem:[#allocation3 + $0x9c8] sm:$0xff]
    %v659 = vld [vmem:[#allocation3 + $0x9d0] sm:$0xff]
    %v660 = vld [vmem:[#allocation3 + $0x9d8] sm:$0xff]
    %v661 = vld [vmem:[#allocation3 + $0x9e0] sm:$0xff]
    %v662 = vld [vmem:[#allocation3 + $0x9e8] sm:$0xff]
    %v663 = vld [vmem:[#allocation3 + $0x9f0] sm:$0xff]
    %v664 = vld [vmem:[#allocation3 + $0x9f8] sm:$0xff]
    %v665 = vld [vmem:[#allocation3 + $0xa00] sm:$0xff]
    %v666 = vld [vmem:[#allocation3 + $0xa08] sm:$0xff]
    %v667 = vld [vmem:[#allocation3 + $0xa10] sm:$0xff]
    %v668 = vld [vmem:[#allocation3 + $0xa18] sm:$0xff]
    %v669 = vld [vmem:[#allocation3 + $0xa20] sm:$0xff]
    %v670 = vld [vmem:[#allocation3 + $0xa28] sm:$0xff]
    %v671 = vld [vmem:[#allocation3 + $0xa30] sm:$0xff]
    %v672 = vld [vmem:[#allocation3 + $0xa38] sm:$0xff]
    %v673 = vld [vmem:[#allocation3 + $0xa40] sm:$0xff]
    %v674 = vld [vmem:[#allocation3 + $0xa48] sm:$0xff]
    %v675 = vld [vmem:[#allocation3 + $0xa50] sm:$0xff]
    %v676 = vld [vmem:[#allocation3 + $0xa58] sm:$0xff]
    %v677 = vld [vmem:[#allocation3 + $0xa60] sm:$0xff]
    %v678 = vld [vmem:[#allocation3 + $0xa68] sm:$0xff]
    %v679 = vld [vmem:[#allocation3 + $0xa70] sm:$0xff]
    %v680 = vld [vmem:[#allocation3 + $0xa78] sm:$0xff]
    %v681 = vld [vmem:[#allocation3 + $0xa80] sm:$0xff]
    %v682 = vld [vmem:[#allocation3 + $0xa88] sm:$0xff]
    %v683 = vld [vmem:[#allocation3 + $0xa90] sm:$0xff]
    %v684 = vld [vmem:[#allocation3 + $0xa98] sm:$0xff]
    %v685 = vld [vmem:[#allocation3 + $0xaa0] sm:$0xff]
    %v686 = vld [vmem:[#allocation3 + $0xaa8] sm:$0xff]
    %v687 = vld [vmem:[#allocation3 + $0xab0] sm:$0xff]
    %v688 = vld [vmem:[#allocation3 + $0xab8] sm:$0xff]
    %v689 = vld [vmem:[#allocation3 + $0xac0] sm:$0xff]
    %v690 = vld [vmem:[#allocation3 + $0xac8] sm:$0xff]
    %v691 = vld [vmem:[#allocation3 + $0xad0] sm:$0xff]
    %v692 = vld [vmem:[#allocation3 + $0xad8] sm:$0xff]
    %v693 = vld [vmem:[#allocation3 + $0xae0] sm:$0xff]
    %v694 = vld [vmem:[#allocation3 + $0xae8] sm:$0xff]
    %v695 = vld [vmem:[#allocation3 + $0xaf0] sm:$0xff]
    %v696 = vld [vmem:[#allocation3 + $0xaf8] sm:$0xff]
    %v697 = vld [vmem:[#allocation3 + $0xb00] sm:$0xff]
    %v698 = vld [vmem:[#allocation3 + $0xb08] sm:$0xff]
    %v699 = vld [vmem:[#allocation3 + $0xb10] sm:$0xff]
    %v700 = vld [vmem:[#allocation3 + $0xb18] sm:$0xff]
    %v701 = vld [vmem:[#allocation3 + $0xb20] sm:$0xff]
    %v702 = vld [vmem:[#allocation3 + $0xb28] sm:$0xff]
    %v703 = vld [vmem:[#allocation3 + $0xb30] sm:$0xff]
    %v704 = vld [vmem:[#allocation3 + $0xb38] sm:$0xff]
    %v705 = vld [vmem:[#allocation3 + $0xb40] sm:$0xff]
    %v706 = vld [vmem:[#allocation3 + $0xb48] sm:$0xff]
    %v707 = vld [vmem:[#allocation3 + $0xb50] sm:$0xff]
    %v708 = vld [vmem:[#allocation3 + $0xb58] sm:$0xff]
    %v709 = vld [vmem:[#allocation3 + $0xb60] sm:$0xff]
    %v710 = vld [vmem:[#allocation3 + $0xb68] sm:$0xff]
    %v711 = vld [vmem:[#allocation3 + $0xb70] sm:$0xff]
    %v712 = vld [vmem:[#allocation3 + $0xb78] sm:$0xff]
    %v713 = vld [vmem:[#allocation3 + $0xb80] sm:$0xff]
    %v714 = vld [vmem:[#allocation3 + $0xb88] sm:$0xff]
    %v715 = vld [vmem:[#allocation3 + $0xb90] sm:$0xff]
    %v716 = vld [vmem:[#allocation3 + $0xb98] sm:$0xff]
    %v717 = vld [vmem:[#allocation3 + $0xba0] sm:$0xff]
    %v718 = vld [vmem:[#allocation3 + $0xba8] sm:$0xff]
    %v719 = vld [vmem:[#allocation3 + $0xbb0] sm:$0xff]
    %v720 = vld [vmem:[#allocation3 + $0xbb8] sm:$0xff]
    %v721 = vld [vmem:[#allocation3 + $0xbc0] sm:$0xff]
    %v722 = vld [vmem:[#allocation3 + $0xbc8] sm:$0xff]
    %v723 = vld [vmem:[#allocation3 + $0xbd0] sm:$0xff]
    %v724 = vld [vmem:[#allocation3 + $0xbd8] sm:$0xff]
    %v725 = vld [vmem:[#allocation3 + $0xbe0] sm:$0xff]
    %v726 = vld [vmem:[#allocation3 + $0xbe8] sm:$0xff]
    %v727 = vld [vmem:[#allocation3 + $0xbf0] sm:$0xff]
    %v728 = vld [vmem:[#allocation3 + $0xbf8] sm:$0xff]
    %v729 = vld [vmem:[#allocation3 + $0xc00] sm:$0xff]
    %v730 = vld [vmem:[#allocation3 + $0xc08] sm:$0xff]
    %v731 = vld [vmem:[#allocation3 + $0xc10] sm:$0xff]
    %v732 = vld [vmem:[#allocation3 + $0xc18] sm:$0xff]
    %v733 = vld [vmem:[#allocation3 + $0xc20] sm:$0xff]
    %v734 = vld [vmem:[#allocation3 + $0xc28] sm:$0xff]
    %v735 = vld [vmem:[#allocation3 + $0xc30] sm:$0xff]
    %v736 = vld [vmem:[#allocation3 + $0xc38] sm:$0xff]
    %v737 = vld [vmem:[#allocation3 + $0xc40] sm:$0xff]
    %v738 = vld [vmem:[#allocation3 + $0xc48] sm:$0xff]
    %v739 = vld [vmem:[#allocation3 + $0xc50] sm:$0xff]
    %v740 = vld [vmem:[#allocation3 + $0xc58] sm:$0xff]
    %v741 = vld [vmem:[#allocation3 + $0xc60] sm:$0xff]
    %v742 = vld [vmem:[#allocation3 + $0xc68] sm:$0xff]
    %v743 = vld [vmem:[#allocation3 + $0xc70] sm:$0xff]
    %v744 = vld [vmem:[#allocation3 + $0xc78] sm:$0xff]
    %v745 = vld [vmem:[#allocation3 + $0xc80] sm:$0xff]
    %v746 = vld [vmem:[#allocation3 + $0xc88] sm:$0xff]
    %v747 = vld [vmem:[#allocation3 + $0xc90] sm:$0xff]
    %v748 = vld [vmem:[#allocation3 + $0xc98] sm:$0xff]
    %v749 = vld [vmem:[#allocation3 + $0xca0] sm:$0xff]
    %v750 = vld [vmem:[#allocation3 + $0xca8] sm:$0xff]
    %v751 = vld [vmem:[#allocation3 + $0xcb0] sm:$0xff]
    %v752 = vld [vmem:[#allocation3 + $0xcb8] sm:$0xff]
    %v753 = vld [vmem:[#allocation3 + $0xcc0] sm:$0xff]
    %v754 = vld [vmem:[#allocation3 + $0xcc8] sm:$0xff]
    %v755 = vld [vmem:[#allocation3 + $0xcd0] sm:$0xff]
    %v756 = vld [vmem:[#allocation3 + $0xcd8] sm:$0xff]
    %v757 = vld [vmem:[#allocation3 + $0xce0] sm:$0xff]
    %v758 = vld [vmem:[#allocation3 + $0xce8] sm:$0xff]
    %v759 = vld [vmem:[#allocation3 + $0xcf0] sm:$0xff]
    %v760 = vld [vmem:[#allocation3 + $0xcf8] sm:$0xff]
    %v761 = vld [vmem:[#allocation3 + $0xd00] sm:$0xff]
    %v762 = vld [vmem:[#allocation3 + $0xd08] sm:$0xff]
    %v763 = vld [vmem:[#allocation3 + $0xd10] sm:$0xff]
    %v764 = vld [vmem:[#allocation3 + $0xd18] sm:$0xff]
    %v765 = vld [vmem:[#allocation3 + $0xd20] sm:$0xff]
    %v766 = vld [vmem:[#allocation3 + $0xd28] sm:$0xff]
    %v767 = vld [vmem:[#allocation3 + $0xd30] sm:$0xff]
    %v768 = vld [vmem:[#allocation3 + $0xd38] sm:$0xff]
    %v769 = vld [vmem:[#allocation3 + $0xd40] sm:$0xff]
    %v770 = vld [vmem:[#allocation3 + $0xd48] sm:$0xff]
    %v771 = vld [vmem:[#allocation3 + $0xd50] sm:$0xff]
    %v772 = vld [vmem:[#allocation3 + $0xd58] sm:$0xff]
    %v773 = vld [vmem:[#allocation3 + $0xd60] sm:$0xff]
    %v774 = vld [vmem:[#allocation3 + $0xd68] sm:$0xff]
    %v775 = vld [vmem:[#allocation3 + $0xd70] sm:$0xff]
    %v776 = vld [vmem:[#allocation3 + $0xd78] sm:$0xff]
    %v777 = vld [vmem:[#allocation3 + $0xd80] sm:$0xff]
    %v778 = vld [vmem:[#allocation3 + $0xd88] sm:$0xff]
    %v779 = vld [vmem:[#allocation3 + $0xd90] sm:$0xff]
    %v780 = vld [vmem:[#allocation3 + $0xd98] sm:$0xff]
    %v781 = vld [vmem:[#allocation3 + $0xda0] sm:$0xff]
    %v782 = vld [vmem:[#allocation3 + $0xda8] sm:$0xff]
    %v783 = vld [vmem:[#allocation3 + $0xdb0] sm:$0xff]
    %v784 = vld [vmem:[#allocation3 + $0xdb8] sm:$0xff]
    %v785 = vld [vmem:[#allocation3 + $0xdc0] sm:$0xff]
    %v786 = vld [vmem:[#allocation3 + $0xdc8] sm:$0xff]
    %v787 = vld [vmem:[#allocation3 + $0xdd0] sm:$0xff]
    %v788 = vld [vmem:[#allocation3 + $0xdd8] sm:$0xff]
    %v789 = vld [vmem:[#allocation3 + $0xde0] sm:$0xff]
    %v790 = vld [vmem:[#allocation3 + $0xde8] sm:$0xff]
    %v791 = vld [vmem:[#allocation3 + $0xdf0] sm:$0xff]
    %v792 = vld [vmem:[#allocation3 + $0xdf8] sm:$0xff]
    %v793 = vld [vmem:[#allocation3 + $0xe00] sm:$0xff]
    %v794 = vld [vmem:[#allocation3 + $0xe08] sm:$0xff]
    %v795 = vld [vmem:[#allocation3 + $0xe10] sm:$0xff]
    %v796 = vld [vmem:[#allocation3 + $0xe18] sm:$0xff]
    %v797 = vld [vmem:[#allocation3 + $0xe20] sm:$0xff]
    %v798 = vld [vmem:[#allocation3 + $0xe28] sm:$0xff]
    %v799 = vld [vmem:[#allocation3 + $0xe30] sm:$0xff]
    %v800 = vld [vmem:[#allocation3 + $0xe38] sm:$0xff]
    %v801 = vld [vmem:[#allocation3 + $0xe40] sm:$0xff]
    %v802 = vld [vmem:[#allocation3 + $0xe48] sm:$0xff]
    %v803 = vld [vmem:[#allocation3 + $0xe50] sm:$0xff]
    %v804 = vld [vmem:[#allocation3 + $0xe58] sm:$0xff]
    %v805 = vld [vmem:[#allocation3 + $0xe60] sm:$0xff]
    %v806 = vld [vmem:[#allocation3 + $0xe68] sm:$0xff]
    %v807 = vld [vmem:[#allocation3 + $0xe70] sm:$0xff]
    %v808 = vld [vmem:[#allocation3 + $0xe78] sm:$0xff]
    %v809 = vld [vmem:[#allocation3 + $0xe80] sm:$0xff]
    %v810 = vld [vmem:[#allocation3 + $0xe88] sm:$0xff]
    %v811 = vld [vmem:[#allocation3 + $0xe90] sm:$0xff]
    %v812 = vld [vmem:[#allocation3 + $0xe98] sm:$0xff]
    %v813 = vld [vmem:[#allocation3 + $0xea0] sm:$0xff]
    %v814 = vld [vmem:[#allocation3 + $0xea8] sm:$0xff]
    %v815 = vld [vmem:[#allocation3 + $0xeb0] sm:$0xff]
    %v816 = vld [vmem:[#allocation3 + $0xeb8] sm:$0xff]
    %v817 = vld [vmem:[#allocation3 + $0xec0] sm:$0xff]
    %v818 = vld [vmem:[#allocation3 + $0xec8] sm:$0xff]
    %v819 = vld [vmem:[#allocation3 + $0xed0] sm:$0xff]
    %v820 = vld [vmem:[#allocation3 + $0xed8] sm:$0xff]
    %v821 = vld [vmem:[#allocation3 + $0xee0] sm:$0xff]
    %v822 = vld [vmem:[#allocation3 + $0xee8] sm:$0xff]
    %v823 = vld [vmem:[#allocation3 + $0xef0] sm:$0xff]
    %v824 = vld [vmem:[#allocation3 + $0xef8] sm:$0xff]
    %v825 = vld [vmem:[#allocation3 + $0xf00] sm:$0xff]
    %v826 = vld [vmem:[#allocation3 + $0xf08] sm:$0xff]
    %v827 = vld [vmem:[#allocation3 + $0xf10] sm:$0xff]
    %v828 = vld [vmem:[#allocation3 + $0xf18] sm:$0xff]
    %v829 = vld [vmem:[#allocation3 + $0xf20] sm:$0xff]
    %v830 = vld [vmem:[#allocation3 + $0xf28] sm:$0xff]
    %v831 = vld [vmem:[#allocation3 + $0xf30] sm:$0xff]
    %v832 = vld [vmem:[#allocation3 + $0xf38] sm:$0xff]
    %v833 = vld [vmem:[#allocation3 + $0xf40] sm:$0xff]
    %v834 = vld [vmem:[#allocation3 + $0xf48] sm:$0xff]
    %v835 = vld [vmem:[#allocation3 + $0xf50] sm:$0xff]
    %v836 = vld [vmem:[#allocation3 + $0xf58] sm:$0xff]
    %v837 = vld [vmem:[#allocation3 + $0xf60] sm:$0xff]
    %v838 = vld [vmem:[#allocation3 + $0xf68] sm:$0xff]
    %v839 = vld [vmem:[#allocation3 + $0xf70] sm:$0xff]
    %v840 = vld [vmem:[#allocation3 + $0xf78] sm:$0xff]
    %v841 = vld [vmem:[#allocation3 + $0xf80] sm:$0xff]
    %v842 = vld [vmem:[#allocation3 + $0xf88] sm:$0xff]
    %v843 = vld [vmem:[#allocation3 + $0xf90] sm:$0xff]
    %v844 = vld [vmem:[#allocation3 + $0xf98] sm:$0xff]
    %v845 = vld [vmem:[#allocation3 + $0xfa0] sm:$0xff]
    %v846 = vld [vmem:[#allocation3 + $0xfa8] sm:$0xff]
    %v847 = vld [vmem:[#allocation3 + $0xfb0] sm:$0xff]
    %v848 = vld [vmem:[#allocation3 + $0xfb8] sm:$0xff]
    %v849 = vld [vmem:[#allocation3 + $0xfc0] sm:$0xff]
    %v850 = vld [vmem:[#allocation3 + $0xfc8] sm:$0xff]
    %v851 = vld [vmem:[#allocation3 + $0xfd0] sm:$0xff]
    %v852 = vld [vmem:[#allocation3 + $0xfd8] sm:$0xff]
    %v853 = vld [vmem:[#allocation3 + $0xfe0] sm:$0xff]
    %v854 = vld [vmem:[#allocation3 + $0xfe8] sm:$0xff]
    %v855 = vld [vmem:[#allocation3 + $0xff0] sm:$0xff]
    %v856 = vld [vmem:[#allocation3 + $0xff8] sm:$0xff]
    %v857 = vadd.f32 %v345, %v346
    %v858 = vadd.f32 %v347, %v348
    %v859 = vadd.f32 %v349, %v350
    %v860 = vadd.f32 %v351, %v352
    %v861 = vadd.f32 %v353, %v354
    %v862 = vadd.f32 %v355, %v356
    %v863 = vadd.f32 %v357, %v358
    %v864 = vadd.f32 %v359, %v360
    %v865 = vadd.f32 %v361, %v362
    %v866 = vadd.f32 %v363, %v364
    %v867 = vadd.f32 %v365, %v366
    %v868 = vadd.f32 %v367, %v368
    %v869 = vadd.f32 %v369, %v370
    %v870 = vadd.f32 %v371, %v372
    %v871 = vadd.f32 %v373, %v374
    %v872 = vadd.f32 %v375, %v376
    %v873 = vadd.f32 %v377, %v378
    %v874 = vadd.f32 %v379, %v380
    %v875 = vadd.f32 %v381, %v382
    %v876 = vadd.f32 %v383, %v384
    %v877 = vadd.f32 %v385, %v386
    %v878 = vadd.f32 %v387, %v388
    %v879 = vadd.f32 %v389, %v390
    %v880 = vadd.f32 %v391, %v392
    %v881 = vadd.f32 %v393, %v394
    %v882 = vadd.f32 %v395, %v396
    %v883 = vadd.f32 %v397, %v398
    %v884 = vadd.f32 %v399, %v400
    %v885 = vadd.f32 %v401, %v402
    %v886 = vadd.f32 %v403, %v404
    %v887 = vadd.f32 %v405, %v406
    %v888 = vadd.f32 %v407, %v408
    %v889 = vadd.f32 %v409, %v410
    %v890 = vadd.f32 %v411, %v412
    %v891 = vadd.f32 %v413, %v414
    %v892 = vadd.f32 %v415, %v416
    %v893 = vadd.f32 %v417, %v418
    %v894 = vadd.f32 %v419, %v420
    %v895 = vadd.f32 %v421, %v422
    %v896 = vadd.f32 %v423, %v424
    %v897 = vadd.f32 %v425, %v426
    %v898 = vadd.f32 %v427, %v428
    %v899 = vadd.f32 %v429, %v430
    %v900 = vadd.f32 %v431, %v432
    %v901 = vadd.f32 %v433, %v434
    %v902 = vadd.f32 %v435, %v436
    %v903 = vadd.f32 %v437, %v438
    %v904 = vadd.f32 %v439, %v440
    %v905 = vadd.f32 %v441, %v442
    %v906 = vadd.f32 %v443, %v444
    %v907 = vadd.f32 %v445, %v446
    %v908 = vadd.f32 %v447, %v448
    %v909 = vadd.f32 %v449, %v450
    %v910 = vadd.f32 %v451, %v452
    %v911 = vadd.f32 %v453, %v454
    %v912 = vadd.f32 %v455, %v456
    %v913 = vadd.f32 %v457, %v458
    %v914 = vadd.f32 %v459, %v460
    %v915 = vadd.f32 %v461, %v462
    %v916 = vadd.f32 %v463, %v464
    %v917 = vadd.f32 %v465, %v466
    %v918 = vadd.f32 %v467, %v468
    %v919 = vadd.f32 %v469, %v470
    %v920 = vadd.f32 %v471, %v472
    %v921 = vadd.f32 %v473, %v474
    %v922 = vadd.f32 %v475, %v476
    %v923 = vadd.f32 %v477, %v478
    %v924 = vadd.f32 %v479, %v480
    %v925 = vadd.f32 %v481, %v482
    %v926 = vadd.f32 %v483, %v484
    %v927 = vadd.f32 %v485, %v486
    %v928 = vadd.f32 %v487, %v488
    %v929 = vadd.f32 %v489, %v490
    %v930 = vadd.f32 %v491, %v492
    %v931 = vadd.f32 %v493, %v494
    %v932 = vadd.f32 %v495, %v496
    %v933 = vadd.f32 %v497, %v498
    %v934 = vadd.f32 %v499, %v500
    %v935 = vadd.f32 %v501, %v502
    %v936 = vadd.f32 %v503, %v504
    %v937 = vadd.f32 %v505, %v506
    %v938 = vadd.f32 %v507, %v508
    %v939 = vadd.f32 %v509, %v510
    %v940 = vadd.f32 %v511, %v512
    %v941 = vadd.f32 %v513, %v514
    %v942 = vadd.f32 %v515, %v516
    %v943 = vadd.f32 %v517, %v518
    %v944 = vadd.f32 %v519, %v520
    %v945 = vadd.f32 %v521, %v522
    %v946 = vadd.f32 %v523, %v524
    %v947 = vadd.f32 %v525, %v526
    %v948 = vadd.f32 %v527, %v528
    %v949 = vadd.f32 %v529, %v530
    %v950 = vadd.f32 %v531, %v532
    %v951 = vadd.f32 %v533, %v534
    %v952 = vadd.f32 %v535, %v536
    %v953 = vadd.f32 %v537, %v538
    %v954 = vadd.f32 %v539, %v540
    %v955 = vadd.f32 %v541, %v542
    %v956 = vadd.f32 %v543, %v544
    %v957 = vadd.f32 %v545, %v546
    %v958 = vadd.f32 %v547, %v548
    %v959 = vadd.f32 %v549, %v550
    %v960 = vadd.f32 %v551, %v552
    %v961 = vadd.f32 %v553, %v554
    %v962 = vadd.f32 %v555, %v556
    %v963 = vadd.f32 %v557, %v558
    %v964 = vadd.f32 %v559, %v560
    %v965 = vadd.f32 %v561, %v562
    %v966 = vadd.f32 %v563, %v564
    %v967 = vadd.f32 %v565, %v566
    %v968 = vadd.f32 %v567, %v568
    %v969 = vadd.f32 %v569, %v570
    %v970 = vadd.f32 %v571, %v572
    %v971 = vadd.f32 %v573, %v574
    %v972 = vadd.f32 %v575, %v576
    %v973 = vadd.f32 %v577, %v578
    %v974 = vadd.f32 %v579, %v580
    %v975 = vadd.f32 %v581, %v582
    %v976 = vadd.f32 %v583, %v584
    %v977 = vadd.f32 %v585, %v586
    %v978 = vadd.f32 %v587, %v588
    %v979 = vadd.f32 %v589, %v590
    %v980 = vadd.f32 %v591, %v592
    %v981 = vadd.f32 %v593, %v594
    %v982 = vadd.f32 %v595, %v596
    %v983 = vadd.f32 %v597, %v598
    %v984 = vadd.f32 %v599, %v600
    %v985 = vadd.f32 %v601, %v602
    %v986 = vadd.f32 %v603, %v604
    %v987 = vadd.f32 %v605, %v606
    %v988 = vadd.f32 %v607, %v608
    %v989 = vadd.f32 %v609, %v610
    %v990 = vadd.f32 %v611, %v612
    %v991 = vadd.f32 %v613, %v614
    %v992 = vadd.f32 %v615, %v616
    %v993 = vadd.f32 %v617, %v618
    %v994 = vadd.f32 %v619, %v620
    %v995 = vadd.f32 %v621, %v622
    %v996 = vadd.f32 %v623, %v624
    %v997 = vadd.f32 %v625, %v626
    %v998 = vadd.f32 %v627, %v628
    %v999 = vadd.f32 %v629, %v630
    %v1000 = vadd.f32 %v631, %v632
    %v1001 = vadd.f32 %v633, %v634
    %v1002 = vadd.f32 %v635, %v636
    %v1003 = vadd.f32 %v637, %v638
    %v1004 = vadd.f32 %v639, %v640
    %v1005 = vadd.f32 %v641, %v642
    %v1006 = vadd.f32 %v643, %v644
    %v1007 = vadd.f32 %v645, %v646
    %v1008 = vadd.f32 %v647, %v648
    %v1009 = vadd.f32 %v649, %v650
    %v1010 = vadd.f32 %v651, %v652
    %v1011 = vadd.f32 %v653, %v654
    %v1012 = vadd.f32 %v655, %v656
    %v1013 = vadd.f32 %v657, %v658
    %v1014 = vadd.f32 %v659, %v660
    %v1015 = vadd.f32 %v661, %v662
    %v1016 = vadd.f32 %v663, %v664
    %v1017 = vadd.f32 %v665, %v666
    %v1018 = vadd.f32 %v667, %v668
    %v1019 = vadd.f32 %v669, %v670
    %v1020 = vadd.f32 %v671, %v672
    %v1021 = vadd.f32 %v673, %v674
    %v1022 = vadd.f32 %v675, %v676
    %v1023 = vadd.f32 %v677, %v678
    %v1024 = vadd.f32 %v679, %v680
    %v1025 = vadd.f32 %v681, %v682
    %v1026 = vadd.f32 %v683, %v684
    %v1027 = vadd.f32 %v685, %v686
    %v1028 = vadd.f32 %v687, %v688
    %v1029 = vadd.f32 %v689, %v690
    %v1030 = vadd.f32 %v691, %v692
    %v1031 = vadd.f32 %v693, %v694
    %v1032 = vadd.f32 %v695, %v696
    %v1033 = vadd.f32 %v697, %v698
    %v1034 = vadd.f32 %v699, %v700
    %v1035 = vadd.f32 %v701, %v702
    %v1036 = vadd.f32 %v703, %v704
    %v1037 = vadd.f32 %v705, %v706
    %v1038 = vadd.f32 %v707, %v708
    %v1039 = vadd.f32 %v709, %v710
    %v1040 = vadd.f32 %v711, %v712
    %v1041 = vadd.f32 %v713, %v714
    %v1042 = vadd.f32 %v715, %v716
    %v1043 = vadd.f32 %v717, %v718
    %v1044 = vadd.f32 %v719, %v720
    %v1045 = vadd.f32 %v721, %v722
    %v1046 = vadd.f32 %v723, %v724
    %v1047 = vadd.f32 %v725, %v726
    %v1048 = vadd.f32 %v727, %v728
    %v1049 = vadd.f32 %v729, %v730
    %v1050 = vadd.f32 %v731, %v732
    %v1051 = vadd.f32 %v733, %v734
    %v1052 = vadd.f32 %v735, %v736
    %v1053 = vadd.f32 %v737, %v738
    %v1054 = vadd.f32 %v739, %v740
    %v1055 = vadd.f32 %v741, %v742
    %v1056 = vadd.f32 %v743, %v744
    %v1057 = vadd.f32 %v745, %v746
    %v1058 = vadd.f32 %v747, %v748
    %v1059 = vadd.f32 %v749, %v750
    %v1060 = vadd.f32 %v751, %v752
    %v1061 = vadd.f32 %v753, %v754
    %v1062 = vadd.f32 %v755, %v756
    %v1063 = vadd.f32 %v757, %v758
    %v1064 = vadd.f32 %v759, %v760
    %v1065 = vadd.f32 %v761, %v762
    %v1066 = vadd.f32 %v763, %v764
    %v1067 = vadd.f32 %v765, %v766
    %v1068 = vadd.f32 %v767, %v768
    %v1069 = vadd.f32 %v769, %v770
    %v1070 = vadd.f32 %v771, %v772
    %v1071 = vadd.f32 %v773, %v774
    %v1072 = vadd.f32 %v775, %v776
    %v1073 = vadd.f32 %v777, %v778
    %v1074 = vadd.f32 %v779, %v780
    %v1075 = vadd.f32 %v781, %v782
    %v1076 = vadd.f32 %v783, %v784
    %v1077 = vadd.f32 %v785, %v786
    %v1078 = vadd.f32 %v787, %v788
    %v1079 = vadd.f32 %v789, %v790
    %v1080 = vadd.f32 %v791, %v792
    %v1081 = vadd.f32 %v793, %v794
    %v1082 = vadd.f32 %v795, %v796
    %v1083 = vadd.f32 %v797, %v798
    %v1084 = vadd.f32 %v799, %v800
    %v1085 = vadd.f32 %v801, %v802
    %v1086 = vadd.f32 %v803, %v804
    %v1087 = vadd.f32 %v805, %v806
    %v1088 = vadd.f32 %v807, %v808
    %v1089 = vadd.f32 %v809, %v810
    %v1090 = vadd.f32 %v811, %v812
    %v1091 = vadd.f32 %v813, %v814
    %v1092 = vadd.f32 %v815, %v816
    %v1093 = vadd.f32 %v817, %v818
    %v1094 = vadd.f32 %v819, %v820
    %v1095 = vadd.f32 %v821, %v822
    %v1096 = vadd.f32 %v823, %v824
    %v1097 = vadd.f32 %v825, %v826
    %v1098 = vadd.f32 %v827, %v828
    %v1099 = vadd.f32 %v829, %v830
    %v1100 = vadd.f32 %v831, %v832
    %v1101 = vadd.f32 %v833, %v834
    %v1102 = vadd.f32 %v835, %v836
    %v1103 = vadd.f32 %v837, %v838
    %v1104 = vadd.f32 %v839, %v840
    %v1105 = vadd.f32 %v841, %v842
    %v1106 = vadd.f32 %v843, %v844
    %v1107 = vadd.f32 %v845, %v846
    %v1108 = vadd.f32 %v847, %v848
    %v1109 = vadd.f32 %v849, %v850
    %v1110 = vadd.f32 %v851, %v852
    %v1111 = vadd.f32 %v853, %v854
    %v1112 = vadd.f32 %v855, %v856
    %v1113 = vld [vmem:[#allocation2] sm:$0xff]
    %v1114 = vld [vmem:[#allocation2 + $0x8] sm:$0xff]
    %v1115 = vld [vmem:[#allocation2 + $0x10] sm:$0xff]
    %v1116 = vld [vmem:[#allocation2 + $0x18] sm:$0xff]
    %v1117 = vld [vmem:[#allocation2 + $0x20] sm:$0xff]
    %v1118 = vld [vmem:[#allocation2 + $0x28] sm:$0xff]
    %v1119 = vld [vmem:[#allocation2 + $0x30] sm:$0xff]
    %v1120 = vld [vmem:[#allocation2 + $0x38] sm:$0xff]
    %v1121 = vld [vmem:[#allocation2 + $0x40] sm:$0xff]
    %v1122 = vld [vmem:[#allocation2 + $0x48] sm:$0xff]
    %v1123 = vld [vmem:[#allocation2 + $0x50] sm:$0xff]
    %v1124 = vld [vmem:[#allocation2 + $0x58] sm:$0xff]
    %v1125 = vld [vmem:[#allocation2 + $0x60] sm:$0xff]
    %v1126 = vld [vmem:[#allocation2 + $0x68] sm:$0xff]
    %v1127 = vld [vmem:[#allocation2 + $0x70] sm:$0xff]
    %v1128 = vld [vmem:[#allocation2 + $0x78] sm:$0xff]
    %v1129 = vld [vmem:[#allocation2 + $0x80] sm:$0xff]
    %v1130 = vld [vmem:[#allocation2 + $0x88] sm:$0xff]
    %v1131 = vld [vmem:[#allocation2 + $0x90] sm:$0xff]
    %v1132 = vld [vmem:[#allocation2 + $0x98] sm:$0xff]
    %v1133 = vld [vmem:[#allocation2 + $0xa0] sm:$0xff]
    %v1134 = vld [vmem:[#allocation2 + $0xa8] sm:$0xff]
    %v1135 = vld [vmem:[#allocation2 + $0xb0] sm:$0xff]
    %v1136 = vld [vmem:[#allocation2 + $0xb8] sm:$0xff]
    %v1137 = vld [vmem:[#allocation2 + $0xc0] sm:$0xff]
    %v1138 = vld [vmem:[#allocation2 + $0xc8] sm:$0xff]
    %v1139 = vld [vmem:[#allocation2 + $0xd0] sm:$0xff]
    %v1140 = vld [vmem:[#allocation2 + $0xd8] sm:$0xff]
    %v1141 = vld [vmem:[#allocation2 + $0xe0] sm:$0xff]
    %v1142 = vld [vmem:[#allocation2 + $0xe8] sm:$0xff]
    %v1143 = vld [vmem:[#allocation2 + $0xf0] sm:$0xff]
    %v1144 = vld [vmem:[#allocation2 + $0xf8] sm:$0xff]
    %v1145 = vld [vmem:[#allocation2 + $0x100] sm:$0xff]
    %v1146 = vld [vmem:[#allocation2 + $0x108] sm:$0xff]
    %v1147 = vld [vmem:[#allocation2 + $0x110] sm:$0xff]
    %v1148 = vld [vmem:[#allocation2 + $0x118] sm:$0xff]
    %v1149 = vld [vmem:[#allocation2 + $0x120] sm:$0xff]
    %v1150 = vld [vmem:[#allocation2 + $0x128] sm:$0xff]
    %v1151 = vld [vmem:[#allocation2 + $0x130] sm:$0xff]
    %v1152 = vld [vmem:[#allocation2 + $0x138] sm:$0xff]
    %v1153 = vld [vmem:[#allocation2 + $0x140] sm:$0xff]
    %v1154 = vld [vmem:[#allocation2 + $0x148] sm:$0xff]
    %v1155 = vld [vmem:[#allocation2 + $0x150] sm:$0xff]
    %v1156 = vld [vmem:[#allocation2 + $0x158] sm:$0xff]
    %v1157 = vld [vmem:[#allocation2 + $0x160] sm:$0xff]
    %v1158 = vld [vmem:[#allocation2 + $0x168] sm:$0xff]
    %v1159 = vld [vmem:[#allocation2 + $0x170] sm:$0xff]
    %v1160 = vld [vmem:[#allocation2 + $0x178] sm:$0xff]
    %v1161 = vld [vmem:[#allocation2 + $0x180] sm:$0xff]
    %v1162 = vld [vmem:[#allocation2 + $0x188] sm:$0xff]
    %v1163 = vld [vmem:[#allocation2 + $0x190] sm:$0xff]
    %v1164 = vld [vmem:[#allocation2 + $0x198] sm:$0xff]
    %v1165 = vld [vmem:[#allocation2 + $0x1a0] sm:$0xff]
    %v1166 = vld [vmem:[#allocation2 + $0x1a8] sm:$0xff]
    %v1167 = vld [vmem:[#allocation2 + $0x1b0] sm:$0xff]
    %v1168 = vld [vmem:[#allocation2 + $0x1b8] sm:$0xff]
    %v1169 = vld [vmem:[#allocation2 + $0x1c0] sm:$0xff]
    %v1170 = vld [vmem:[#allocation2 + $0x1c8] sm:$0xff]
    %v1171 = vld [vmem:[#allocation2 + $0x1d0] sm:$0xff]
    %v1172 = vld [vmem:[#allocation2 + $0x1d8] sm:$0xff]
    %v1173 = vld [vmem:[#allocation2 + $0x1e0] sm:$0xff]
    %v1174 = vld [vmem:[#allocation2 + $0x1e8] sm:$0xff]
    %v1175 = vld [vmem:[#allocation2 + $0x1f0] sm:$0xff]
    %v1176 = vld [vmem:[#allocation2 + $0x1f8] sm:$0xff]
    %v1177 = vld [vmem:[#allocation2 + $0x200] sm:$0xff]
    %v1178 = vld [vmem:[#allocation2 + $0x208] sm:$0xff]
    %v1179 = vld [vmem:[#allocation2 + $0x210] sm:$0xff]
    %v1180 = vld [vmem:[#allocation2 + $0x218] sm:$0xff]
    %v1181 = vld [vmem:[#allocation2 + $0x220] sm:$0xff]
    %v1182 = vld [vmem:[#allocation2 + $0x228] sm:$0xff]
    %v1183 = vld [vmem:[#allocation2 + $0x230] sm:$0xff]
    %v1184 = vld [vmem:[#allocation2 + $0x238] sm:$0xff]
    %v1185 = vld [vmem:[#allocation2 + $0x240] sm:$0xff]
    %v1186 = vld [vmem:[#allocation2 + $0x248] sm:$0xff]
    %v1187 = vld [vmem:[#allocation2 + $0x250] sm:$0xff]
    %v1188 = vld [vmem:[#allocation2 + $0x258] sm:$0xff]
    %v1189 = vld [vmem:[#allocation2 + $0x260] sm:$0xff]
    %v1190 = vld [vmem:[#allocation2 + $0x268] sm:$0xff]
    %v1191 = vld [vmem:[#allocation2 + $0x270] sm:$0xff]
    %v1192 = vld [vmem:[#allocation2 + $0x278] sm:$0xff]
    %v1193 = vld [vmem:[#allocation2 + $0x280] sm:$0xff]
    %v1194 = vld [vmem:[#allocation2 + $0x288] sm:$0xff]
    %v1195 = vld [vmem:[#allocation2 + $0x290] sm:$0xff]
    %v1196 = vld [vmem:[#allocation2 + $0x298] sm:$0xff]
    %v1197 = vld [vmem:[#allocation2 + $0x2a0] sm:$0xff]
    %v1198 = vld [vmem:[#allocation2 + $0x2a8] sm:$0xff]
    %v1199 = vld [vmem:[#allocation2 + $0x2b0] sm:$0xff]
    %v1200 = vld [vmem:[#allocation2 + $0x2b8] sm:$0xff]
    %v1201 = vld [vmem:[#allocation2 + $0x2c0] sm:$0xff]
    %v1202 = vld [vmem:[#allocation2 + $0x2c8] sm:$0xff]
    %v1203 = vld [vmem:[#allocation2 + $0x2d0] sm:$0xff]
    %v1204 = vld [vmem:[#allocation2 + $0x2d8] sm:$0xff]
    %v1205 = vld [vmem:[#allocation2 + $0x2e0] sm:$0xff]
    %v1206 = vld [vmem:[#allocation2 + $0x2e8] sm:$0xff]
    %v1207 = vld [vmem:[#allocation2 + $0x2f0] sm:$0xff]
    %v1208 = vld [vmem:[#allocation2 + $0x2f8] sm:$0xff]
    %v1209 = vld [vmem:[#allocation2 + $0x300] sm:$0xff]
    %v1210 = vld [vmem:[#allocation2 + $0x308] sm:$0xff]
    %v1211 = vld [vmem:[#allocation2 + $0x310] sm:$0xff]
    %v1212 = vld [vmem:[#allocation2 + $0x318] sm:$0xff]
    %v1213 = vld [vmem:[#allocation2 + $0x320] sm:$0xff]
    %v1214 = vld [vmem:[#allocation2 + $0x328] sm:$0xff]
    %v1215 = vld [vmem:[#allocation2 + $0x330] sm:$0xff]
    %v1216 = vld [vmem:[#allocation2 + $0x338] sm:$0xff]
    %v1217 = vld [vmem:[#allocation2 + $0x340] sm:$0xff]
    %v1218 = vld [vmem:[#allocation2 + $0x348] sm:$0xff]
    %v1219 = vld [vmem:[#allocation2 + $0x350] sm:$0xff]
    %v1220 = vld [vmem:[#allocation2 + $0x358] sm:$0xff]
    %v1221 = vld [vmem:[#allocation2 + $0x360] sm:$0xff]
    %v1222 = vld [vmem:[#allocation2 + $0x368] sm:$0xff]
    %v1223 = vld [vmem:[#allocation2 + $0x370] sm:$0xff]
    %v1224 = vld [vmem:[#allocation2 + $0x378] sm:$0xff]
    %v1225 = vld [vmem:[#allocation2 + $0x380] sm:$0xff]
    %v1226 = vld [vmem:[#allocation2 + $0x388] sm:$0xff]
    %v1227 = vld [vmem:[#allocation2 + $0x390] sm:$0xff]
    %v1228 = vld [vmem:[#allocation2 + $0x398] sm:$0xff]
    %v1229 = vld [vmem:[#allocation2 + $0x3a0] sm:$0xff]
    %v1230 = vld [vmem:[#allocation2 + $0x3a8] sm:$0xff]
    %v1231 = vld [vmem:[#allocation2 + $0x3b0] sm:$0xff]
    %v1232 = vld [vmem:[#allocation2 + $0x3b8] sm:$0xff]
    %v1233 = vld [vmem:[#allocation2 + $0x3c0] sm:$0xff]
    %v1234 = vld [vmem:[#allocation2 + $0x3c8] sm:$0xff]
    %v1235 = vld [vmem:[#allocation2 + $0x3d0] sm:$0xff]
    %v1236 = vld [vmem:[#allocation2 + $0x3d8] sm:$0xff]
    %v1237 = vld [vmem:[#allocation2 + $0x3e0] sm:$0xff]
    %v1238 = vld [vmem:[#allocation2 + $0x3e8] sm:$0xff]
    %v1239 = vld [vmem:[#allocation2 + $0x3f0] sm:$0xff]
    %v1240 = vld [vmem:[#allocation2 + $0x3f8] sm:$0xff]
    %v1241 = vld [vmem:[#allocation2 + $0x400] sm:$0xff]
    %v1242 = vld [vmem:[#allocation2 + $0x408] sm:$0xff]
    %v1243 = vld [vmem:[#allocation2 + $0x410] sm:$0xff]
    %v1244 = vld [vmem:[#allocation2 + $0x418] sm:$0xff]
    %v1245 = vld [vmem:[#allocation2 + $0x420] sm:$0xff]
    %v1246 = vld [vmem:[#allocation2 + $0x428] sm:$0xff]
    %v1247 = vld [vmem:[#allocation2 + $0x430] sm:$0xff]
    %v1248 = vld [vmem:[#allocation2 + $0x438] sm:$0xff]
    %v1249 = vld [vmem:[#allocation2 + $0x440] sm:$0xff]
    %v1250 = vld [vmem:[#allocation2 + $0x448] sm:$0xff]
    %v1251 = vld [vmem:[#allocation2 + $0x450] sm:$0xff]
    %v1252 = vld [vmem:[#allocation2 + $0x458] sm:$0xff]
    %v1253 = vld [vmem:[#allocation2 + $0x460] sm:$0xff]
    %v1254 = vld [vmem:[#allocation2 + $0x468] sm:$0xff]
    %v1255 = vld [vmem:[#allocation2 + $0x470] sm:$0xff]
    %v1256 = vld [vmem:[#allocation2 + $0x478] sm:$0xff]
    %v1257 = vld [vmem:[#allocation2 + $0x480] sm:$0xff]
    %v1258 = vld [vmem:[#allocation2 + $0x488] sm:$0xff]
    %v1259 = vld [vmem:[#allocation2 + $0x490] sm:$0xff]
    %v1260 = vld [vmem:[#allocation2 + $0x498] sm:$0xff]
    %v1261 = vld [vmem:[#allocation2 + $0x4a0] sm:$0xff]
    %v1262 = vld [vmem:[#allocation2 + $0x4a8] sm:$0xff]
    %v1263 = vld [vmem:[#allocation2 + $0x4b0] sm:$0xff]
    %v1264 = vld [vmem:[#allocation2 + $0x4b8] sm:$0xff]
    %v1265 = vld [vmem:[#allocation2 + $0x4c0] sm:$0xff]
    %v1266 = vld [vmem:[#allocation2 + $0x4c8] sm:$0xff]
    %v1267 = vld [vmem:[#allocation2 + $0x4d0] sm:$0xff]
    %v1268 = vld [vmem:[#allocation2 + $0x4d8] sm:$0xff]
    %v1269 = vld [vmem:[#allocation2 + $0x4e0] sm:$0xff]
    %v1270 = vld [vmem:[#allocation2 + $0x4e8] sm:$0xff]
    %v1271 = vld [vmem:[#allocation2 + $0x4f0] sm:$0xff]
    %v1272 = vld [vmem:[#allocation2 + $0x4f8] sm:$0xff]
    %v1273 = vld [vmem:[#allocation2 + $0x500] sm:$0xff]
    %v1274 = vld [vmem:[#allocation2 + $0x508] sm:$0xff]
    %v1275 = vld [vmem:[#allocation2 + $0x510] sm:$0xff]
    %v1276 = vld [vmem:[#allocation2 + $0x518] sm:$0xff]
    %v1277 = vld [vmem:[#allocation2 + $0x520] sm:$0xff]
    %v1278 = vld [vmem:[#allocation2 + $0x528] sm:$0xff]
    %v1279 = vld [vmem:[#allocation2 + $0x530] sm:$0xff]
    %v1280 = vld [vmem:[#allocation2 + $0x538] sm:$0xff]
    %v1281 = vld [vmem:[#allocation2 + $0x540] sm:$0xff]
    %v1282 = vld [vmem:[#allocation2 + $0x548] sm:$0xff]
    %v1283 = vld [vmem:[#allocation2 + $0x550] sm:$0xff]
    %v1284 = vld [vmem:[#allocation2 + $0x558] sm:$0xff]
    %v1285 = vld [vmem:[#allocation2 + $0x560] sm:$0xff]
    %v1286 = vld [vmem:[#allocation2 + $0x568] sm:$0xff]
    %v1287 = vld [vmem:[#allocation2 + $0x570] sm:$0xff]
    %v1288 = vld [vmem:[#allocation2 + $0x578] sm:$0xff]
    %v1289 = vld [vmem:[#allocation2 + $0x580] sm:$0xff]
    %v1290 = vld [vmem:[#allocation2 + $0x588] sm:$0xff]
    %v1291 = vld [vmem:[#allocation2 + $0x590] sm:$0xff]
    %v1292 = vld [vmem:[#allocation2 + $0x598] sm:$0xff]
    %v1293 = vld [vmem:[#allocation2 + $0x5a0] sm:$0xff]
    %v1294 = vld [vmem:[#allocation2 + $0x5a8] sm:$0xff]
    %v1295 = vld [vmem:[#allocation2 + $0x5b0] sm:$0xff]
    %v1296 = vld [vmem:[#allocation2 + $0x5b8] sm:$0xff]
    %v1297 = vld [vmem:[#allocation2 + $0x5c0] sm:$0xff]
    %v1298 = vld [vmem:[#allocation2 + $0x5c8] sm:$0xff]
    %v1299 = vld [vmem:[#allocation2 + $0x5d0] sm:$0xff]
    %v1300 = vld [vmem:[#allocation2 + $0x5d8] sm:$0xff]
    %v1301 = vld [vmem:[#allocation2 + $0x5e0] sm:$0xff]
    %v1302 = vld [vmem:[#allocation2 + $0x5e8] sm:$0xff]
    %v1303 = vld [vmem:[#allocation2 + $0x5f0] sm:$0xff]
    %v1304 = vld [vmem:[#allocation2 + $0x5f8] sm:$0xff]
    %v1305 = vld [vmem:[#allocation2 + $0x600] sm:$0xff]
    %v1306 = vld [vmem:[#allocation2 + $0x608] sm:$0xff]
    %v1307 = vld [vmem:[#allocation2 + $0x610] sm:$0xff]
    %v1308 = vld [vmem:[#allocation2 + $0x618] sm:$0xff]
    %v1309 = vld [vmem:[#allocation2 + $0x620] sm:$0xff]
    %v1310 = vld [vmem:[#allocation2 + $0x628] sm:$0xff]
    %v1311 = vld [vmem:[#allocation2 + $0x630] sm:$0xff]
    %v1312 = vld [vmem:[#allocation2 + $0x638] sm:$0xff]
    %v1313 = vld [vmem:[#allocation2 + $0x640] sm:$0xff]
    %v1314 = vld [vmem:[#allocation2 + $0x648] sm:$0xff]
    %v1315 = vld [vmem:[#allocation2 + $0x650] sm:$0xff]
    %v1316 = vld [vmem:[#allocation2 + $0x658] sm:$0xff]
    %v1317 = vld [vmem:[#allocation2 + $0x660] sm:$0xff]
    %v1318 = vld [vmem:[#allocation2 + $0x668] sm:$0xff]
    %v1319 = vld [vmem:[#allocation2 + $0x670] sm:$0xff]
    %v1320 = vld [vmem:[#allocation2 + $0x678] sm:$0xff]
    %v1321 = vld [vmem:[#allocation2 + $0x680] sm:$0xff]
    %v1322 = vld [vmem:[#allocation2 + $0x688] sm:$0xff]
    %v1323 = vld [vmem:[#allocation2 + $0x690] sm:$0xff]
    %v1324 = vld [vmem:[#allocation2 + $0x698] sm:$0xff]
    %v1325 = vld [vmem:[#allocation2 + $0x6a0] sm:$0xff]
    %v1326 = vld [vmem:[#allocation2 + $0x6a8] sm:$0xff]
    %v1327 = vld [vmem:[#allocation2 + $0x6b0] sm:$0xff]
    %v1328 = vld [vmem:[#allocation2 + $0x6b8] sm:$0xff]
    %v1329 = vld [vmem:[#allocation2 + $0x6c0] sm:$0xff]
    %v1330 = vld [vmem:[#allocation2 + $0x6c8] sm:$0xff]
    %v1331 = vld [vmem:[#allocation2 + $0x6d0] sm:$0xff]
    %v1332 = vld [vmem:[#allocation2 + $0x6d8] sm:$0xff]
    %v1333 = vld [vmem:[#allocation2 + $0x6e0] sm:$0xff]
    %v1334 = vld [vmem:[#allocation2 + $0x6e8] sm:$0xff]
    %v1335 = vld [vmem:[#allocation2 + $0x6f0] sm:$0xff]
    %v1336 = vld [vmem:[#allocation2 + $0x6f8] sm:$0xff]
    %v1337 = vld [vmem:[#allocation2 + $0x700] sm:$0xff]
    %v1338 = vld [vmem:[#allocation2 + $0x708] sm:$0xff]
    %v1339 = vld [vmem:[#allocation2 + $0x710] sm:$0xff]
    %v1340 = vld [vmem:[#allocation2 + $0x718] sm:$0xff]
    %v1341 = vld [vmem:[#allocation2 + $0x720] sm:$0xff]
    %v1342 = vld [vmem:[#allocation2 + $0x728] sm:$0xff]
    %v1343 = vld [vmem:[#allocation2 + $0x730] sm:$0xff]
    %v1344 = vld [vmem:[#allocation2 + $0x738] sm:$0xff]
    %v1345 = vld [vmem:[#allocation2 + $0x740] sm:$0xff]
    %v1346 = vld [vmem:[#allocation2 + $0x748] sm:$0xff]
    %v1347 = vld [vmem:[#allocation2 + $0x750] sm:$0xff]
    %v1348 = vld [vmem:[#allocation2 + $0x758] sm:$0xff]
    %v1349 = vld [vmem:[#allocation2 + $0x760] sm:$0xff]
    %v1350 = vld [vmem:[#allocation2 + $0x768] sm:$0xff]
    %v1351 = vld [vmem:[#allocation2 + $0x770] sm:$0xff]
    %v1352 = vld [vmem:[#allocation2 + $0x778] sm:$0xff]
    %v1353 = vld [vmem:[#allocation2 + $0x780] sm:$0xff]
    %v1354 = vld [vmem:[#allocation2 + $0x788] sm:$0xff]
    %v1355 = vld [vmem:[#allocation2 + $0x790] sm:$0xff]
    %v1356 = vld [vmem:[#allocation2 + $0x798] sm:$0xff]
    %v1357 = vld [vmem:[#allocation2 + $0x7a0] sm:$0xff]
    %v1358 = vld [vmem:[#allocation2 + $0x7a8] sm:$0xff]
    %v1359 = vld [vmem:[#allocation2 + $0x7b0] sm:$0xff]
    %v1360 = vld [vmem:[#allocation2 + $0x7b8] sm:$0xff]
    %v1361 = vld [vmem:[#allocation2 + $0x7c0] sm:$0xff]
    %v1362 = vld [vmem:[#allocation2 + $0x7c8] sm:$0xff]
    %v1363 = vld [vmem:[#allocation2 + $0x7d0] sm:$0xff]
    %v1364 = vld [vmem:[#allocation2 + $0x7d8] sm:$0xff]
    %v1365 = vld [vmem:[#allocation2 + $0x7e0] sm:$0xff]
    %v1366 = vld [vmem:[#allocation2 + $0x7e8] sm:$0xff]
    %v1367 = vld [vmem:[#allocation2 + $0x7f0] sm:$0xff]
    %v1368 = vld [vmem:[#allocation2 + $0x7f8] sm:$0xff]
    %v1369 = vadd.f32 %v1113, %v857
    %v1370 = vadd.f32 %v1114, %v858
    %v1371 = vadd.f32 %v1115, %v859
    %v1372 = vadd.f32 %v1116, %v860
    %v1373 = vadd.f32 %v1117, %v861
    %v1374 = vadd.f32 %v1118, %v862
    %v1375 = vadd.f32 %v1119, %v863
    %v1376 = vadd.f32 %v1120, %v864
    %v1377 = vadd.f32 %v1121, %v865
    %v1378 = vadd.f32 %v1122, %v866
    %v1379 = vadd.f32 %v1123, %v867
    %v1380 = vadd.f32 %v1124, %v868
    %v1381 = vadd.f32 %v1125, %v869
    %v1382 = vadd.f32 %v1126, %v870
    %v1383 = vadd.f32 %v1127, %v871
    %v1384 = vadd.f32 %v1128, %v872
    %v1385 = vadd.f32 %v1129, %v873
    %v1386 = vadd.f32 %v1130, %v874
    %v1387 = vadd.f32 %v1131, %v875
    %v1388 = vadd.f32 %v1132, %v876
    %v1389 = vadd.f32 %v1133, %v877
    %v1390 = vadd.f32 %v1134, %v878
    %v1391 = vadd.f32 %v1135, %v879
    %v1392 = vadd.f32 %v1136, %v880
    %v1393 = vadd.f32 %v1137, %v881
    %v1394 = vadd.f32 %v1138, %v882
    %v1395 = vadd.f32 %v1139, %v883
    %v1396 = vadd.f32 %v1140, %v884
    %v1397 = vadd.f32 %v1141, %v885
    %v1398 = vadd.f32 %v1142, %v886
    %v1399 = vadd.f32 %v1143, %v887
    %v1400 = vadd.f32 %v1144, %v888
    %v1401 = vadd.f32 %v1145, %v889
    %v1402 = vadd.f32 %v1146, %v890
    %v1403 = vadd.f32 %v1147, %v891
    %v1404 = vadd.f32 %v1148, %v892
    %v1405 = vadd.f32 %v1149, %v893
    %v1406 = vadd.f32 %v1150, %v894
    %v1407 = vadd.f32 %v1151, %v895
    %v1408 = vadd.f32 %v1152, %v896
    %v1409 = vadd.f32 %v1153, %v897
    %v1410 = vadd.f32 %v1154, %v898
    %v1411 = vadd.f32 %v1155, %v899
    %v1412 = vadd.f32 %v1156, %v900
    %v1413 = vadd.f32 %v1157, %v901
    %v1414 = vadd.f32 %v1158, %v902
    %v1415 = vadd.f32 %v1159, %v903
    %v1416 = vadd.f32 %v1160, %v904
    %v1417 = vadd.f32 %v1161, %v905
    %v1418 = vadd.f32 %v1162, %v906
    %v1419 = vadd.f32 %v1163, %v907
    %v1420 = vadd.f32 %v1164, %v908
    %v1421 = vadd.f32 %v1165, %v909
    %v1422 = vadd.f32 %v1166, %v910
    %v1423 = vadd.f32 %v1167, %v911
    %v1424 = vadd.f32 %v1168, %v912
    %v1425 = vadd.f32 %v1169, %v913
    %v1426 = vadd.f32 %v1170, %v914
    %v1427 = vadd.f32 %v1171, %v915
    %v1428 = vadd.f32 %v1172, %v916
    %v1429 = vadd.f32 %v1173, %v917
    %v1430 = vadd.f32 %v1174, %v918
    %v1431 = vadd.f32 %v1175, %v919
    %v1432 = vadd.f32 %v1176, %v920
    %v1433 = vadd.f32 %v1177, %v921
    %v1434 = vadd.f32 %v1178, %v922
    %v1435 = vadd.f32 %v1179, %v923
    %v1436 = vadd.f32 %v1180, %v924
    %v1437 = vadd.f32 %v1181, %v925
    %v1438 = vadd.f32 %v1182, %v926
    %v1439 = vadd.f32 %v1183, %v927
    %v1440 = vadd.f32 %v1184, %v928
    %v1441 = vadd.f32 %v1185, %v929
    %v1442 = vadd.f32 %v1186, %v930
    %v1443 = vadd.f32 %v1187, %v931
    %v1444 = vadd.f32 %v1188, %v932
    %v1445 = vadd.f32 %v1189, %v933
    %v1446 = vadd.f32 %v1190, %v934
    %v1447 = vadd.f32 %v1191, %v935
    %v1448 = vadd.f32 %v1192, %v936
    %v1449 = vadd.f32 %v1193, %v937
    %v1450 = vadd.f32 %v1194, %v938
    %v1451 = vadd.f32 %v1195, %v939
    %v1452 = vadd.f32 %v1196, %v940
    %v1453 = vadd.f32 %v1197, %v941
    %v1454 = vadd.f32 %v1198, %v942
    %v1455 = vadd.f32 %v1199, %v943
    %v1456 = vadd.f32 %v1200, %v944
    %v1457 = vadd.f32 %v1201, %v945
    %v1458 = vadd.f32 %v1202, %v946
    %v1459 = vadd.f32 %v1203, %v947
    %v1460 = vadd.f32 %v1204, %v948
    %v1461 = vadd.f32 %v1205, %v949
    %v1462 = vadd.f32 %v1206, %v950
    %v1463 = vadd.f32 %v1207, %v951
    %v1464 = vadd.f32 %v1208, %v952
    %v1465 = vadd.f32 %v1209, %v953
    %v1466 = vadd.f32 %v1210, %v954
    %v1467 = vadd.f32 %v1211, %v955
    %v1468 = vadd.f32 %v1212, %v956
    %v1469 = vadd.f32 %v1213, %v957
    %v1470 = vadd.f32 %v1214, %v958
    %v1471 = vadd.f32 %v1215, %v959
    %v1472 = vadd.f32 %v1216, %v960
    %v1473 = vadd.f32 %v1217, %v961
    %v1474 = vadd.f32 %v1218, %v962
    %v1475 = vadd.f32 %v1219, %v963
    %v1476 = vadd.f32 %v1220, %v964
    %v1477 = vadd.f32 %v1221, %v965
    %v1478 = vadd.f32 %v1222, %v966
    %v1479 = vadd.f32 %v1223, %v967
    %v1480 = vadd.f32 %v1224, %v968
    %v1481 = vadd.f32 %v1225, %v969
    %v1482 = vadd.f32 %v1226, %v970
    %v1483 = vadd.f32 %v1227, %v971
    %v1484 = vadd.f32 %v1228, %v972
    %v1485 = vadd.f32 %v1229, %v973
    %v1486 = vadd.f32 %v1230, %v974
    %v1487 = vadd.f32 %v1231, %v975
    %v1488 = vadd.f32 %v1232, %v976
    %v1489 = vadd.f32 %v1233, %v977
    %v1490 = vadd.f32 %v1234, %v978
    %v1491 = vadd.f32 %v1235, %v979
    %v1492 = vadd.f32 %v1236, %v980
    %v1493 = vadd.f32 %v1237, %v981
    %v1494 = vadd.f32 %v1238, %v982
    %v1495 = vadd.f32 %v1239, %v983
    %v1496 = vadd.f32 %v1240, %v984
    %v1497 = vadd.f32 %v1241, %v985
    %v1498 = vadd.f32 %v1242, %v986
    %v1499 = vadd.f32 %v1243, %v987
    %v1500 = vadd.f32 %v1244, %v988
    %v1501 = vadd.f32 %v1245, %v989
    %v1502 = vadd.f32 %v1246, %v990
    %v1503 = vadd.f32 %v1247, %v991
    %v1504 = vadd.f32 %v1248, %v992
    %v1505 = vadd.f32 %v1249, %v993
    %v1506 = vadd.f32 %v1250, %v994
    %v1507 = vadd.f32 %v1251, %v995
    %v1508 = vadd.f32 %v1252, %v996
    %v1509 = vadd.f32 %v1253, %v997
    %v1510 = vadd.f32 %v1254, %v998
    %v1511 = vadd.f32 %v1255, %v999
    %v1512 = vadd.f32 %v1256, %v1000
    %v1513 = vadd.f32 %v1257, %v1001
    %v1514 = vadd.f32 %v1258, %v1002
    %v1515 = vadd.f32 %v1259, %v1003
    %v1516 = vadd.f32 %v1260, %v1004
    %v1517 = vadd.f32 %v1261, %v1005
    %v1518 = vadd.f32 %v1262, %v1006
    %v1519 = vadd.f32 %v1263, %v1007
    %v1520 = vadd.f32 %v1264, %v1008
    %v1521 = vadd.f32 %v1265, %v1009
    %v1522 = vadd.f32 %v1266, %v1010
    %v1523 = vadd.f32 %v1267, %v1011
    %v1524 = vadd.f32 %v1268, %v1012
    %v1525 = vadd.f32 %v1269, %v1013
    %v1526 = vadd.f32 %v1270, %v1014
    %v1527 = vadd.f32 %v1271, %v1015
    %v1528 = vadd.f32 %v1272, %v1016
    %v1529 = vadd.f32 %v1273, %v1017
    %v1530 = vadd.f32 %v1274, %v1018
    %v1531 = vadd.f32 %v1275, %v1019
    %v1532 = vadd.f32 %v1276, %v1020
    %v1533 = vadd.f32 %v1277, %v1021
    %v1534 = vadd.f32 %v1278, %v1022
    %v1535 = vadd.f32 %v1279, %v1023
    %v1536 = vadd.f32 %v1280, %v1024
    %v1537 = vadd.f32 %v1281, %v1025
    %v1538 = vadd.f32 %v1282, %v1026
    %v1539 = vadd.f32 %v1283, %v1027
    %v1540 = vadd.f32 %v1284, %v1028
    %v1541 = vadd.f32 %v1285, %v1029
    %v1542 = vadd.f32 %v1286, %v1030
    %v1543 = vadd.f32 %v1287, %v1031
    %v1544 = vadd.f32 %v1288, %v1032
    %v1545 = vadd.f32 %v1289, %v1033
    %v1546 = vadd.f32 %v1290, %v1034
    %v1547 = vadd.f32 %v1291, %v1035
    %v1548 = vadd.f32 %v1292, %v1036
    %v1549 = vadd.f32 %v1293, %v1037
    %v1550 = vadd.f32 %v1294, %v1038
    %v1551 = vadd.f32 %v1295, %v1039
    %v1552 = vadd.f32 %v1296, %v1040
    %v1553 = vadd.f32 %v1297, %v1041
    %v1554 = vadd.f32 %v1298, %v1042
    %v1555 = vadd.f32 %v1299, %v1043
    %v1556 = vadd.f32 %v1300, %v1044
    %v1557 = vadd.f32 %v1301, %v1045
    %v1558 = vadd.f32 %v1302, %v1046
    %v1559 = vadd.f32 %v1303, %v1047
    %v1560 = vadd.f32 %v1304, %v1048
    %v1561 = vadd.f32 %v1305, %v1049
    %v1562 = vadd.f32 %v1306, %v1050
    %v1563 = vadd.f32 %v1307, %v1051
    %v1564 = vadd.f32 %v1308, %v1052
    %v1565 = vadd.f32 %v1309, %v1053
    %v1566 = vadd.f32 %v1310, %v1054
    %v1567 = vadd.f32 %v1311, %v1055
    %v1568 = vadd.f32 %v1312, %v1056
    %v1569 = vadd.f32 %v1313, %v1057
    %v1570 = vadd.f32 %v1314, %v1058
    %v1571 = vadd.f32 %v1315, %v1059
    %v1572 = vadd.f32 %v1316, %v1060
    %v1573 = vadd.f32 %v1317, %v1061
    %v1574 = vadd.f32 %v1318, %v1062
    %v1575 = vadd.f32 %v1319, %v1063
    %v1576 = vadd.f32 %v1320, %v1064
    %v1577 = vadd.f32 %v1321, %v1065
    %v1578 = vadd.f32 %v1322, %v1066
    %v1579 = vadd.f32 %v1323, %v1067
    %v1580 = vadd.f32 %v1324, %v1068
    %v1581 = vadd.f32 %v1325, %v1069
    %v1582 = vadd.f32 %v1326, %v1070
    %v1583 = vadd.f32 %v1327, %v1071
    %v1584 = vadd.f32 %v1328, %v1072
    %v1585 = vadd.f32 %v1329, %v1073
    %v1586 = vadd.f32 %v1330, %v1074
    %v1587 = vadd.f32 %v1331, %v1075
    %v1588 = vadd.f32 %v1332, %v1076
    %v1589 = vadd.f32 %v1333, %v1077
    %v1590 = vadd.f32 %v1334, %v1078
    %v1591 = vadd.f32 %v1335, %v1079
    %v1592 = vadd.f32 %v1336, %v1080
    %v1593 = vadd.f32 %v1337, %v1081
    %v1594 = vadd.f32 %v1338, %v1082
    %v1595 = vadd.f32 %v1339, %v1083
    %v1596 = vadd.f32 %v1340, %v1084
    %v1597 = vadd.f32 %v1341, %v1085
    %v1598 = vadd.f32 %v1342, %v1086
    %v1599 = vadd.f32 %v1343, %v1087
    %v1600 = vadd.f32 %v1344, %v1088
    %v1601 = vadd.f32 %v1345, %v1089
    %v1602 = vadd.f32 %v1346, %v1090
    %v1603 = vadd.f32 %v1347, %v1091
    %v1604 = vadd.f32 %v1348, %v1092
    %v1605 = vadd.f32 %v1349, %v1093
    %v1606 = vadd.f32 %v1350, %v1094
    %v1607 = vadd.f32 %v1351, %v1095
    %v1608 = vadd.f32 %v1352, %v1096
    %v1609 = vadd.f32 %v1353, %v1097
    %v1610 = vadd.f32 %v1354, %v1098
    %v1611 = vadd.f32 %v1355, %v1099
    %v1612 = vadd.f32 %v1356, %v1100
    %v1613 = vadd.f32 %v1357, %v1101
    %v1614 = vadd.f32 %v1358, %v1102
    %v1615 = vadd.f32 %v1359, %v1103
    %v1616 = vadd.f32 %v1360, %v1104
    %v1617 = vadd.f32 %v1361, %v1105
    %v1618 = vadd.f32 %v1362, %v1106
    %v1619 = vadd.f32 %v1363, %v1107
    %v1620 = vadd.f32 %v1364, %v1108
    %v1621 = vadd.f32 %v1365, %v1109
    %v1622 = vadd.f32 %v1366, %v1110
    %v1623 = vadd.f32 %v1367, %v1111
    %v1624 = vadd.f32 %v1368, %v1112
    %1625 = vst [vmem:[#allocation2] sm:$0xff] %v1369
    %1626 = vst [vmem:[#allocation2 + $0x8] sm:$0xff] %v1370
    %1627 = vst [vmem:[#allocation2 + $0x10] sm:$0xff] %v1371
    %1628 = vst [vmem:[#allocation2 + $0x18] sm:$0xff] %v1372
    %1629 = vst [vmem:[#allocation2 + $0x20] sm:$0xff] %v1373
    %1630 = vst [vmem:[#allocation2 + $0x28] sm:$0xff] %v1374
    %1631 = vst [vmem:[#allocation2 + $0x30] sm:$0xff] %v1375
    %1632 = vst [vmem:[#allocation2 + $0x38] sm:$0xff] %v1376
    %1633 = vst [vmem:[#allocation2 + $0x40] sm:$0xff] %v1377
    %1634 = vst [vmem:[#allocation2 + $0x48] sm:$0xff] %v1378
    %1635 = vst [vmem:[#allocation2 + $0x50] sm:$0xff] %v1379
    %1636 = vst [vmem:[#allocation2 + $0x58] sm:$0xff] %v1380
    %1637 = vst [vmem:[#allocation2 + $0x60] sm:$0xff] %v1381
    %1638 = vst [vmem:[#allocation2 + $0x68] sm:$0xff] %v1382
    %1639 = vst [vmem:[#allocation2 + $0x70] sm:$0xff] %v1383
    %1640 = vst [vmem:[#allocation2 + $0x78] sm:$0xff] %v1384
    %1641 = vst [vmem:[#allocation2 + $0x80] sm:$0xff] %v1385
    %1642 = vst [vmem:[#allocation2 + $0x88] sm:$0xff] %v1386
    %1643 = vst [vmem:[#allocation2 + $0x90] sm:$0xff] %v1387
    %1644 = vst [vmem:[#allocation2 + $0x98] sm:$0xff] %v1388
    %1645 = vst [vmem:[#allocation2 + $0xa0] sm:$0xff] %v1389
    %1646 = vst [vmem:[#allocation2 + $0xa8] sm:$0xff] %v1390
    %1647 = vst [vmem:[#allocation2 + $0xb0] sm:$0xff] %v1391
    %1648 = vst [vmem:[#allocation2 + $0xb8] sm:$0xff] %v1392
    %1649 = vst [vmem:[#allocation2 + $0xc0] sm:$0xff] %v1393
    %1650 = vst [vmem:[#allocation2 + $0xc8] sm:$0xff] %v1394
    %1651 = vst [vmem:[#allocation2 + $0xd0] sm:$0xff] %v1395
    %1652 = vst [vmem:[#allocation2 + $0xd8] sm:$0xff] %v1396
    %1653 = vst [vmem:[#allocation2 + $0xe0] sm:$0xff] %v1397
    %1654 = vst [vmem:[#allocation2 + $0xe8] sm:$0xff] %v1398
    %1655 = vst [vmem:[#allocation2 + $0xf0] sm:$0xff] %v1399
    %1656 = vst [vmem:[#allocation2 + $0xf8] sm:$0xff] %v1400
    %1657 = vst [vmem:[#allocation2 + $0x100] sm:$0xff] %v1401
    %1658 = vst [vmem:[#allocation2 + $0x108] sm:$0xff] %v1402
    %1659 = vst [vmem:[#allocation2 + $0x110] sm:$0xff] %v1403
    %1660 = vst [vmem:[#allocation2 + $0x118] sm:$0xff] %v1404
    %1661 = vst [vmem:[#allocation2 + $0x120] sm:$0xff] %v1405
    %1662 = vst [vmem:[#allocation2 + $0x128] sm:$0xff] %v1406
    %1663 = vst [vmem:[#allocation2 + $0x130] sm:$0xff] %v1407
    %1664 = vst [vmem:[#allocation2 + $0x138] sm:$0xff] %v1408
    %1665 = vst [vmem:[#allocation2 + $0x140] sm:$0xff] %v1409
    %1666 = vst [vmem:[#allocation2 + $0x148] sm:$0xff] %v1410
    %1667 = vst [vmem:[#allocation2 + $0x150] sm:$0xff] %v1411
    %1668 = vst [vmem:[#allocation2 + $0x158] sm:$0xff] %v1412
    %1669 = vst [vmem:[#allocation2 + $0x160] sm:$0xff] %v1413
    %1670 = vst [vmem:[#allocation2 + $0x168] sm:$0xff] %v1414
    %1671 = vst [vmem:[#allocation2 + $0x170] sm:$0xff] %v1415
    %1672 = vst [vmem:[#allocation2 + $0x178] sm:$0xff] %v1416
    %1673 = vst [vmem:[#allocation2 + $0x180] sm:$0xff] %v1417
    %1674 = vst [vmem:[#allocation2 + $0x188] sm:$0xff] %v1418
    %1675 = vst [vmem:[#allocation2 + $0x190] sm:$0xff] %v1419
    %1676 = vst [vmem:[#allocation2 + $0x198] sm:$0xff] %v1420
    %1677 = vst [vmem:[#allocation2 + $0x1a0] sm:$0xff] %v1421
    %1678 = vst [vmem:[#allocation2 + $0x1a8] sm:$0xff] %v1422
    %1679 = vst [vmem:[#allocation2 + $0x1b0] sm:$0xff] %v1423
    %1680 = vst [vmem:[#allocation2 + $0x1b8] sm:$0xff] %v1424
    %1681 = vst [vmem:[#allocation2 + $0x1c0] sm:$0xff] %v1425
    %1682 = vst [vmem:[#allocation2 + $0x1c8] sm:$0xff] %v1426
    %1683 = vst [vmem:[#allocation2 + $0x1d0] sm:$0xff] %v1427
    %1684 = vst [vmem:[#allocation2 + $0x1d8] sm:$0xff] %v1428
    %1685 = vst [vmem:[#allocation2 + $0x1e0] sm:$0xff] %v1429
    %1686 = vst [vmem:[#allocation2 + $0x1e8] sm:$0xff] %v1430
    %1687 = vst [vmem:[#allocation2 + $0x1f0] sm:$0xff] %v1431
    %1688 = vst [vmem:[#allocation2 + $0x1f8] sm:$0xff] %v1432
    %1689 = vst [vmem:[#allocation2 + $0x200] sm:$0xff] %v1433
    %1690 = vst [vmem:[#allocation2 + $0x208] sm:$0xff] %v1434
    %1691 = vst [vmem:[#allocation2 + $0x210] sm:$0xff] %v1435
    %1692 = vst [vmem:[#allocation2 + $0x218] sm:$0xff] %v1436
    %1693 = vst [vmem:[#allocation2 + $0x220] sm:$0xff] %v1437
    %1694 = vst [vmem:[#allocation2 + $0x228] sm:$0xff] %v1438
    %1695 = vst [vmem:[#allocation2 + $0x230] sm:$0xff] %v1439
    %1696 = vst [vmem:[#allocation2 + $0x238] sm:$0xff] %v1440
    %1697 = vst [vmem:[#allocation2 + $0x240] sm:$0xff] %v1441
    %1698 = vst [vmem:[#allocation2 + $0x248] sm:$0xff] %v1442
    %1699 = vst [vmem:[#allocation2 + $0x250] sm:$0xff] %v1443
    %1700 = vst [vmem:[#allocation2 + $0x258] sm:$0xff] %v1444
    %1701 = vst [vmem:[#allocation2 + $0x260] sm:$0xff] %v1445
    %1702 = vst [vmem:[#allocation2 + $0x268] sm:$0xff] %v1446
    %1703 = vst [vmem:[#allocation2 + $0x270] sm:$0xff] %v1447
    %1704 = vst [vmem:[#allocation2 + $0x278] sm:$0xff] %v1448
    %1705 = vst [vmem:[#allocation2 + $0x280] sm:$0xff] %v1449
    %1706 = vst [vmem:[#allocation2 + $0x288] sm:$0xff] %v1450
    %1707 = vst [vmem:[#allocation2 + $0x290] sm:$0xff] %v1451
    %1708 = vst [vmem:[#allocation2 + $0x298] sm:$0xff] %v1452
    %1709 = vst [vmem:[#allocation2 + $0x2a0] sm:$0xff] %v1453
    %1710 = vst [vmem:[#allocation2 + $0x2a8] sm:$0xff] %v1454
    %1711 = vst [vmem:[#allocation2 + $0x2b0] sm:$0xff] %v1455
    %1712 = vst [vmem:[#allocation2 + $0x2b8] sm:$0xff] %v1456
    %1713 = vst [vmem:[#allocation2 + $0x2c0] sm:$0xff] %v1457
    %1714 = vst [vmem:[#allocation2 + $0x2c8] sm:$0xff] %v1458
    %1715 = vst [vmem:[#allocation2 + $0x2d0] sm:$0xff] %v1459
    %1716 = vst [vmem:[#allocation2 + $0x2d8] sm:$0xff] %v1460
    %1717 = vst [vmem:[#allocation2 + $0x2e0] sm:$0xff] %v1461
    %1718 = vst [vmem:[#allocation2 + $0x2e8] sm:$0xff] %v1462
    %1719 = vst [vmem:[#allocation2 + $0x2f0] sm:$0xff] %v1463
    %1720 = vst [vmem:[#allocation2 + $0x2f8] sm:$0xff] %v1464
    %1721 = vst [vmem:[#allocation2 + $0x300] sm:$0xff] %v1465
    %1722 = vst [vmem:[#allocation2 + $0x308] sm:$0xff] %v1466
    %1723 = vst [vmem:[#allocation2 + $0x310] sm:$0xff] %v1467
    %1724 = vst [vmem:[#allocation2 + $0x318] sm:$0xff] %v1468
    %1725 = vst [vmem:[#allocation2 + $0x320] sm:$0xff] %v1469
    %1726 = vst [vmem:[#allocation2 + $0x328] sm:$0xff] %v1470
    %1727 = vst [vmem:[#allocation2 + $0x330] sm:$0xff] %v1471
    %1728 = vst [vmem:[#allocation2 + $0x338] sm:$0xff] %v1472
    %1729 = vst [vmem:[#allocation2 + $0x340] sm:$0xff] %v1473
    %1730 = vst [vmem:[#allocation2 + $0x348] sm:$0xff] %v1474
    %1731 = vst [vmem:[#allocation2 + $0x350] sm:$0xff] %v1475
    %1732 = vst [vmem:[#allocation2 + $0x358] sm:$0xff] %v1476
    %1733 = vst [vmem:[#allocation2 + $0x360] sm:$0xff] %v1477
    %1734 = vst [vmem:[#allocation2 + $0x368] sm:$0xff] %v1478
    %1735 = vst [vmem:[#allocation2 + $0x370] sm:$0xff] %v1479
    %1736 = vst [vmem:[#allocation2 + $0x378] sm:$0xff] %v1480
    %1737 = vst [vmem:[#allocation2 + $0x380] sm:$0xff] %v1481
    %1738 = vst [vmem:[#allocation2 + $0x388] sm:$0xff] %v1482
    %1739 = vst [vmem:[#allocation2 + $0x390] sm:$0xff] %v1483
    %1740 = vst [vmem:[#allocation2 + $0x398] sm:$0xff] %v1484
    %1741 = vst [vmem:[#allocation2 + $0x3a0] sm:$0xff] %v1485
    %1742 = vst [vmem:[#allocation2 + $0x3a8] sm:$0xff] %v1486
    %1743 = vst [vmem:[#allocation2 + $0x3b0] sm:$0xff] %v1487
    %1744 = vst [vmem:[#allocation2 + $0x3b8] sm:$0xff] %v1488
    %1745 = vst [vmem:[#allocation2 + $0x3c0] sm:$0xff] %v1489
    %1746 = vst [vmem:[#allocation2 + $0x3c8] sm:$0xff] %v1490
    %1747 = vst [vmem:[#allocation2 + $0x3d0] sm:$0xff] %v1491
    %1748 = vst [vmem:[#allocation2 + $0x3d8] sm:$0xff] %v1492
    %1749 = vst [vmem:[#allocation2 + $0x3e0] sm:$0xff] %v1493
    %1750 = vst [vmem:[#allocation2 + $0x3e8] sm:$0xff] %v1494
    %1751 = vst [vmem:[#allocation2 + $0x3f0] sm:$0xff] %v1495
    %1752 = vst [vmem:[#allocation2 + $0x3f8] sm:$0xff] %v1496
    %1753 = vst [vmem:[#allocation2 + $0x400] sm:$0xff] %v1497
    %1754 = vst [vmem:[#allocation2 + $0x408] sm:$0xff] %v1498
    %1755 = vst [vmem:[#allocation2 + $0x410] sm:$0xff] %v1499
    %1756 = vst [vmem:[#allocation2 + $0x418] sm:$0xff] %v1500
    %1757 = vst [vmem:[#allocation2 + $0x420] sm:$0xff] %v1501
    %1758 = vst [vmem:[#allocation2 + $0x428] sm:$0xff] %v1502
    %1759 = vst [vmem:[#allocation2 + $0x430] sm:$0xff] %v1503
    %1760 = vst [vmem:[#allocation2 + $0x438] sm:$0xff] %v1504
    %1761 = vst [vmem:[#allocation2 + $0x440] sm:$0xff] %v1505
    %1762 = vst [vmem:[#allocation2 + $0x448] sm:$0xff] %v1506
    %1763 = vst [vmem:[#allocation2 + $0x450] sm:$0xff] %v1507
    %1764 = vst [vmem:[#allocation2 + $0x458] sm:$0xff] %v1508
    %1765 = vst [vmem:[#allocation2 + $0x460] sm:$0xff] %v1509
    %1766 = vst [vmem:[#allocation2 + $0x468] sm:$0xff] %v1510
    %1767 = vst [vmem:[#allocation2 + $0x470] sm:$0xff] %v1511
    %1768 = vst [vmem:[#allocation2 + $0x478] sm:$0xff] %v1512
    %1769 = vst [vmem:[#allocation2 + $0x480] sm:$0xff] %v1513
    %1770 = vst [vmem:[#allocation2 + $0x488] sm:$0xff] %v1514
    %1771 = vst [vmem:[#allocation2 + $0x490] sm:$0xff] %v1515
    %1772 = vst [vmem:[#allocation2 + $0x498] sm:$0xff] %v1516
    %1773 = vst [vmem:[#allocation2 + $0x4a0] sm:$0xff] %v1517
    %1774 = vst [vmem:[#allocation2 + $0x4a8] sm:$0xff] %v1518
    %1775 = vst [vmem:[#allocation2 + $0x4b0] sm:$0xff] %v1519
    %1776 = vst [vmem:[#allocation2 + $0x4b8] sm:$0xff] %v1520
    %1777 = vst [vmem:[#allocation2 + $0x4c0] sm:$0xff] %v1521
    %1778 = vst [vmem:[#allocation2 + $0x4c8] sm:$0xff] %v1522
    %1779 = vst [vmem:[#allocation2 + $0x4d0] sm:$0xff] %v1523
    %1780 = vst [vmem:[#allocation2 + $0x4d8] sm:$0xff] %v1524
    %1781 = vst [vmem:[#allocation2 + $0x4e0] sm:$0xff] %v1525
    %1782 = vst [vmem:[#allocation2 + $0x4e8] sm:$0xff] %v1526
    %1783 = vst [vmem:[#allocation2 + $0x4f0] sm:$0xff] %v1527
    %1784 = vst [vmem:[#allocation2 + $0x4f8] sm:$0xff] %v1528
    %1785 = vst [vmem:[#allocation2 + $0x500] sm:$0xff] %v1529
    %1786 = vst [vmem:[#allocation2 + $0x508] sm:$0xff] %v1530
    %1787 = vst [vmem:[#allocation2 + $0x510] sm:$0xff] %v1531
    %1788 = vst [vmem:[#allocation2 + $0x518] sm:$0xff] %v1532
    %1789 = vst [vmem:[#allocation2 + $0x520] sm:$0xff] %v1533
    %1790 = vst [vmem:[#allocation2 + $0x528] sm:$0xff] %v1534
    %1791 = vst [vmem:[#allocation2 + $0x530] sm:$0xff] %v1535
    %1792 = vst [vmem:[#allocation2 + $0x538] sm:$0xff] %v1536
    %1793 = vst [vmem:[#allocation2 + $0x540] sm:$0xff] %v1537
    %1794 = vst [vmem:[#allocation2 + $0x548] sm:$0xff] %v1538
    %1795 = vst [vmem:[#allocation2 + $0x550] sm:$0xff] %v1539
    %1796 = vst [vmem:[#allocation2 + $0x558] sm:$0xff] %v1540
    %1797 = vst [vmem:[#allocation2 + $0x560] sm:$0xff] %v1541
    %1798 = vst [vmem:[#allocation2 + $0x568] sm:$0xff] %v1542
    %1799 = vst [vmem:[#allocation2 + $0x570] sm:$0xff] %v1543
    %1800 = vst [vmem:[#allocation2 + $0x578] sm:$0xff] %v1544
    %1801 = vst [vmem:[#allocation2 + $0x580] sm:$0xff] %v1545
    %1802 = vst [vmem:[#allocation2 + $0x588] sm:$0xff] %v1546
    %1803 = vst [vmem:[#allocation2 + $0x590] sm:$0xff] %v1547
    %1804 = vst [vmem:[#allocation2 + $0x598] sm:$0xff] %v1548
    %1805 = vst [vmem:[#allocation2 + $0x5a0] sm:$0xff] %v1549
    %1806 = vst [vmem:[#allocation2 + $0x5a8] sm:$0xff] %v1550
    %1807 = vst [vmem:[#allocation2 + $0x5b0] sm:$0xff] %v1551
    %1808 = vst [vmem:[#allocation2 + $0x5b8] sm:$0xff] %v1552
    %1809 = vst [vmem:[#allocation2 + $0x5c0] sm:$0xff] %v1553
    %1810 = vst [vmem:[#allocation2 + $0x5c8] sm:$0xff] %v1554
    %1811 = vst [vmem:[#allocation2 + $0x5d0] sm:$0xff] %v1555
    %1812 = vst [vmem:[#allocation2 + $0x5d8] sm:$0xff] %v1556
    %1813 = vst [vmem:[#allocation2 + $0x5e0] sm:$0xff] %v1557
    %1814 = vst [vmem:[#allocation2 + $0x5e8] sm:$0xff] %v1558
    %1815 = vst [vmem:[#allocation2 + $0x5f0] sm:$0xff] %v1559
    %1816 = vst [vmem:[#allocation2 + $0x5f8] sm:$0xff] %v1560
    %1817 = vst [vmem:[#allocation2 + $0x600] sm:$0xff] %v1561
    %1818 = vst [vmem:[#allocation2 + $0x608] sm:$0xff] %v1562
    %1819 = vst [vmem:[#allocation2 + $0x610] sm:$0xff] %v1563
    %1820 = vst [vmem:[#allocation2 + $0x618] sm:$0xff] %v1564
    %1821 = vst [vmem:[#allocation2 + $0x620] sm:$0xff] %v1565
    %1822 = vst [vmem:[#allocation2 + $0x628] sm:$0xff] %v1566
    %1823 = vst [vmem:[#allocation2 + $0x630] sm:$0xff] %v1567
    %1824 = vst [vmem:[#allocation2 + $0x638] sm:$0xff] %v1568
    %1825 = vst [vmem:[#allocation2 + $0x640] sm:$0xff] %v1569
    %1826 = vst [vmem:[#allocation2 + $0x648] sm:$0xff] %v1570
    %1827 = vst [vmem:[#allocation2 + $0x650] sm:$0xff] %v1571
    %1828 = vst [vmem:[#allocation2 + $0x658] sm:$0xff] %v1572
    %1829 = vst [vmem:[#allocation2 + $0x660] sm:$0xff] %v1573
    %1830 = vst [vmem:[#allocation2 + $0x668] sm:$0xff] %v1574
    %1831 = vst [vmem:[#allocation2 + $0x670] sm:$0xff] %v1575
    %1832 = vst [vmem:[#allocation2 + $0x678] sm:$0xff] %v1576
    %1833 = vst [vmem:[#allocation2 + $0x680] sm:$0xff] %v1577
    %1834 = vst [vmem:[#allocation2 + $0x688] sm:$0xff] %v1578
    %1835 = vst [vmem:[#allocation2 + $0x690] sm:$0xff] %v1579
    %1836 = vst [vmem:[#allocation2 + $0x698] sm:$0xff] %v1580
    %1837 = vst [vmem:[#allocation2 + $0x6a0] sm:$0xff] %v1581
    %1838 = vst [vmem:[#allocation2 + $0x6a8] sm:$0xff] %v1582
    %1839 = vst [vmem:[#allocation2 + $0x6b0] sm:$0xff] %v1583
    %1840 = vst [vmem:[#allocation2 + $0x6b8] sm:$0xff] %v1584
    %1841 = vst [vmem:[#allocation2 + $0x6c0] sm:$0xff] %v1585
    %1842 = vst [vmem:[#allocation2 + $0x6c8] sm:$0xff] %v1586
    %1843 = vst [vmem:[#allocation2 + $0x6d0] sm:$0xff] %v1587
    %1844 = vst [vmem:[#allocation2 + $0x6d8] sm:$0xff] %v1588
    %1845 = vst [vmem:[#allocation2 + $0x6e0] sm:$0xff] %v1589
    %1846 = vst [vmem:[#allocation2 + $0x6e8] sm:$0xff] %v1590
    %1847 = vst [vmem:[#allocation2 + $0x6f0] sm:$0xff] %v1591
    %1848 = vst [vmem:[#allocation2 + $0x6f8] sm:$0xff] %v1592
    %1849 = vst [vmem:[#allocation2 + $0x700] sm:$0xff] %v1593
    %1850 = vst [vmem:[#allocation2 + $0x708] sm:$0xff] %v1594
    %1851 = vst [vmem:[#allocation2 + $0x710] sm:$0xff] %v1595
    %1852 = vst [vmem:[#allocation2 + $0x718] sm:$0xff] %v1596
    %1853 = vst [vmem:[#allocation2 + $0x720] sm:$0xff] %v1597
    %1854 = vst [vmem:[#allocation2 + $0x728] sm:$0xff] %v1598
    %1855 = vst [vmem:[#allocation2 + $0x730] sm:$0xff] %v1599
    %1856 = vst [vmem:[#allocation2 + $0x738] sm:$0xff] %v1600
    %1857 = vst [vmem:[#allocation2 + $0x740] sm:$0xff] %v1601
    %1858 = vst [vmem:[#allocation2 + $0x748] sm:$0xff] %v1602
    %1859 = vst [vmem:[#allocation2 + $0x750] sm:$0xff] %v1603
    %1860 = vst [vmem:[#allocation2 + $0x758] sm:$0xff] %v1604
    %1861 = vst [vmem:[#allocation2 + $0x760] sm:$0xff] %v1605
    %1862 = vst [vmem:[#allocation2 + $0x768] sm:$0xff] %v1606
    %1863 = vst [vmem:[#allocation2 + $0x770] sm:$0xff] %v1607
    %1864 = vst [vmem:[#allocation2 + $0x778] sm:$0xff] %v1608
    %1865 = vst [vmem:[#allocation2 + $0x780] sm:$0xff] %v1609
    %1866 = vst [vmem:[#allocation2 + $0x788] sm:$0xff] %v1610
    %1867 = vst [vmem:[#allocation2 + $0x790] sm:$0xff] %v1611
    %1868 = vst [vmem:[#allocation2 + $0x798] sm:$0xff] %v1612
    %1869 = vst [vmem:[#allocation2 + $0x7a0] sm:$0xff] %v1613
    %1870 = vst [vmem:[#allocation2 + $0x7a8] sm:$0xff] %v1614
    %1871 = vst [vmem:[#allocation2 + $0x7b0] sm:$0xff] %v1615
    %1872 = vst [vmem:[#allocation2 + $0x7b8] sm:$0xff] %v1616
    %1873 = vst [vmem:[#allocation2 + $0x7c0] sm:$0xff] %v1617
    %1874 = vst [vmem:[#allocation2 + $0x7c8] sm:$0xff] %v1618
    %1875 = vst [vmem:[#allocation2 + $0x7d0] sm:$0xff] %v1619
    %1876 = vst [vmem:[#allocation2 + $0x7d8] sm:$0xff] %v1620
    %1877 = vst [vmem:[#allocation2 + $0x7e0] sm:$0xff] %v1621
    %1878 = vst [vmem:[#allocation2 + $0x7e8] sm:$0xff] %v1622
    %1879 = vst [vmem:[#allocation2 + $0x7f0] sm:$0xff] %v1623
    %1880 = vst [vmem:[#allocation2 + $0x7f8] sm:$0xff] %v1624
    // Predicated region
    $region46: #{tpu_custom_call.1} parent=1 // pred_check
      %p1881 = pneg %p85
    $region47: #{tpu_custom_call.1} parent=1 // pred_check_branch
      %1883 = sbr.rel (%p1881) target = $region49
    $region48: #{tpu_custom_call.1} parent=1 // pred_region
      %v1884 = vld [vmem:[#allocation2] sm:$0xff]
      %v1885 = vld [vmem:[#allocation2 + $0x8] sm:$0xff]
      %v1886 = vld [vmem:[#allocation2 + $0x10] sm:$0xff]
      %v1887 = vld [vmem:[#allocation2 + $0x18] sm:$0xff]
      %v1888 = vld [vmem:[#allocation2 + $0x20] sm:$0xff]
      %v1889 = vld [vmem:[#allocation2 + $0x28] sm:$0xff]
      %v1890 = vld [vmem:[#allocation2 + $0x30] sm:$0xff]
      %v1891 = vld [vmem:[#allocation2 + $0x38] sm:$0xff]
      %v1892 = vld [vmem:[#allocation2 + $0x40] sm:$0xff]
      %v1893 = vld [vmem:[#allocation2 + $0x48] sm:$0xff]
      %v1894 = vld [vmem:[#allocation2 + $0x50] sm:$0xff]
      %v1895 = vld [vmem:[#allocation2 + $0x58] sm:$0xff]
      %v1896 = vld [vmem:[#allocation2 + $0x60] sm:$0xff]
      %v1897 = vld [vmem:[#allocation2 + $0x68] sm:$0xff]
      %v1898 = vld [vmem:[#allocation2 + $0x70] sm:$0xff]
      %v1899 = vld [vmem:[#allocation2 + $0x78] sm:$0xff]
      %v1900 = vld [vmem:[#allocation2 + $0x80] sm:$0xff]
      %v1901 = vld [vmem:[#allocation2 + $0x88] sm:$0xff]
      %v1902 = vld [vmem:[#allocation2 + $0x90] sm:$0xff]
      %v1903 = vld [vmem:[#allocation2 + $0x98] sm:$0xff]
      %v1904 = vld [vmem:[#allocation2 + $0xa0] sm:$0xff]
      %v1905 = vld [vmem:[#allocation2 + $0xa8] sm:$0xff]
      %v1906 = vld [vmem:[#allocation2 + $0xb0] sm:$0xff]
      %v1907 = vld [vmem:[#allocation2 + $0xb8] sm:$0xff]
      %v1908 = vld [vmem:[#allocation2 + $0xc0] sm:$0xff]
      %v1909 = vld [vmem:[#allocation2 + $0xc8] sm:$0xff]
      %v1910 = vld [vmem:[#allocation2 + $0xd0] sm:$0xff]
      %v1911 = vld [vmem:[#allocation2 + $0xd8] sm:$0xff]
      %v1912 = vld [vmem:[#allocation2 + $0xe0] sm:$0xff]
      %v1913 = vld [vmem:[#allocation2 + $0xe8] sm:$0xff]
      %v1914 = vld [vmem:[#allocation2 + $0xf0] sm:$0xff]
      %v1915 = vld [vmem:[#allocation2 + $0xf8] sm:$0xff]
      %v1916 = vld [vmem:[#allocation2 + $0x100] sm:$0xff]
      %v1917 = vld [vmem:[#allocation2 + $0x108] sm:$0xff]
      %v1918 = vld [vmem:[#allocation2 + $0x110] sm:$0xff]
      %v1919 = vld [vmem:[#allocation2 + $0x118] sm:$0xff]
      %v1920 = vld [vmem:[#allocation2 + $0x120] sm:$0xff]
      %v1921 = vld [vmem:[#allocation2 + $0x128] sm:$0xff]
      %v1922 = vld [vmem:[#allocation2 + $0x130] sm:$0xff]
      %v1923 = vld [vmem:[#allocation2 + $0x138] sm:$0xff]
      %v1924 = vld [vmem:[#allocation2 + $0x140] sm:$0xff]
      %v1925 = vld [vmem:[#allocation2 + $0x148] sm:$0xff]
      %v1926 = vld [vmem:[#allocation2 + $0x150] sm:$0xff]
      %v1927 = vld [vmem:[#allocation2 + $0x158] sm:$0xff]
      %v1928 = vld [vmem:[#allocation2 + $0x160] sm:$0xff]
      %v1929 = vld [vmem:[#allocation2 + $0x168] sm:$0xff]
      %v1930 = vld [vmem:[#allocation2 + $0x170] sm:$0xff]
      %v1931 = vld [vmem:[#allocation2 + $0x178] sm:$0xff]
      %v1932 = vld [vmem:[#allocation2 + $0x180] sm:$0xff]
      %v1933 = vld [vmem:[#allocation2 + $0x188] sm:$0xff]
      %v1934 = vld [vmem:[#allocation2 + $0x190] sm:$0xff]
      %v1935 = vld [vmem:[#allocation2 + $0x198] sm:$0xff]
      %v1936 = vld [vmem:[#allocation2 + $0x1a0] sm:$0xff]
      %v1937 = vld [vmem:[#allocation2 + $0x1a8] sm:$0xff]
      %v1938 = vld [vmem:[#allocation2 + $0x1b0] sm:$0xff]
      %v1939 = vld [vmem:[#allocation2 + $0x1b8] sm:$0xff]
      %v1940 = vld [vmem:[#allocation2 + $0x1c0] sm:$0xff]
      %v1941 = vld [vmem:[#allocation2 + $0x1c8] sm:$0xff]
      %v1942 = vld [vmem:[#allocation2 + $0x1d0] sm:$0xff]
      %v1943 = vld [vmem:[#allocation2 + $0x1d8] sm:$0xff]
      %v1944 = vld [vmem:[#allocation2 + $0x1e0] sm:$0xff]
      %v1945 = vld [vmem:[#allocation2 + $0x1e8] sm:$0xff]
      %v1946 = vld [vmem:[#allocation2 + $0x1f0] sm:$0xff]
      %v1947 = vld [vmem:[#allocation2 + $0x1f8] sm:$0xff]
      %v1948 = vld [vmem:[#allocation2 + $0x200] sm:$0xff]
      %v1949 = vld [vmem:[#allocation2 + $0x208] sm:$0xff]
      %v1950 = vld [vmem:[#allocation2 + $0x210] sm:$0xff]
      %v1951 = vld [vmem:[#allocation2 + $0x218] sm:$0xff]
      %v1952 = vld [vmem:[#allocation2 + $0x220] sm:$0xff]
      %v1953 = vld [vmem:[#allocation2 + $0x228] sm:$0xff]
      %v1954 = vld [vmem:[#allocation2 + $0x230] sm:$0xff]
      %v1955 = vld [vmem:[#allocation2 + $0x238] sm:$0xff]
      %v1956 = vld [vmem:[#allocation2 + $0x240] sm:$0xff]
      %v1957 = vld [vmem:[#allocation2 + $0x248] sm:$0xff]
      %v1958 = vld [vmem:[#allocation2 + $0x250] sm:$0xff]
      %v1959 = vld [vmem:[#allocation2 + $0x258] sm:$0xff]
      %v1960 = vld [vmem:[#allocation2 + $0x260] sm:$0xff]
      %v1961 = vld [vmem:[#allocation2 + $0x268] sm:$0xff]
      %v1962 = vld [vmem:[#allocation2 + $0x270] sm:$0xff]
      %v1963 = vld [vmem:[#allocation2 + $0x278] sm:$0xff]
      %v1964 = vld [vmem:[#allocation2 + $0x280] sm:$0xff]
      %v1965 = vld [vmem:[#allocation2 + $0x288] sm:$0xff]
      %v1966 = vld [vmem:[#allocation2 + $0x290] sm:$0xff]
      %v1967 = vld [vmem:[#allocation2 + $0x298] sm:$0xff]
      %v1968 = vld [vmem:[#allocation2 + $0x2a0] sm:$0xff]
      %v1969 = vld [vmem:[#allocation2 + $0x2a8] sm:$0xff]
      %v1970 = vld [vmem:[#allocation2 + $0x2b0] sm:$0xff]
      %v1971 = vld [vmem:[#allocation2 + $0x2b8] sm:$0xff]
      %v1972 = vld [vmem:[#allocation2 + $0x2c0] sm:$0xff]
      %v1973 = vld [vmem:[#allocation2 + $0x2c8] sm:$0xff]
      %v1974 = vld [vmem:[#allocation2 + $0x2d0] sm:$0xff]
      %v1975 = vld [vmem:[#allocation2 + $0x2d8] sm:$0xff]
      %v1976 = vld [vmem:[#allocation2 + $0x2e0] sm:$0xff]
      %v1977 = vld [vmem:[#allocation2 + $0x2e8] sm:$0xff]
      %v1978 = vld [vmem:[#allocation2 + $0x2f0] sm:$0xff]
      %v1979 = vld [vmem:[#allocation2 + $0x2f8] sm:$0xff]
      %v1980 = vld [vmem:[#allocation2 + $0x300] sm:$0xff]
      %v1981 = vld [vmem:[#allocation2 + $0x308] sm:$0xff]
      %v1982 = vld [vmem:[#allocation2 + $0x310] sm:$0xff]
      %v1983 = vld [vmem:[#allocation2 + $0x318] sm:$0xff]
      %v1984 = vld [vmem:[#allocation2 + $0x320] sm:$0xff]
      %v1985 = vld [vmem:[#allocation2 + $0x328] sm:$0xff]
      %v1986 = vld [vmem:[#allocation2 + $0x330] sm:$0xff]
      %v1987 = vld [vmem:[#allocation2 + $0x338] sm:$0xff]
      %v1988 = vld [vmem:[#allocation2 + $0x340] sm:$0xff]
      %v1989 = vld [vmem:[#allocation2 + $0x348] sm:$0xff]
      %v1990 = vld [vmem:[#allocation2 + $0x350] sm:$0xff]
      %v1991 = vld [vmem:[#allocation2 + $0x358] sm:$0xff]
      %v1992 = vld [vmem:[#allocation2 + $0x360] sm:$0xff]
      %v1993 = vld [vmem:[#allocation2 + $0x368] sm:$0xff]
      %v1994 = vld [vmem:[#allocation2 + $0x370] sm:$0xff]
      %v1995 = vld [vmem:[#allocation2 + $0x378] sm:$0xff]
      %v1996 = vld [vmem:[#allocation2 + $0x380] sm:$0xff]
      %v1997 = vld [vmem:[#allocation2 + $0x388] sm:$0xff]
      %v1998 = vld [vmem:[#allocation2 + $0x390] sm:$0xff]
      %v1999 = vld [vmem:[#allocation2 + $0x398] sm:$0xff]
      %v2000 = vld [vmem:[#allocation2 + $0x3a0] sm:$0xff]
      %v2001 = vld [vmem:[#allocation2 + $0x3a8] sm:$0xff]
      %v2002 = vld [vmem:[#allocation2 + $0x3b0] sm:$0xff]
      %v2003 = vld [vmem:[#allocation2 + $0x3b8] sm:$0xff]
      %v2004 = vld [vmem:[#allocation2 + $0x3c0] sm:$0xff]
      %v2005 = vld [vmem:[#allocation2 + $0x3c8] sm:$0xff]
      %v2006 = vld [vmem:[#allocation2 + $0x3d0] sm:$0xff]
      %v2007 = vld [vmem:[#allocation2 + $0x3d8] sm:$0xff]
      %v2008 = vld [vmem:[#allocation2 + $0x3e0] sm:$0xff]
      %v2009 = vld [vmem:[#allocation2 + $0x3e8] sm:$0xff]
      %v2010 = vld [vmem:[#allocation2 + $0x3f0] sm:$0xff]
      %v2011 = vld [vmem:[#allocation2 + $0x3f8] sm:$0xff]
      %v2012 = vld [vmem:[#allocation2 + $0x400] sm:$0xff]
      %v2013 = vld [vmem:[#allocation2 + $0x408] sm:$0xff]
      %v2014 = vld [vmem:[#allocation2 + $0x410] sm:$0xff]
      %v2015 = vld [vmem:[#allocation2 + $0x418] sm:$0xff]
      %v2016 = vld [vmem:[#allocation2 + $0x420] sm:$0xff]
      %v2017 = vld [vmem:[#allocation2 + $0x428] sm:$0xff]
      %v2018 = vld [vmem:[#allocation2 + $0x430] sm:$0xff]
      %v2019 = vld [vmem:[#allocation2 + $0x438] sm:$0xff]
      %v2020 = vld [vmem:[#allocation2 + $0x440] sm:$0xff]
      %v2021 = vld [vmem:[#allocation2 + $0x448] sm:$0xff]
      %v2022 = vld [vmem:[#allocation2 + $0x450] sm:$0xff]
      %v2023 = vld [vmem:[#allocation2 + $0x458] sm:$0xff]
      %v2024 = vld [vmem:[#allocation2 + $0x460] sm:$0xff]
      %v2025 = vld [vmem:[#allocation2 + $0x468] sm:$0xff]
      %v2026 = vld [vmem:[#allocation2 + $0x470] sm:$0xff]
      %v2027 = vld [vmem:[#allocation2 + $0x478] sm:$0xff]
      %v2028 = vld [vmem:[#allocation2 + $0x480] sm:$0xff]
      %v2029 = vld [vmem:[#allocation2 + $0x488] sm:$0xff]
      %v2030 = vld [vmem:[#allocation2 + $0x490] sm:$0xff]
      %v2031 = vld [vmem:[#allocation2 + $0x498] sm:$0xff]
      %v2032 = vld [vmem:[#allocation2 + $0x4a0] sm:$0xff]
      %v2033 = vld [vmem:[#allocation2 + $0x4a8] sm:$0xff]
      %v2034 = vld [vmem:[#allocation2 + $0x4b0] sm:$0xff]
      %v2035 = vld [vmem:[#allocation2 + $0x4b8] sm:$0xff]
      %v2036 = vld [vmem:[#allocation2 + $0x4c0] sm:$0xff]
      %v2037 = vld [vmem:[#allocation2 + $0x4c8] sm:$0xff]
      %v2038 = vld [vmem:[#allocation2 + $0x4d0] sm:$0xff]
      %v2039 = vld [vmem:[#allocation2 + $0x4d8] sm:$0xff]
      %v2040 = vld [vmem:[#allocation2 + $0x4e0] sm:$0xff]
      %v2041 = vld [vmem:[#allocation2 + $0x4e8] sm:$0xff]
      %v2042 = vld [vmem:[#allocation2 + $0x4f0] sm:$0xff]
      %v2043 = vld [vmem:[#allocation2 + $0x4f8] sm:$0xff]
      %v2044 = vld [vmem:[#allocation2 + $0x500] sm:$0xff]
      %v2045 = vld [vmem:[#allocation2 + $0x508] sm:$0xff]
      %v2046 = vld [vmem:[#allocation2 + $0x510] sm:$0xff]
      %v2047 = vld [vmem:[#allocation2 + $0x518] sm:$0xff]
      %v2048 = vld [vmem:[#allocation2 + $0x520] sm:$0xff]
      %v2049 = vld [vmem:[#allocation2 + $0x528] sm:$0xff]
      %v2050 = vld [vmem:[#allocation2 + $0x530] sm:$0xff]
      %v2051 = vld [vmem:[#allocation2 + $0x538] sm:$0xff]
      %v2052 = vld [vmem:[#allocation2 + $0x540] sm:$0xff]
      %v2053 = vld [vmem:[#allocation2 + $0x548] sm:$0xff]
      %v2054 = vld [vmem:[#allocation2 + $0x550] sm:$0xff]
      %v2055 = vld [vmem:[#allocation2 + $0x558] sm:$0xff]
      %v2056 = vld [vmem:[#allocation2 + $0x560] sm:$0xff]
      %v2057 = vld [vmem:[#allocation2 + $0x568] sm:$0xff]
      %v2058 = vld [vmem:[#allocation2 + $0x570] sm:$0xff]
      %v2059 = vld [vmem:[#allocation2 + $0x578] sm:$0xff]
      %v2060 = vld [vmem:[#allocation2 + $0x580] sm:$0xff]
      %v2061 = vld [vmem:[#allocation2 + $0x588] sm:$0xff]
      %v2062 = vld [vmem:[#allocation2 + $0x590] sm:$0xff]
      %v2063 = vld [vmem:[#allocation2 + $0x598] sm:$0xff]
      %v2064 = vld [vmem:[#allocation2 + $0x5a0] sm:$0xff]
      %v2065 = vld [vmem:[#allocation2 + $0x5a8] sm:$0xff]
      %v2066 = vld [vmem:[#allocation2 + $0x5b0] sm:$0xff]
      %v2067 = vld [vmem:[#allocation2 + $0x5b8] sm:$0xff]
      %v2068 = vld [vmem:[#allocation2 + $0x5c0] sm:$0xff]
      %v2069 = vld [vmem:[#allocation2 + $0x5c8] sm:$0xff]
      %v2070 = vld [vmem:[#allocation2 + $0x5d0] sm:$0xff]
      %v2071 = vld [vmem:[#allocation2 + $0x5d8] sm:$0xff]
      %v2072 = vld [vmem:[#allocation2 + $0x5e0] sm:$0xff]
      %v2073 = vld [vmem:[#allocation2 + $0x5e8] sm:$0xff]
      %v2074 = vld [vmem:[#allocation2 + $0x5f0] sm:$0xff]
      %v2075 = vld [vmem:[#allocation2 + $0x5f8] sm:$0xff]
      %v2076 = vld [vmem:[#allocation2 + $0x600] sm:$0xff]
      %v2077 = vld [vmem:[#allocation2 + $0x608] sm:$0xff]
      %v2078 = vld [vmem:[#allocation2 + $0x610] sm:$0xff]
      %v2079 = vld [vmem:[#allocation2 + $0x618] sm:$0xff]
      %v2080 = vld [vmem:[#allocation2 + $0x620] sm:$0xff]
      %v2081 = vld [vmem:[#allocation2 + $0x628] sm:$0xff]
      %v2082 = vld [vmem:[#allocation2 + $0x630] sm:$0xff]
      %v2083 = vld [vmem:[#allocation2 + $0x638] sm:$0xff]
      %v2084 = vld [vmem:[#allocation2 + $0x640] sm:$0xff]
      %v2085 = vld [vmem:[#allocation2 + $0x648] sm:$0xff]
      %v2086 = vld [vmem:[#allocation2 + $0x650] sm:$0xff]
      %v2087 = vld [vmem:[#allocation2 + $0x658] sm:$0xff]
      %v2088 = vld [vmem:[#allocation2 + $0x660] sm:$0xff]
      %v2089 = vld [vmem:[#allocation2 + $0x668] sm:$0xff]
      %v2090 = vld [vmem:[#allocation2 + $0x670] sm:$0xff]
      %v2091 = vld [vmem:[#allocation2 + $0x678] sm:$0xff]
      %v2092 = vld [vmem:[#allocation2 + $0x680] sm:$0xff]
      %v2093 = vld [vmem:[#allocation2 + $0x688] sm:$0xff]
      %v2094 = vld [vmem:[#allocation2 + $0x690] sm:$0xff]
      %v2095 = vld [vmem:[#allocation2 + $0x698] sm:$0xff]
      %v2096 = vld [vmem:[#allocation2 + $0x6a0] sm:$0xff]
      %v2097 = vld [vmem:[#allocation2 + $0x6a8] sm:$0xff]
      %v2098 = vld [vmem:[#allocation2 + $0x6b0] sm:$0xff]
      %v2099 = vld [vmem:[#allocation2 + $0x6b8] sm:$0xff]
      %v2100 = vld [vmem:[#allocation2 + $0x6c0] sm:$0xff]
      %v2101 = vld [vmem:[#allocation2 + $0x6c8] sm:$0xff]
      %v2102 = vld [vmem:[#allocation2 + $0x6d0] sm:$0xff]
      %v2103 = vld [vmem:[#allocation2 + $0x6d8] sm:$0xff]
      %v2104 = vld [vmem:[#allocation2 + $0x6e0] sm:$0xff]
      %v2105 = vld [vmem:[#allocation2 + $0x6e8] sm:$0xff]
      %v2106 = vld [vmem:[#allocation2 + $0x6f0] sm:$0xff]
      %v2107 = vld [vmem:[#allocation2 + $0x6f8] sm:$0xff]
      %v2108 = vld [vmem:[#allocation2 + $0x700] sm:$0xff]
      %v2109 = vld [vmem:[#allocation2 + $0x708] sm:$0xff]
      %v2110 = vld [vmem:[#allocation2 + $0x710] sm:$0xff]
      %v2111 = vld [vmem:[#allocation2 + $0x718] sm:$0xff]
      %v2112 = vld [vmem:[#allocation2 + $0x720] sm:$0xff]
      %v2113 = vld [vmem:[#allocation2 + $0x728] sm:$0xff]
      %v2114 = vld [vmem:[#allocation2 + $0x730] sm:$0xff]
      %v2115 = vld [vmem:[#allocation2 + $0x738] sm:$0xff]
      %v2116 = vld [vmem:[#allocation2 + $0x740] sm:$0xff]
      %v2117 = vld [vmem:[#allocation2 + $0x748] sm:$0xff]
      %v2118 = vld [vmem:[#allocation2 + $0x750] sm:$0xff]
      %v2119 = vld [vmem:[#allocation2 + $0x758] sm:$0xff]
      %v2120 = vld [vmem:[#allocation2 + $0x760] sm:$0xff]
      %v2121 = vld [vmem:[#allocation2 + $0x768] sm:$0xff]
      %v2122 = vld [vmem:[#allocation2 + $0x770] sm:$0xff]
      %v2123 = vld [vmem:[#allocation2 + $0x778] sm:$0xff]
      %v2124 = vld [vmem:[#allocation2 + $0x780] sm:$0xff]
      %v2125 = vld [vmem:[#allocation2 + $0x788] sm:$0xff]
      %v2126 = vld [vmem:[#allocation2 + $0x790] sm:$0xff]
      %v2127 = vld [vmem:[#allocation2 + $0x798] sm:$0xff]
      %v2128 = vld [vmem:[#allocation2 + $0x7a0] sm:$0xff]
      %v2129 = vld [vmem:[#allocation2 + $0x7a8] sm:$0xff]
      %v2130 = vld [vmem:[#allocation2 + $0x7b0] sm:$0xff]
      %v2131 = vld [vmem:[#allocation2 + $0x7b8] sm:$0xff]
      %v2132 = vld [vmem:[#allocation2 + $0x7c0] sm:$0xff]
      %v2133 = vld [vmem:[#allocation2 + $0x7c8] sm:$0xff]
      %v2134 = vld [vmem:[#allocation2 + $0x7d0] sm:$0xff]
      %v2135 = vld [vmem:[#allocation2 + $0x7d8] sm:$0xff]
      %v2136 = vld [vmem:[#allocation2 + $0x7e0] sm:$0xff]
      %v2137 = vld [vmem:[#allocation2 + $0x7e8] sm:$0xff]
      %v2138 = vld [vmem:[#allocation2 + $0x7f0] sm:$0xff]
      %v2139 = vld [vmem:[#allocation2 + $0x7f8] sm:$0xff]
      %2140 = vadd.xlane.f32.xlu0 %v1884
      %v2141 = vpop.xlane.xlu0 %2140
      %2142 = vadd.xlane.f32.xlu0 %v1885
      %v2143 = vpop.xlane.xlu0 %2142
      %2144 = vadd.xlane.f32.xlu0 %v1886
      %v2145 = vpop.xlane.xlu0 %2144
      %2146 = vadd.xlane.f32.xlu0 %v1887
      %v2147 = vpop.xlane.xlu0 %2146
      %2148 = vadd.xlane.f32.xlu0 %v1888
      %v2149 = vpop.xlane.xlu0 %2148
      %2150 = vadd.xlane.f32.xlu0 %v1889
      %v2151 = vpop.xlane.xlu0 %2150
      %2152 = vadd.xlane.f32.xlu0 %v1890
      %v2153 = vpop.xlane.xlu0 %2152
      %2154 = vadd.xlane.f32.xlu0 %v1891
      %v2155 = vpop.xlane.xlu0 %2154
      %2156 = vadd.xlane.f32.xlu0 %v1892
      %v2157 = vpop.xlane.xlu0 %2156
      %2158 = vadd.xlane.f32.xlu0 %v1893
      %v2159 = vpop.xlane.xlu0 %2158
      %2160 = vadd.xlane.f32.xlu0 %v1894
      %v2161 = vpop.xlane.xlu0 %2160
      %2162 = vadd.xlane.f32.xlu0 %v1895
      %v2163 = vpop.xlane.xlu0 %2162
      %2164 = vadd.xlane.f32.xlu0 %v1896
      %v2165 = vpop.xlane.xlu0 %2164
      %2166 = vadd.xlane.f32.xlu0 %v1897
      %v2167 = vpop.xlane.xlu0 %2166
      %2168 = vadd.xlane.f32.xlu0 %v1898
      %v2169 = vpop.xlane.xlu0 %2168
      %2170 = vadd.xlane.f32.xlu0 %v1899
      %v2171 = vpop.xlane.xlu0 %2170
      %2172 = vadd.xlane.f32.xlu0 %v1900
      %v2173 = vpop.xlane.xlu0 %2172
      %2174 = vadd.xlane.f32.xlu0 %v1901
      %v2175 = vpop.xlane.xlu0 %2174
      %2176 = vadd.xlane.f32.xlu0 %v1902
      %v2177 = vpop.xlane.xlu0 %2176
      %2178 = vadd.xlane.f32.xlu0 %v1903
      %v2179 = vpop.xlane.xlu0 %2178
      %2180 = vadd.xlane.f32.xlu0 %v1904
      %v2181 = vpop.xlane.xlu0 %2180
      %2182 = vadd.xlane.f32.xlu0 %v1905
      %v2183 = vpop.xlane.xlu0 %2182
      %2184 = vadd.xlane.f32.xlu0 %v1906
      %v2185 = vpop.xlane.xlu0 %2184
      %2186 = vadd.xlane.f32.xlu0 %v1907
      %v2187 = vpop.xlane.xlu0 %2186
      %2188 = vadd.xlane.f32.xlu0 %v1908
      %v2189 = vpop.xlane.xlu0 %2188
      %2190 = vadd.xlane.f32.xlu0 %v1909
      %v2191 = vpop.xlane.xlu0 %2190
      %2192 = vadd.xlane.f32.xlu0 %v1910
      %v2193 = vpop.xlane.xlu0 %2192
      %2194 = vadd.xlane.f32.xlu0 %v1911
      %v2195 = vpop.xlane.xlu0 %2194
      %2196 = vadd.xlane.f32.xlu0 %v1912
      %v2197 = vpop.xlane.xlu0 %2196
      %2198 = vadd.xlane.f32.xlu0 %v1913
      %v2199 = vpop.xlane.xlu0 %2198
      %2200 = vadd.xlane.f32.xlu0 %v1914
      %v2201 = vpop.xlane.xlu0 %2200
      %2202 = vadd.xlane.f32.xlu0 %v1915
      %v2203 = vpop.xlane.xlu0 %2202
      %2204 = vadd.xlane.f32.xlu0 %v1916
      %v2205 = vpop.xlane.xlu0 %2204
      %2206 = vadd.xlane.f32.xlu0 %v1917
      %v2207 = vpop.xlane.xlu0 %2206
      %2208 = vadd.xlane.f32.xlu0 %v1918
      %v2209 = vpop.xlane.xlu0 %2208
      %2210 = vadd.xlane.f32.xlu0 %v1919
      %v2211 = vpop.xlane.xlu0 %2210
      %2212 = vadd.xlane.f32.xlu0 %v1920
      %v2213 = vpop.xlane.xlu0 %2212
      %2214 = vadd.xlane.f32.xlu0 %v1921
      %v2215 = vpop.xlane.xlu0 %2214
      %2216 = vadd.xlane.f32.xlu0 %v1922
      %v2217 = vpop.xlane.xlu0 %2216
      %2218 = vadd.xlane.f32.xlu0 %v1923
      %v2219 = vpop.xlane.xlu0 %2218
      %2220 = vadd.xlane.f32.xlu0 %v1924
      %v2221 = vpop.xlane.xlu0 %2220
      %2222 = vadd.xlane.f32.xlu0 %v1925
      %v2223 = vpop.xlane.xlu0 %2222
      %2224 = vadd.xlane.f32.xlu0 %v1926
      %v2225 = vpop.xlane.xlu0 %2224
      %2226 = vadd.xlane.f32.xlu0 %v1927
      %v2227 = vpop.xlane.xlu0 %2226
      %2228 = vadd.xlane.f32.xlu0 %v1928
      %v2229 = vpop.xlane.xlu0 %2228
      %2230 = vadd.xlane.f32.xlu0 %v1929
      %v2231 = vpop.xlane.xlu0 %2230
      %2232 = vadd.xlane.f32.xlu0 %v1930
      %v2233 = vpop.xlane.xlu0 %2232
      %2234 = vadd.xlane.f32.xlu0 %v1931
      %v2235 = vpop.xlane.xlu0 %2234
      %2236 = vadd.xlane.f32.xlu0 %v1932
      %v2237 = vpop.xlane.xlu0 %2236
      %2238 = vadd.xlane.f32.xlu0 %v1933
      %v2239 = vpop.xlane.xlu0 %2238
      %2240 = vadd.xlane.f32.xlu0 %v1934
      %v2241 = vpop.xlane.xlu0 %2240
      %2242 = vadd.xlane.f32.xlu0 %v1935
      %v2243 = vpop.xlane.xlu0 %2242
      %2244 = vadd.xlane.f32.xlu0 %v1936
      %v2245 = vpop.xlane.xlu0 %2244
      %2246 = vadd.xlane.f32.xlu0 %v1937
      %v2247 = vpop.xlane.xlu0 %2246
      %2248 = vadd.xlane.f32.xlu0 %v1938
      %v2249 = vpop.xlane.xlu0 %2248
      %2250 = vadd.xlane.f32.xlu0 %v1939
      %v2251 = vpop.xlane.xlu0 %2250
      %2252 = vadd.xlane.f32.xlu0 %v1940
      %v2253 = vpop.xlane.xlu0 %2252
      %2254 = vadd.xlane.f32.xlu0 %v1941
      %v2255 = vpop.xlane.xlu0 %2254
      %2256 = vadd.xlane.f32.xlu0 %v1942
      %v2257 = vpop.xlane.xlu0 %2256
      %2258 = vadd.xlane.f32.xlu0 %v1943
      %v2259 = vpop.xlane.xlu0 %2258
      %2260 = vadd.xlane.f32.xlu0 %v1944
      %v2261 = vpop.xlane.xlu0 %2260
      %2262 = vadd.xlane.f32.xlu0 %v1945
      %v2263 = vpop.xlane.xlu0 %2262
      %2264 = vadd.xlane.f32.xlu0 %v1946
      %v2265 = vpop.xlane.xlu0 %2264
      %2266 = vadd.xlane.f32.xlu0 %v1947
      %v2267 = vpop.xlane.xlu0 %2266
      %2268 = vadd.xlane.f32.xlu0 %v1948
      %v2269 = vpop.xlane.xlu0 %2268
      %2270 = vadd.xlane.f32.xlu0 %v1949
      %v2271 = vpop.xlane.xlu0 %2270
      %2272 = vadd.xlane.f32.xlu0 %v1950
      %v2273 = vpop.xlane.xlu0 %2272
      %2274 = vadd.xlane.f32.xlu0 %v1951
      %v2275 = vpop.xlane.xlu0 %2274
      %2276 = vadd.xlane.f32.xlu0 %v1952
      %v2277 = vpop.xlane.xlu0 %2276
      %2278 = vadd.xlane.f32.xlu0 %v1953
      %v2279 = vpop.xlane.xlu0 %2278
      %2280 = vadd.xlane.f32.xlu0 %v1954
      %v2281 = vpop.xlane.xlu0 %2280
      %2282 = vadd.xlane.f32.xlu0 %v1955
      %v2283 = vpop.xlane.xlu0 %2282
      %2284 = vadd.xlane.f32.xlu0 %v1956
      %v2285 = vpop.xlane.xlu0 %2284
      %2286 = vadd.xlane.f32.xlu0 %v1957
      %v2287 = vpop.xlane.xlu0 %2286
      %2288 = vadd.xlane.f32.xlu0 %v1958
      %v2289 = vpop.xlane.xlu0 %2288
      %2290 = vadd.xlane.f32.xlu0 %v1959
      %v2291 = vpop.xlane.xlu0 %2290
      %2292 = vadd.xlane.f32.xlu0 %v1960
      %v2293 = vpop.xlane.xlu0 %2292
      %2294 = vadd.xlane.f32.xlu0 %v1961
      %v2295 = vpop.xlane.xlu0 %2294
      %2296 = vadd.xlane.f32.xlu0 %v1962
      %v2297 = vpop.xlane.xlu0 %2296
      %2298 = vadd.xlane.f32.xlu0 %v1963
      %v2299 = vpop.xlane.xlu0 %2298
      %2300 = vadd.xlane.f32.xlu0 %v1964
      %v2301 = vpop.xlane.xlu0 %2300
      %2302 = vadd.xlane.f32.xlu0 %v1965
      %v2303 = vpop.xlane.xlu0 %2302
      %2304 = vadd.xlane.f32.xlu0 %v1966
      %v2305 = vpop.xlane.xlu0 %2304
      %2306 = vadd.xlane.f32.xlu0 %v1967
      %v2307 = vpop.xlane.xlu0 %2306
      %2308 = vadd.xlane.f32.xlu0 %v1968
      %v2309 = vpop.xlane.xlu0 %2308
      %2310 = vadd.xlane.f32.xlu0 %v1969
      %v2311 = vpop.xlane.xlu0 %2310
      %2312 = vadd.xlane.f32.xlu0 %v1970
      %v2313 = vpop.xlane.xlu0 %2312
      %2314 = vadd.xlane.f32.xlu0 %v1971
      %v2315 = vpop.xlane.xlu0 %2314
      %2316 = vadd.xlane.f32.xlu0 %v1972
      %v2317 = vpop.xlane.xlu0 %2316
      %2318 = vadd.xlane.f32.xlu0 %v1973
      %v2319 = vpop.xlane.xlu0 %2318
      %2320 = vadd.xlane.f32.xlu0 %v1974
      %v2321 = vpop.xlane.xlu0 %2320
      %2322 = vadd.xlane.f32.xlu0 %v1975
      %v2323 = vpop.xlane.xlu0 %2322
      %2324 = vadd.xlane.f32.xlu0 %v1976
      %v2325 = vpop.xlane.xlu0 %2324
      %2326 = vadd.xlane.f32.xlu0 %v1977
      %v2327 = vpop.xlane.xlu0 %2326
      %2328 = vadd.xlane.f32.xlu0 %v1978
      %v2329 = vpop.xlane.xlu0 %2328
      %2330 = vadd.xlane.f32.xlu0 %v1979
      %v2331 = vpop.xlane.xlu0 %2330
      %2332 = vadd.xlane.f32.xlu0 %v1980
      %v2333 = vpop.xlane.xlu0 %2332
      %2334 = vadd.xlane.f32.xlu0 %v1981
      %v2335 = vpop.xlane.xlu0 %2334
      %2336 = vadd.xlane.f32.xlu0 %v1982
      %v2337 = vpop.xlane.xlu0 %2336
      %2338 = vadd.xlane.f32.xlu0 %v1983
      %v2339 = vpop.xlane.xlu0 %2338
      %2340 = vadd.xlane.f32.xlu0 %v1984
      %v2341 = vpop.xlane.xlu0 %2340
      %2342 = vadd.xlane.f32.xlu0 %v1985
      %v2343 = vpop.xlane.xlu0 %2342
      %2344 = vadd.xlane.f32.xlu0 %v1986
      %v2345 = vpop.xlane.xlu0 %2344
      %2346 = vadd.xlane.f32.xlu0 %v1987
      %v2347 = vpop.xlane.xlu0 %2346
      %2348 = vadd.xlane.f32.xlu0 %v1988
      %v2349 = vpop.xlane.xlu0 %2348
      %2350 = vadd.xlane.f32.xlu0 %v1989
      %v2351 = vpop.xlane.xlu0 %2350
      %2352 = vadd.xlane.f32.xlu0 %v1990
      %v2353 = vpop.xlane.xlu0 %2352
      %2354 = vadd.xlane.f32.xlu0 %v1991
      %v2355 = vpop.xlane.xlu0 %2354
      %2356 = vadd.xlane.f32.xlu0 %v1992
      %v2357 = vpop.xlane.xlu0 %2356
      %2358 = vadd.xlane.f32.xlu0 %v1993
      %v2359 = vpop.xlane.xlu0 %2358
      %2360 = vadd.xlane.f32.xlu0 %v1994
      %v2361 = vpop.xlane.xlu0 %2360
      %2362 = vadd.xlane.f32.xlu0 %v1995
      %v2363 = vpop.xlane.xlu0 %2362
      %2364 = vadd.xlane.f32.xlu0 %v1996
      %v2365 = vpop.xlane.xlu0 %2364
      %2366 = vadd.xlane.f32.xlu0 %v1997
      %v2367 = vpop.xlane.xlu0 %2366
      %2368 = vadd.xlane.f32.xlu0 %v1998
      %v2369 = vpop.xlane.xlu0 %2368
      %2370 = vadd.xlane.f32.xlu0 %v1999
      %v2371 = vpop.xlane.xlu0 %2370
      %2372 = vadd.xlane.f32.xlu0 %v2000
      %v2373 = vpop.xlane.xlu0 %2372
      %2374 = vadd.xlane.f32.xlu0 %v2001
      %v2375 = vpop.xlane.xlu0 %2374
      %2376 = vadd.xlane.f32.xlu0 %v2002
      %v2377 = vpop.xlane.xlu0 %2376
      %2378 = vadd.xlane.f32.xlu0 %v2003
      %v2379 = vpop.xlane.xlu0 %2378
      %2380 = vadd.xlane.f32.xlu0 %v2004
      %v2381 = vpop.xlane.xlu0 %2380
      %2382 = vadd.xlane.f32.xlu0 %v2005
      %v2383 = vpop.xlane.xlu0 %2382
      %2384 = vadd.xlane.f32.xlu0 %v2006
      %v2385 = vpop.xlane.xlu0 %2384
      %2386 = vadd.xlane.f32.xlu0 %v2007
      %v2387 = vpop.xlane.xlu0 %2386
      %2388 = vadd.xlane.f32.xlu0 %v2008
      %v2389 = vpop.xlane.xlu0 %2388
      %2390 = vadd.xlane.f32.xlu0 %v2009
      %v2391 = vpop.xlane.xlu0 %2390
      %2392 = vadd.xlane.f32.xlu0 %v2010
      %v2393 = vpop.xlane.xlu0 %2392
      %2394 = vadd.xlane.f32.xlu0 %v2011
      %v2395 = vpop.xlane.xlu0 %2394
      %2396 = vadd.xlane.f32.xlu0 %v2012
      %v2397 = vpop.xlane.xlu0 %2396
      %2398 = vadd.xlane.f32.xlu0 %v2013
      %v2399 = vpop.xlane.xlu0 %2398
      %2400 = vadd.xlane.f32.xlu0 %v2014
      %v2401 = vpop.xlane.xlu0 %2400
      %2402 = vadd.xlane.f32.xlu0 %v2015
      %v2403 = vpop.xlane.xlu0 %2402
      %2404 = vadd.xlane.f32.xlu0 %v2016
      %v2405 = vpop.xlane.xlu0 %2404
      %2406 = vadd.xlane.f32.xlu0 %v2017
      %v2407 = vpop.xlane.xlu0 %2406
      %2408 = vadd.xlane.f32.xlu0 %v2018
      %v2409 = vpop.xlane.xlu0 %2408
      %2410 = vadd.xlane.f32.xlu0 %v2019
      %v2411 = vpop.xlane.xlu0 %2410
      %2412 = vadd.xlane.f32.xlu0 %v2020
      %v2413 = vpop.xlane.xlu0 %2412
      %2414 = vadd.xlane.f32.xlu0 %v2021
      %v2415 = vpop.xlane.xlu0 %2414
      %2416 = vadd.xlane.f32.xlu0 %v2022
      %v2417 = vpop.xlane.xlu0 %2416
      %2418 = vadd.xlane.f32.xlu0 %v2023
      %v2419 = vpop.xlane.xlu0 %2418
      %2420 = vadd.xlane.f32.xlu0 %v2024
      %v2421 = vpop.xlane.xlu0 %2420
      %2422 = vadd.xlane.f32.xlu0 %v2025
      %v2423 = vpop.xlane.xlu0 %2422
      %2424 = vadd.xlane.f32.xlu0 %v2026
      %v2425 = vpop.xlane.xlu0 %2424
      %2426 = vadd.xlane.f32.xlu0 %v2027
      %v2427 = vpop.xlane.xlu0 %2426
      %2428 = vadd.xlane.f32.xlu0 %v2028
      %v2429 = vpop.xlane.xlu0 %2428
      %2430 = vadd.xlane.f32.xlu0 %v2029
      %v2431 = vpop.xlane.xlu0 %2430
      %2432 = vadd.xlane.f32.xlu0 %v2030
      %v2433 = vpop.xlane.xlu0 %2432
      %2434 = vadd.xlane.f32.xlu0 %v2031
      %v2435 = vpop.xlane.xlu0 %2434
      %2436 = vadd.xlane.f32.xlu0 %v2032
      %v2437 = vpop.xlane.xlu0 %2436
      %2438 = vadd.xlane.f32.xlu0 %v2033
      %v2439 = vpop.xlane.xlu0 %2438
      %2440 = vadd.xlane.f32.xlu0 %v2034
      %v2441 = vpop.xlane.xlu0 %2440
      %2442 = vadd.xlane.f32.xlu0 %v2035
      %v2443 = vpop.xlane.xlu0 %2442
      %2444 = vadd.xlane.f32.xlu0 %v2036
      %v2445 = vpop.xlane.xlu0 %2444
      %2446 = vadd.xlane.f32.xlu0 %v2037
      %v2447 = vpop.xlane.xlu0 %2446
      %2448 = vadd.xlane.f32.xlu0 %v2038
      %v2449 = vpop.xlane.xlu0 %2448
      %2450 = vadd.xlane.f32.xlu0 %v2039
      %v2451 = vpop.xlane.xlu0 %2450
      %2452 = vadd.xlane.f32.xlu0 %v2040
      %v2453 = vpop.xlane.xlu0 %2452
      %2454 = vadd.xlane.f32.xlu0 %v2041
      %v2455 = vpop.xlane.xlu0 %2454
      %2456 = vadd.xlane.f32.xlu0 %v2042
      %v2457 = vpop.xlane.xlu0 %2456
      %2458 = vadd.xlane.f32.xlu0 %v2043
      %v2459 = vpop.xlane.xlu0 %2458
      %2460 = vadd.xlane.f32.xlu0 %v2044
      %v2461 = vpop.xlane.xlu0 %2460
      %2462 = vadd.xlane.f32.xlu0 %v2045
      %v2463 = vpop.xlane.xlu0 %2462
      %2464 = vadd.xlane.f32.xlu0 %v2046
      %v2465 = vpop.xlane.xlu0 %2464
      %2466 = vadd.xlane.f32.xlu0 %v2047
      %v2467 = vpop.xlane.xlu0 %2466
      %2468 = vadd.xlane.f32.xlu0 %v2048
      %v2469 = vpop.xlane.xlu0 %2468
      %2470 = vadd.xlane.f32.xlu0 %v2049
      %v2471 = vpop.xlane.xlu0 %2470
      %2472 = vadd.xlane.f32.xlu0 %v2050
      %v2473 = vpop.xlane.xlu0 %2472
      %2474 = vadd.xlane.f32.xlu0 %v2051
      %v2475 = vpop.xlane.xlu0 %2474
      %2476 = vadd.xlane.f32.xlu0 %v2052
      %v2477 = vpop.xlane.xlu0 %2476
      %2478 = vadd.xlane.f32.xlu0 %v2053
      %v2479 = vpop.xlane.xlu0 %2478
      %2480 = vadd.xlane.f32.xlu0 %v2054
      %v2481 = vpop.xlane.xlu0 %2480
      %2482 = vadd.xlane.f32.xlu0 %v2055
      %v2483 = vpop.xlane.xlu0 %2482
      %2484 = vadd.xlane.f32.xlu0 %v2056
      %v2485 = vpop.xlane.xlu0 %2484
      %2486 = vadd.xlane.f32.xlu0 %v2057
      %v2487 = vpop.xlane.xlu0 %2486
      %2488 = vadd.xlane.f32.xlu0 %v2058
      %v2489 = vpop.xlane.xlu0 %2488
      %2490 = vadd.xlane.f32.xlu0 %v2059
      %v2491 = vpop.xlane.xlu0 %2490
      %2492 = vadd.xlane.f32.xlu0 %v2060
      %v2493 = vpop.xlane.xlu0 %2492
      %2494 = vadd.xlane.f32.xlu0 %v2061
      %v2495 = vpop.xlane.xlu0 %2494
      %2496 = vadd.xlane.f32.xlu0 %v2062
      %v2497 = vpop.xlane.xlu0 %2496
      %2498 = vadd.xlane.f32.xlu0 %v2063
      %v2499 = vpop.xlane.xlu0 %2498
      %2500 = vadd.xlane.f32.xlu0 %v2064
      %v2501 = vpop.xlane.xlu0 %2500
      %2502 = vadd.xlane.f32.xlu0 %v2065
      %v2503 = vpop.xlane.xlu0 %2502
      %2504 = vadd.xlane.f32.xlu0 %v2066
      %v2505 = vpop.xlane.xlu0 %2504
      %2506 = vadd.xlane.f32.xlu0 %v2067
      %v2507 = vpop.xlane.xlu0 %2506
      %2508 = vadd.xlane.f32.xlu0 %v2068
      %v2509 = vpop.xlane.xlu0 %2508
      %2510 = vadd.xlane.f32.xlu0 %v2069
      %v2511 = vpop.xlane.xlu0 %2510
      %2512 = vadd.xlane.f32.xlu0 %v2070
      %v2513 = vpop.xlane.xlu0 %2512
      %2514 = vadd.xlane.f32.xlu0 %v2071
      %v2515 = vpop.xlane.xlu0 %2514
      %2516 = vadd.xlane.f32.xlu0 %v2072
      %v2517 = vpop.xlane.xlu0 %2516
      %2518 = vadd.xlane.f32.xlu0 %v2073
      %v2519 = vpop.xlane.xlu0 %2518
      %2520 = vadd.xlane.f32.xlu0 %v2074
      %v2521 = vpop.xlane.xlu0 %2520
      %2522 = vadd.xlane.f32.xlu0 %v2075
      %v2523 = vpop.xlane.xlu0 %2522
      %2524 = vadd.xlane.f32.xlu0 %v2076
      %v2525 = vpop.xlane.xlu0 %2524
      %2526 = vadd.xlane.f32.xlu0 %v2077
      %v2527 = vpop.xlane.xlu0 %2526
      %2528 = vadd.xlane.f32.xlu0 %v2078
      %v2529 = vpop.xlane.xlu0 %2528
      %2530 = vadd.xlane.f32.xlu0 %v2079
      %v2531 = vpop.xlane.xlu0 %2530
      %2532 = vadd.xlane.f32.xlu0 %v2080
      %v2533 = vpop.xlane.xlu0 %2532
      %2534 = vadd.xlane.f32.xlu0 %v2081
      %v2535 = vpop.xlane.xlu0 %2534
      %2536 = vadd.xlane.f32.xlu0 %v2082
      %v2537 = vpop.xlane.xlu0 %2536
      %2538 = vadd.xlane.f32.xlu0 %v2083
      %v2539 = vpop.xlane.xlu0 %2538
      %2540 = vadd.xlane.f32.xlu0 %v2084
      %v2541 = vpop.xlane.xlu0 %2540
      %2542 = vadd.xlane.f32.xlu0 %v2085
      %v2543 = vpop.xlane.xlu0 %2542
      %2544 = vadd.xlane.f32.xlu0 %v2086
      %v2545 = vpop.xlane.xlu0 %2544
      %2546 = vadd.xlane.f32.xlu0 %v2087
      %v2547 = vpop.xlane.xlu0 %2546
      %2548 = vadd.xlane.f32.xlu0 %v2088
      %v2549 = vpop.xlane.xlu0 %2548
      %2550 = vadd.xlane.f32.xlu0 %v2089
      %v2551 = vpop.xlane.xlu0 %2550
      %2552 = vadd.xlane.f32.xlu0 %v2090
      %v2553 = vpop.xlane.xlu0 %2552
      %2554 = vadd.xlane.f32.xlu0 %v2091
      %v2555 = vpop.xlane.xlu0 %2554
      %2556 = vadd.xlane.f32.xlu0 %v2092
      %v2557 = vpop.xlane.xlu0 %2556
      %2558 = vadd.xlane.f32.xlu0 %v2093
      %v2559 = vpop.xlane.xlu0 %2558
      %2560 = vadd.xlane.f32.xlu0 %v2094
      %v2561 = vpop.xlane.xlu0 %2560
      %2562 = vadd.xlane.f32.xlu0 %v2095
      %v2563 = vpop.xlane.xlu0 %2562
      %2564 = vadd.xlane.f32.xlu0 %v2096
      %v2565 = vpop.xlane.xlu0 %2564
      %2566 = vadd.xlane.f32.xlu0 %v2097
      %v2567 = vpop.xlane.xlu0 %2566
      %2568 = vadd.xlane.f32.xlu0 %v2098
      %v2569 = vpop.xlane.xlu0 %2568
      %2570 = vadd.xlane.f32.xlu0 %v2099
      %v2571 = vpop.xlane.xlu0 %2570
      %2572 = vadd.xlane.f32.xlu0 %v2100
      %v2573 = vpop.xlane.xlu0 %2572
      %2574 = vadd.xlane.f32.xlu0 %v2101
      %v2575 = vpop.xlane.xlu0 %2574
      %2576 = vadd.xlane.f32.xlu0 %v2102
      %v2577 = vpop.xlane.xlu0 %2576
      %2578 = vadd.xlane.f32.xlu0 %v2103
      %v2579 = vpop.xlane.xlu0 %2578
      %2580 = vadd.xlane.f32.xlu0 %v2104
      %v2581 = vpop.xlane.xlu0 %2580
      %2582 = vadd.xlane.f32.xlu0 %v2105
      %v2583 = vpop.xlane.xlu0 %2582
      %2584 = vadd.xlane.f32.xlu0 %v2106
      %v2585 = vpop.xlane.xlu0 %2584
      %2586 = vadd.xlane.f32.xlu0 %v2107
      %v2587 = vpop.xlane.xlu0 %2586
      %2588 = vadd.xlane.f32.xlu0 %v2108
      %v2589 = vpop.xlane.xlu0 %2588
      %2590 = vadd.xlane.f32.xlu0 %v2109
      %v2591 = vpop.xlane.xlu0 %2590
      %2592 = vadd.xlane.f32.xlu0 %v2110
      %v2593 = vpop.xlane.xlu0 %2592
      %2594 = vadd.xlane.f32.xlu0 %v2111
      %v2595 = vpop.xlane.xlu0 %2594
      %2596 = vadd.xlane.f32.xlu0 %v2112
      %v2597 = vpop.xlane.xlu0 %2596
      %2598 = vadd.xlane.f32.xlu0 %v2113
      %v2599 = vpop.xlane.xlu0 %2598
      %2600 = vadd.xlane.f32.xlu0 %v2114
      %v2601 = vpop.xlane.xlu0 %2600
      %2602 = vadd.xlane.f32.xlu0 %v2115
      %v2603 = vpop.xlane.xlu0 %2602
      %2604 = vadd.xlane.f32.xlu0 %v2116
      %v2605 = vpop.xlane.xlu0 %2604
      %2606 = vadd.xlane.f32.xlu0 %v2117
      %v2607 = vpop.xlane.xlu0 %2606
      %2608 = vadd.xlane.f32.xlu0 %v2118
      %v2609 = vpop.xlane.xlu0 %2608
      %2610 = vadd.xlane.f32.xlu0 %v2119
      %v2611 = vpop.xlane.xlu0 %2610
      %2612 = vadd.xlane.f32.xlu0 %v2120
      %v2613 = vpop.xlane.xlu0 %2612
      %2614 = vadd.xlane.f32.xlu0 %v2121
      %v2615 = vpop.xlane.xlu0 %2614
      %2616 = vadd.xlane.f32.xlu0 %v2122
      %v2617 = vpop.xlane.xlu0 %2616
      %2618 = vadd.xlane.f32.xlu0 %v2123
      %v2619 = vpop.xlane.xlu0 %2618
      %2620 = vadd.xlane.f32.xlu0 %v2124
      %v2621 = vpop.xlane.xlu0 %2620
      %2622 = vadd.xlane.f32.xlu0 %v2125
      %v2623 = vpop.xlane.xlu0 %2622
      %2624 = vadd.xlane.f32.xlu0 %v2126
      %v2625 = vpop.xlane.xlu0 %2624
      %2626 = vadd.xlane.f32.xlu0 %v2127
      %v2627 = vpop.xlane.xlu0 %2626
      %2628 = vadd.xlane.f32.xlu0 %v2128
      %v2629 = vpop.xlane.xlu0 %2628
      %2630 = vadd.xlane.f32.xlu0 %v2129
      %v2631 = vpop.xlane.xlu0 %2630
      %2632 = vadd.xlane.f32.xlu0 %v2130
      %v2633 = vpop.xlane.xlu0 %2632
      %2634 = vadd.xlane.f32.xlu0 %v2131
      %v2635 = vpop.xlane.xlu0 %2634
      %2636 = vadd.xlane.f32.xlu0 %v2132
      %v2637 = vpop.xlane.xlu0 %2636
      %2638 = vadd.xlane.f32.xlu0 %v2133
      %v2639 = vpop.xlane.xlu0 %2638
      %2640 = vadd.xlane.f32.xlu0 %v2134
      %v2641 = vpop.xlane.xlu0 %2640
      %2642 = vadd.xlane.f32.xlu0 %v2135
      %v2643 = vpop.xlane.xlu0 %2642
      %2644 = vadd.xlane.f32.xlu0 %v2136
      %v2645 = vpop.xlane.xlu0 %2644
      %2646 = vadd.xlane.f32.xlu0 %v2137
      %v2647 = vpop.xlane.xlu0 %2646
      %2648 = vadd.xlane.f32.xlu0 %v2138
      %v2649 = vpop.xlane.xlu0 %2648
      %2650 = vadd.xlane.f32.xlu0 %v2139
      %v2651 = vpop.xlane.xlu0 %2650
      %v2652 = vmul.f32 %v2141, 0.00390625
      %v2653 = vmul.f32 %v2143, 0.00390625
      %v2654 = vmul.f32 %v2145, 0.00390625
      %v2655 = vmul.f32 %v2147, 0.00390625
      %v2656 = vmul.f32 %v2149, 0.00390625
      %v2657 = vmul.f32 %v2151, 0.00390625
      %v2658 = vmul.f32 %v2153, 0.00390625
      %v2659 = vmul.f32 %v2155, 0.00390625
      %v2660 = vmul.f32 %v2157, 0.00390625
      %v2661 = vmul.f32 %v2159, 0.00390625
      %v2662 = vmul.f32 %v2161, 0.00390625
      %v2663 = vmul.f32 %v2163, 0.00390625
      %v2664 = vmul.f32 %v2165, 0.00390625
      %v2665 = vmul.f32 %v2167, 0.00390625
      %v2666 = vmul.f32 %v2169, 0.00390625
      %v2667 = vmul.f32 %v2171, 0.00390625
      %v2668 = vmul.f32 %v2173, 0.00390625
      %v2669 = vmul.f32 %v2175, 0.00390625
      %v2670 = vmul.f32 %v2177, 0.00390625
      %v2671 = vmul.f32 %v2179, 0.00390625
      %v2672 = vmul.f32 %v2181, 0.00390625
      %v2673 = vmul.f32 %v2183, 0.00390625
      %v2674 = vmul.f32 %v2185, 0.00390625
      %v2675 = vmul.f32 %v2187, 0.00390625
      %v2676 = vmul.f32 %v2189, 0.00390625
      %v2677 = vmul.f32 %v2191, 0.00390625
      %v2678 = vmul.f32 %v2193, 0.00390625
      %v2679 = vmul.f32 %v2195, 0.00390625
      %v2680 = vmul.f32 %v2197, 0.00390625
      %v2681 = vmul.f32 %v2199, 0.00390625
      %v2682 = vmul.f32 %v2201, 0.00390625
      %v2683 = vmul.f32 %v2203, 0.00390625
      %v2684 = vmul.f32 %v2205, 0.00390625
      %v2685 = vmul.f32 %v2207, 0.00390625
      %v2686 = vmul.f32 %v2209, 0.00390625
      %v2687 = vmul.f32 %v2211, 0.00390625
      %v2688 = vmul.f32 %v2213, 0.00390625
      %v2689 = vmul.f32 %v2215, 0.00390625
      %v2690 = vmul.f32 %v2217, 0.00390625
      %v2691 = vmul.f32 %v2219, 0.00390625
      %v2692 = vmul.f32 %v2221, 0.00390625
      %v2693 = vmul.f32 %v2223, 0.00390625
      %v2694 = vmul.f32 %v2225, 0.00390625
      %v2695 = vmul.f32 %v2227, 0.00390625
      %v2696 = vmul.f32 %v2229, 0.00390625
      %v2697 = vmul.f32 %v2231, 0.00390625
      %v2698 = vmul.f32 %v2233, 0.00390625
      %v2699 = vmul.f32 %v2235, 0.00390625
      %v2700 = vmul.f32 %v2237, 0.00390625
      %v2701 = vmul.f32 %v2239, 0.00390625
      %v2702 = vmul.f32 %v2241, 0.00390625
      %v2703 = vmul.f32 %v2243, 0.00390625
      %v2704 = vmul.f32 %v2245, 0.00390625
      %v2705 = vmul.f32 %v2247, 0.00390625
      %v2706 = vmul.f32 %v2249, 0.00390625
      %v2707 = vmul.f32 %v2251, 0.00390625
      %v2708 = vmul.f32 %v2253, 0.00390625
      %v2709 = vmul.f32 %v2255, 0.00390625
      %v2710 = vmul.f32 %v2257, 0.00390625
      %v2711 = vmul.f32 %v2259, 0.00390625
      %v2712 = vmul.f32 %v2261, 0.00390625
      %v2713 = vmul.f32 %v2263, 0.00390625
      %v2714 = vmul.f32 %v2265, 0.00390625
      %v2715 = vmul.f32 %v2267, 0.00390625
      %v2716 = vmul.f32 %v2269, 0.00390625
      %v2717 = vmul.f32 %v2271, 0.00390625
      %v2718 = vmul.f32 %v2273, 0.00390625
      %v2719 = vmul.f32 %v2275, 0.00390625
      %v2720 = vmul.f32 %v2277, 0.00390625
      %v2721 = vmul.f32 %v2279, 0.00390625
      %v2722 = vmul.f32 %v2281, 0.00390625
      %v2723 = vmul.f32 %v2283, 0.00390625
      %v2724 = vmul.f32 %v2285, 0.00390625
      %v2725 = vmul.f32 %v2287, 0.00390625
      %v2726 = vmul.f32 %v2289, 0.00390625
      %v2727 = vmul.f32 %v2291, 0.00390625
      %v2728 = vmul.f32 %v2293, 0.00390625
      %v2729 = vmul.f32 %v2295, 0.00390625
      %v2730 = vmul.f32 %v2297, 0.00390625
      %v2731 = vmul.f32 %v2299, 0.00390625
      %v2732 = vmul.f32 %v2301, 0.00390625
      %v2733 = vmul.f32 %v2303, 0.00390625
      %v2734 = vmul.f32 %v2305, 0.00390625
      %v2735 = vmul.f32 %v2307, 0.00390625
      %v2736 = vmul.f32 %v2309, 0.00390625
      %v2737 = vmul.f32 %v2311, 0.00390625
      %v2738 = vmul.f32 %v2313, 0.00390625
      %v2739 = vmul.f32 %v2315, 0.00390625
      %v2740 = vmul.f32 %v2317, 0.00390625
      %v2741 = vmul.f32 %v2319, 0.00390625
      %v2742 = vmul.f32 %v2321, 0.00390625
      %v2743 = vmul.f32 %v2323, 0.00390625
      %v2744 = vmul.f32 %v2325, 0.00390625
      %v2745 = vmul.f32 %v2327, 0.00390625
      %v2746 = vmul.f32 %v2329, 0.00390625
      %v2747 = vmul.f32 %v2331, 0.00390625
      %v2748 = vmul.f32 %v2333, 0.00390625
      %v2749 = vmul.f32 %v2335, 0.00390625
      %v2750 = vmul.f32 %v2337, 0.00390625
      %v2751 = vmul.f32 %v2339, 0.00390625
      %v2752 = vmul.f32 %v2341, 0.00390625
      %v2753 = vmul.f32 %v2343, 0.00390625
      %v2754 = vmul.f32 %v2345, 0.00390625
      %v2755 = vmul.f32 %v2347, 0.00390625
      %v2756 = vmul.f32 %v2349, 0.00390625
      %v2757 = vmul.f32 %v2351, 0.00390625
      %v2758 = vmul.f32 %v2353, 0.00390625
      %v2759 = vmul.f32 %v2355, 0.00390625
      %v2760 = vmul.f32 %v2357, 0.00390625
      %v2761 = vmul.f32 %v2359, 0.00390625
      %v2762 = vmul.f32 %v2361, 0.00390625
      %v2763 = vmul.f32 %v2363, 0.00390625
      %v2764 = vmul.f32 %v2365, 0.00390625
      %v2765 = vmul.f32 %v2367, 0.00390625
      %v2766 = vmul.f32 %v2369, 0.00390625
      %v2767 = vmul.f32 %v2371, 0.00390625
      %v2768 = vmul.f32 %v2373, 0.00390625
      %v2769 = vmul.f32 %v2375, 0.00390625
      %v2770 = vmul.f32 %v2377, 0.00390625
      %v2771 = vmul.f32 %v2379, 0.00390625
      %v2772 = vmul.f32 %v2381, 0.00390625
      %v2773 = vmul.f32 %v2383, 0.00390625
      %v2774 = vmul.f32 %v2385, 0.00390625
      %v2775 = vmul.f32 %v2387, 0.00390625
      %v2776 = vmul.f32 %v2389, 0.00390625
      %v2777 = vmul.f32 %v2391, 0.00390625
      %v2778 = vmul.f32 %v2393, 0.00390625
      %v2779 = vmul.f32 %v2395, 0.00390625
      %v2780 = vmul.f32 %v2397, 0.00390625
      %v2781 = vmul.f32 %v2399, 0.00390625
      %v2782 = vmul.f32 %v2401, 0.00390625
      %v2783 = vmul.f32 %v2403, 0.00390625
      %v2784 = vmul.f32 %v2405, 0.00390625
      %v2785 = vmul.f32 %v2407, 0.00390625
      %v2786 = vmul.f32 %v2409, 0.00390625
      %v2787 = vmul.f32 %v2411, 0.00390625
      %v2788 = vmul.f32 %v2413, 0.00390625
      %v2789 = vmul.f32 %v2415, 0.00390625
      %v2790 = vmul.f32 %v2417, 0.00390625
      %v2791 = vmul.f32 %v2419, 0.00390625
      %v2792 = vmul.f32 %v2421, 0.00390625
      %v2793 = vmul.f32 %v2423, 0.00390625
      %v2794 = vmul.f32 %v2425, 0.00390625
      %v2795 = vmul.f32 %v2427, 0.00390625
      %v2796 = vmul.f32 %v2429, 0.00390625
      %v2797 = vmul.f32 %v2431, 0.00390625
      %v2798 = vmul.f32 %v2433, 0.00390625
      %v2799 = vmul.f32 %v2435, 0.00390625
      %v2800 = vmul.f32 %v2437, 0.00390625
      %v2801 = vmul.f32 %v2439, 0.00390625
      %v2802 = vmul.f32 %v2441, 0.00390625
      %v2803 = vmul.f32 %v2443, 0.00390625
      %v2804 = vmul.f32 %v2445, 0.00390625
      %v2805 = vmul.f32 %v2447, 0.00390625
      %v2806 = vmul.f32 %v2449, 0.00390625
      %v2807 = vmul.f32 %v2451, 0.00390625
      %v2808 = vmul.f32 %v2453, 0.00390625
      %v2809 = vmul.f32 %v2455, 0.00390625
      %v2810 = vmul.f32 %v2457, 0.00390625
      %v2811 = vmul.f32 %v2459, 0.00390625
      %v2812 = vmul.f32 %v2461, 0.00390625
      %v2813 = vmul.f32 %v2463, 0.00390625
      %v2814 = vmul.f32 %v2465, 0.00390625
      %v2815 = vmul.f32 %v2467, 0.00390625
      %v2816 = vmul.f32 %v2469, 0.00390625
      %v2817 = vmul.f32 %v2471, 0.00390625
      %v2818 = vmul.f32 %v2473, 0.00390625
      %v2819 = vmul.f32 %v2475, 0.00390625
      %v2820 = vmul.f32 %v2477, 0.00390625
      %v2821 = vmul.f32 %v2479, 0.00390625
      %v2822 = vmul.f32 %v2481, 0.00390625
      %v2823 = vmul.f32 %v2483, 0.00390625
      %v2824 = vmul.f32 %v2485, 0.00390625
      %v2825 = vmul.f32 %v2487, 0.00390625
      %v2826 = vmul.f32 %v2489, 0.00390625
      %v2827 = vmul.f32 %v2491, 0.00390625
      %v2828 = vmul.f32 %v2493, 0.00390625
      %v2829 = vmul.f32 %v2495, 0.00390625
      %v2830 = vmul.f32 %v2497, 0.00390625
      %v2831 = vmul.f32 %v2499, 0.00390625
      %v2832 = vmul.f32 %v2501, 0.00390625
      %v2833 = vmul.f32 %v2503, 0.00390625
      %v2834 = vmul.f32 %v2505, 0.00390625
      %v2835 = vmul.f32 %v2507, 0.00390625
      %v2836 = vmul.f32 %v2509, 0.00390625
      %v2837 = vmul.f32 %v2511, 0.00390625
      %v2838 = vmul.f32 %v2513, 0.00390625
      %v2839 = vmul.f32 %v2515, 0.00390625
      %v2840 = vmul.f32 %v2517, 0.00390625
      %v2841 = vmul.f32 %v2519, 0.00390625
      %v2842 = vmul.f32 %v2521, 0.00390625
      %v2843 = vmul.f32 %v2523, 0.00390625
      %v2844 = vmul.f32 %v2525, 0.00390625
      %v2845 = vmul.f32 %v2527, 0.00390625
      %v2846 = vmul.f32 %v2529, 0.00390625
      %v2847 = vmul.f32 %v2531, 0.00390625
      %v2848 = vmul.f32 %v2533, 0.00390625
      %v2849 = vmul.f32 %v2535, 0.00390625
      %v2850 = vmul.f32 %v2537, 0.00390625
      %v2851 = vmul.f32 %v2539, 0.00390625
      %v2852 = vmul.f32 %v2541, 0.00390625
      %v2853 = vmul.f32 %v2543, 0.00390625
      %v2854 = vmul.f32 %v2545, 0.00390625
      %v2855 = vmul.f32 %v2547, 0.00390625
      %v2856 = vmul.f32 %v2549, 0.00390625
      %v2857 = vmul.f32 %v2551, 0.00390625
      %v2858 = vmul.f32 %v2553, 0.00390625
      %v2859 = vmul.f32 %v2555, 0.00390625
      %v2860 = vmul.f32 %v2557, 0.00390625
      %v2861 = vmul.f32 %v2559, 0.00390625
      %v2862 = vmul.f32 %v2561, 0.00390625
      %v2863 = vmul.f32 %v2563, 0.00390625
      %v2864 = vmul.f32 %v2565, 0.00390625
      %v2865 = vmul.f32 %v2567, 0.00390625
      %v2866 = vmul.f32 %v2569, 0.00390625
      %v2867 = vmul.f32 %v2571, 0.00390625
      %v2868 = vmul.f32 %v2573, 0.00390625
      %v2869 = vmul.f32 %v2575, 0.00390625
      %v2870 = vmul.f32 %v2577, 0.00390625
      %v2871 = vmul.f32 %v2579, 0.00390625
      %v2872 = vmul.f32 %v2581, 0.00390625
      %v2873 = vmul.f32 %v2583, 0.00390625
      %v2874 = vmul.f32 %v2585, 0.00390625
      %v2875 = vmul.f32 %v2587, 0.00390625
      %v2876 = vmul.f32 %v2589, 0.00390625
      %v2877 = vmul.f32 %v2591, 0.00390625
      %v2878 = vmul.f32 %v2593, 0.00390625
      %v2879 = vmul.f32 %v2595, 0.00390625
      %v2880 = vmul.f32 %v2597, 0.00390625
      %v2881 = vmul.f32 %v2599, 0.00390625
      %v2882 = vmul.f32 %v2601, 0.00390625
      %v2883 = vmul.f32 %v2603, 0.00390625
      %v2884 = vmul.f32 %v2605, 0.00390625
      %v2885 = vmul.f32 %v2607, 0.00390625
      %v2886 = vmul.f32 %v2609, 0.00390625
      %v2887 = vmul.f32 %v2611, 0.00390625
      %v2888 = vmul.f32 %v2613, 0.00390625
      %v2889 = vmul.f32 %v2615, 0.00390625
      %v2890 = vmul.f32 %v2617, 0.00390625
      %v2891 = vmul.f32 %v2619, 0.00390625
      %v2892 = vmul.f32 %v2621, 0.00390625
      %v2893 = vmul.f32 %v2623, 0.00390625
      %v2894 = vmul.f32 %v2625, 0.00390625
      %v2895 = vmul.f32 %v2627, 0.00390625
      %v2896 = vmul.f32 %v2629, 0.00390625
      %v2897 = vmul.f32 %v2631, 0.00390625
      %v2898 = vmul.f32 %v2633, 0.00390625
      %v2899 = vmul.f32 %v2635, 0.00390625
      %v2900 = vmul.f32 %v2637, 0.00390625
      %v2901 = vmul.f32 %v2639, 0.00390625
      %v2902 = vmul.f32 %v2641, 0.00390625
      %v2903 = vmul.f32 %v2643, 0.00390625
      %v2904 = vmul.f32 %v2645, 0.00390625
      %v2905 = vmul.f32 %v2647, 0.00390625
      %v2906 = vmul.f32 %v2649, 0.00390625
      %v2907 = vmul.f32 %v2651, 0.00390625
      %v2908 = vld [vmem:[#allocation6] sm:$0xff]
      %v2909 = vld [vmem:[#allocation6 + $0x8] sm:$0xff]
      %v2910 = vld [vmem:[#allocation6 + $0x10] sm:$0xff]
      %v2911 = vld [vmem:[#allocation6 + $0x18] sm:$0xff]
      %v2912 = vld [vmem:[#allocation6 + $0x20] sm:$0xff]
      %v2913 = vld [vmem:[#allocation6 + $0x28] sm:$0xff]
      %v2914 = vld [vmem:[#allocation6 + $0x30] sm:$0xff]
      %v2915 = vld [vmem:[#allocation6 + $0x38] sm:$0xff]
      %v2916 = vld [vmem:[#allocation6 + $0x40] sm:$0xff]
      %v2917 = vld [vmem:[#allocation6 + $0x48] sm:$0xff]
      %v2918 = vld [vmem:[#allocation6 + $0x50] sm:$0xff]
      %v2919 = vld [vmem:[#allocation6 + $0x58] sm:$0xff]
      %v2920 = vld [vmem:[#allocation6 + $0x60] sm:$0xff]
      %v2921 = vld [vmem:[#allocation6 + $0x68] sm:$0xff]
      %v2922 = vld [vmem:[#allocation6 + $0x70] sm:$0xff]
      %v2923 = vld [vmem:[#allocation6 + $0x78] sm:$0xff]
      %v2924 = vld [vmem:[#allocation6 + $0x80] sm:$0xff]
      %v2925 = vld [vmem:[#allocation6 + $0x88] sm:$0xff]
      %v2926 = vld [vmem:[#allocation6 + $0x90] sm:$0xff]
      %v2927 = vld [vmem:[#allocation6 + $0x98] sm:$0xff]
      %v2928 = vld [vmem:[#allocation6 + $0xa0] sm:$0xff]
      %v2929 = vld [vmem:[#allocation6 + $0xa8] sm:$0xff]
      %v2930 = vld [vmem:[#allocation6 + $0xb0] sm:$0xff]
      %v2931 = vld [vmem:[#allocation6 + $0xb8] sm:$0xff]
      %v2932 = vld [vmem:[#allocation6 + $0xc0] sm:$0xff]
      %v2933 = vld [vmem:[#allocation6 + $0xc8] sm:$0xff]
      %v2934 = vld [vmem:[#allocation6 + $0xd0] sm:$0xff]
      %v2935 = vld [vmem:[#allocation6 + $0xd8] sm:$0xff]
      %v2936 = vld [vmem:[#allocation6 + $0xe0] sm:$0xff]
      %v2937 = vld [vmem:[#allocation6 + $0xe8] sm:$0xff]
      %v2938 = vld [vmem:[#allocation6 + $0xf0] sm:$0xff]
      %v2939 = vld [vmem:[#allocation6 + $0xf8] sm:$0xff]
      %v2940 = vld [vmem:[#allocation8] sm:$0x1]
      %v2942 = vlaneseq
      %v2943 = vshrl.u32 %v2942, 7
      %v2944 = vsub.s32 0, %v2943
      %v2945 = vrot.slane %v2940, %v2944
      %v3203 = vlaneseq
      %v3204 = vand.u32 %v3203, 127
      %v3205 = vlaneseq
      %v3206 = vshrl.u32 %v3205, 7
      %v3207 = vsub.s32 %v3204, %v3206
      %v3208 = vrot.slane %v2652, %v3207
      %v3209 = vadd.s32 %v3204, 4294967288
      %v3210 = vlaneseq
      %v3211 = vshrl.u32 %v3210, 7
      %v3212 = vsub.s32 %v3209, %v3211
      %v3213 = vrot.slane %v2653, %v3212
      %vm3214 = vcmask 130112
      %v3215 = vsel %vm3214, %v3213, %v3208
      %v3216 = vadd.s32 %v3204, 4294967280
      %v3217 = vlaneseq
      %v3218 = vshrl.u32 %v3217, 7
      %v3219 = vsub.s32 %v3216, %v3218
      %v3220 = vrot.slane %v2654, %v3219
      %vm3221 = vcmask 195712
      %v3222 = vsel %vm3221, %v3220, %v3215
      %v3223 = vadd.s32 %v3204, 4294967272
      %v3224 = vlaneseq
      %v3225 = vshrl.u32 %v3224, 7
      %v3226 = vsub.s32 %v3223, %v3225
      %v3227 = vrot.slane %v2655, %v3226
      %vm3228 = vcmask 261312
      %v3229 = vsel %vm3228, %v3227, %v3222
      %v3230 = vadd.s32 %v3204, 4294967264
      %v3231 = vlaneseq
      %v3232 = vshrl.u32 %v3231, 7
      %v3233 = vsub.s32 %v3230, %v3232
      %v3234 = vrot.slane %v2656, %v3233
      %vm3235 = vcmask 326912
      %v3236 = vsel %vm3235, %v3234, %v3229
      %v3237 = vadd.s32 %v3204, 4294967256
      %v3238 = vlaneseq
      %v3239 = vshrl.u32 %v3238, 7
      %v3240 = vsub.s32 %v3237, %v3239
      %v3241 = vrot.slane %v2657, %v3240
      %vm3242 = vcmask 392512
      %v3243 = vsel %vm3242, %v3241, %v3236
      %v3244 = vadd.s32 %v3204, 4294967248
      %v3245 = vlaneseq
      %v3246 = vshrl.u32 %v3245, 7
      %v3247 = vsub.s32 %v3244, %v3246
      %v3248 = vrot.slane %v2658, %v3247
      %vm3249 = vcmask 458112
      %v3250 = vsel %vm3249, %v3248, %v3243
      %v3251 = vadd.s32 %v3204, 4294967240
      %v3252 = vlaneseq
      %v3253 = vshrl.u32 %v3252, 7
      %v3254 = vsub.s32 %v3251, %v3253
      %v3255 = vrot.slane %v2659, %v3254
      %vm3256 = vcmask 523712
      %v3257 = vsel %vm3256, %v3255, %v3250
      %v3258 = vadd.s32 %v3204, 4294967232
      %v3259 = vlaneseq
      %v3260 = vshrl.u32 %v3259, 7
      %v3261 = vsub.s32 %v3258, %v3260
      %v3262 = vrot.slane %v2660, %v3261
      %vm3263 = vcmask 589312
      %v3264 = vsel %vm3263, %v3262, %v3257
      %v3265 = vadd.s32 %v3204, 4294967224
      %v3266 = vlaneseq
      %v3267 = vshrl.u32 %v3266, 7
      %v3268 = vsub.s32 %v3265, %v3267
      %v3269 = vrot.slane %v2661, %v3268
      %vm3270 = vcmask 654912
      %v3271 = vsel %vm3270, %v3269, %v3264
      %v3272 = vadd.s32 %v3204, 4294967216
      %v3273 = vlaneseq
      %v3274 = vshrl.u32 %v3273, 7
      %v3275 = vsub.s32 %v3272, %v3274
      %v3276 = vrot.slane %v2662, %v3275
      %vm3277 = vcmask 720512
      %v3278 = vsel %vm3277, %v3276, %v3271
      %v3279 = vadd.s32 %v3204, 4294967208
      %v3280 = vlaneseq
      %v3281 = vshrl.u32 %v3280, 7
      %v3282 = vsub.s32 %v3279, %v3281
      %v3283 = vrot.slane %v2663, %v3282
      %vm3284 = vcmask 786112
      %v3285 = vsel %vm3284, %v3283, %v3278
      %v3286 = vadd.s32 %v3204, 4294967200
      %v3287 = vlaneseq
      %v3288 = vshrl.u32 %v3287, 7
      %v3289 = vsub.s32 %v3286, %v3288
      %v3290 = vrot.slane %v2664, %v3289
      %vm3291 = vcmask 851712
      %v3292 = vsel %vm3291, %v3290, %v3285
      %v3293 = vadd.s32 %v3204, 4294967192
      %v3294 = vlaneseq
      %v3295 = vshrl.u32 %v3294, 7
      %v3296 = vsub.s32 %v3293, %v3295
      %v3297 = vrot.slane %v2665, %v3296
      %vm3298 = vcmask 917312
      %v3299 = vsel %vm3298, %v3297, %v3292
      %v3300 = vadd.s32 %v3204, 4294967184
      %v3301 = vlaneseq
      %v3302 = vshrl.u32 %v3301, 7
      %v3303 = vsub.s32 %v3300, %v3302
      %v3304 = vrot.slane %v2666, %v3303
      %vm3305 = vcmask 982912
      %v3306 = vsel %vm3305, %v3304, %v3299
      %v3307 = vadd.s32 %v3204, 4294967176
      %v3308 = vlaneseq
      %v3309 = vshrl.u32 %v3308, 7
      %v3310 = vsub.s32 %v3307, %v3309
      %v3311 = vrot.slane %v2667, %v3310
      %vm3312 = vcmask 1048512
      %v3313 = vsel %vm3312, %v3311, %v3306
      %v3314 = vlaneseq
      %v3315 = vshrl.u32 %v3314, 7
      %v3316 = vsub.s32 %v3204, %v3315
      %v3317 = vrot.slane %v2668, %v3316
      %v3318 = vlaneseq
      %v3319 = vshrl.u32 %v3318, 7
      %v3320 = vsub.s32 %v3209, %v3319
      %v3321 = vrot.slane %v2669, %v3320
      %v3322 = vsel %vm3214, %v3321, %v3317
      %v3323 = vlaneseq
      %v3324 = vshrl.u32 %v3323, 7
      %v3325 = vsub.s32 %v3216, %v3324
      %v3326 = vrot.slane %v2670, %v3325
      %v3327 = vsel %vm3221, %v3326, %v3322
      %v3328 = vlaneseq
      %v3329 = vshrl.u32 %v3328, 7
      %v3330 = vsub.s32 %v3223, %v3329
      %v3331 = vrot.slane %v2671, %v3330
      %v3332 = vsel %vm3228, %v3331, %v3327
      %v3333 = vlaneseq
      %v3334 = vshrl.u32 %v3333, 7
      %v3335 = vsub.s32 %v3230, %v3334
      %v3336 = vrot.slane %v2672, %v3335
      %v3337 = vsel %vm3235, %v3336, %v3332
      %v3338 = vlaneseq
      %v3339 = vshrl.u32 %v3338, 7
      %v3340 = vsub.s32 %v3237, %v3339
      %v3341 = vrot.slane %v2673, %v3340
      %v3342 = vsel %vm3242, %v3341, %v3337
      %v3343 = vlaneseq
      %v3344 = vshrl.u32 %v3343, 7
      %v3345 = vsub.s32 %v3244, %v3344
      %v3346 = vrot.slane %v2674, %v3345
      %v3347 = vsel %vm3249, %v3346, %v3342
      %v3348 = vlaneseq
      %v3349 = vshrl.u32 %v3348, 7
      %v3350 = vsub.s32 %v3251, %v3349
      %v3351 = vrot.slane %v2675, %v3350
      %v3352 = vsel %vm3256, %v3351, %v3347
      %v3353 = vlaneseq
      %v3354 = vshrl.u32 %v3353, 7
      %v3355 = vsub.s32 %v3258, %v3354
      %v3356 = vrot.slane %v2676, %v3355
      %v3357 = vsel %vm3263, %v3356, %v3352
      %v3358 = vlaneseq
      %v3359 = vshrl.u32 %v3358, 7
      %v3360 = vsub.s32 %v3265, %v3359
      %v3361 = vrot.slane %v2677, %v3360
      %v3362 = vsel %vm3270, %v3361, %v3357
      %v3363 = vlaneseq
      %v3364 = vshrl.u32 %v3363, 7
      %v3365 = vsub.s32 %v3272, %v3364
      %v3366 = vrot.slane %v2678, %v3365
      %v3367 = vsel %vm3277, %v3366, %v3362
      %v3368 = vlaneseq
      %v3369 = vshrl.u32 %v3368, 7
      %v3370 = vsub.s32 %v3279, %v3369
      %v3371 = vrot.slane %v2679, %v3370
      %v3372 = vsel %vm3284, %v3371, %v3367
      %v3373 = vlaneseq
      %v3374 = vshrl.u32 %v3373, 7
      %v3375 = vsub.s32 %v3286, %v3374
      %v3376 = vrot.slane %v2680, %v3375
      %v3377 = vsel %vm3291, %v3376, %v3372
      %v3378 = vlaneseq
      %v3379 = vshrl.u32 %v3378, 7
      %v3380 = vsub.s32 %v3293, %v3379
      %v3381 = vrot.slane %v2681, %v3380
      %v3382 = vsel %vm3298, %v3381, %v3377
      %v3383 = vlaneseq
      %v3384 = vshrl.u32 %v3383, 7
      %v3385 = vsub.s32 %v3300, %v3384
      %v3386 = vrot.slane %v2682, %v3385
      %v3387 = vsel %vm3305, %v3386, %v3382
      %v3388 = vlaneseq
      %v3389 = vshrl.u32 %v3388, 7
      %v3390 = vsub.s32 %v3307, %v3389
      %v3391 = vrot.slane %v2683, %v3390
      %v3392 = vsel %vm3312, %v3391, %v3387
      %v3393 = vlaneseq
      %v3394 = vshrl.u32 %v3393, 7
      %v3395 = vsub.s32 %v3204, %v3394
      %v3396 = vrot.slane %v2684, %v3395
      %v3397 = vlaneseq
      %v3398 = vshrl.u32 %v3397, 7
      %v3399 = vsub.s32 %v3209, %v3398
      %v3400 = vrot.slane %v2685, %v3399
      %v3401 = vsel %vm3214, %v3400, %v3396
      %v3402 = vlaneseq
      %v3403 = vshrl.u32 %v3402, 7
      %v3404 = vsub.s32 %v3216, %v3403
      %v3405 = vrot.slane %v2686, %v3404
      %v3406 = vsel %vm3221, %v3405, %v3401
      %v3407 = vlaneseq
      %v3408 = vshrl.u32 %v3407, 7
      %v3409 = vsub.s32 %v3223, %v3408
      %v3410 = vrot.slane %v2687, %v3409
      %v3411 = vsel %vm3228, %v3410, %v3406
      %v3412 = vlaneseq
      %v3413 = vshrl.u32 %v3412, 7
      %v3414 = vsub.s32 %v3230, %v3413
      %v3415 = vrot.slane %v2688, %v3414
      %v3416 = vsel %vm3235, %v3415, %v3411
      %v3417 = vlaneseq
      %v3418 = vshrl.u32 %v3417, 7
      %v3419 = vsub.s32 %v3237, %v3418
      %v3420 = vrot.slane %v2689, %v3419
      %v3421 = vsel %vm3242, %v3420, %v3416
      %v3422 = vlaneseq
      %v3423 = vshrl.u32 %v3422, 7
      %v3424 = vsub.s32 %v3244, %v3423
      %v3425 = vrot.slane %v2690, %v3424
      %v3426 = vsel %vm3249, %v3425, %v3421
      %v3427 = vlaneseq
      %v3428 = vshrl.u32 %v3427, 7
      %v3429 = vsub.s32 %v3251, %v3428
      %v3430 = vrot.slane %v2691, %v3429
      %v3431 = vsel %vm3256, %v3430, %v3426
      %v3432 = vlaneseq
      %v3433 = vshrl.u32 %v3432, 7
      %v3434 = vsub.s32 %v3258, %v3433
      %v3435 = vrot.slane %v2692, %v3434
      %v3436 = vsel %vm3263, %v3435, %v3431
      %v3437 = vlaneseq
      %v3438 = vshrl.u32 %v3437, 7
      %v3439 = vsub.s32 %v3265, %v3438
      %v3440 = vrot.slane %v2693, %v3439
      %v3441 = vsel %vm3270, %v3440, %v3436
      %v3442 = vlaneseq
      %v3443 = vshrl.u32 %v3442, 7
      %v3444 = vsub.s32 %v3272, %v3443
      %v3445 = vrot.slane %v2694, %v3444
      %v3446 = vsel %vm3277, %v3445, %v3441
      %v3447 = vlaneseq
      %v3448 = vshrl.u32 %v3447, 7
      %v3449 = vsub.s32 %v3279, %v3448
      %v3450 = vrot.slane %v2695, %v3449
      %v3451 = vsel %vm3284, %v3450, %v3446
      %v3452 = vlaneseq
      %v3453 = vshrl.u32 %v3452, 7
      %v3454 = vsub.s32 %v3286, %v3453
      %v3455 = vrot.slane %v2696, %v3454
      %v3456 = vsel %vm3291, %v3455, %v3451
      %v3457 = vlaneseq
      %v3458 = vshrl.u32 %v3457, 7
      %v3459 = vsub.s32 %v3293, %v3458
      %v3460 = vrot.slane %v2697, %v3459
      %v3461 = vsel %vm3298, %v3460, %v3456
      %v3462 = vlaneseq
      %v3463 = vshrl.u32 %v3462, 7
      %v3464 = vsub.s32 %v3300, %v3463
      %v3465 = vrot.slane %v2698, %v3464
      %v3466 = vsel %vm3305, %v3465, %v3461
      %v3467 = vlaneseq
      %v3468 = vshrl.u32 %v3467, 7
      %v3469 = vsub.s32 %v3307, %v3468
      %v3470 = vrot.slane %v2699, %v3469
      %v3471 = vsel %vm3312, %v3470, %v3466
      %v3472 = vlaneseq
      %v3473 = vshrl.u32 %v3472, 7
      %v3474 = vsub.s32 %v3204, %v3473
      %v3475 = vrot.slane %v2700, %v3474
      %v3476 = vlaneseq
      %v3477 = vshrl.u32 %v3476, 7
      %v3478 = vsub.s32 %v3209, %v3477
      %v3479 = vrot.slane %v2701, %v3478
      %v3480 = vsel %vm3214, %v3479, %v3475
      %v3481 = vlaneseq
      %v3482 = vshrl.u32 %v3481, 7
      %v3483 = vsub.s32 %v3216, %v3482
      %v3484 = vrot.slane %v2702, %v3483
      %v3485 = vsel %vm3221, %v3484, %v3480
      %v3486 = vlaneseq
      %v3487 = vshrl.u32 %v3486, 7
      %v3488 = vsub.s32 %v3223, %v3487
      %v3489 = vrot.slane %v2703, %v3488
      %v3490 = vsel %vm3228, %v3489, %v3485
      %v3491 = vlaneseq
      %v3492 = vshrl.u32 %v3491, 7
      %v3493 = vsub.s32 %v3230, %v3492
      %v3494 = vrot.slane %v2704, %v3493
      %v3495 = vsel %vm3235, %v3494, %v3490
      %v3496 = vlaneseq
      %v3497 = vshrl.u32 %v3496, 7
      %v3498 = vsub.s32 %v3237, %v3497
      %v3499 = vrot.slane %v2705, %v3498
      %v3500 = vsel %vm3242, %v3499, %v3495
      %v3501 = vlaneseq
      %v3502 = vshrl.u32 %v3501, 7
      %v3503 = vsub.s32 %v3244, %v3502
      %v3504 = vrot.slane %v2706, %v3503
      %v3505 = vsel %vm3249, %v3504, %v3500
      %v3506 = vlaneseq
      %v3507 = vshrl.u32 %v3506, 7
      %v3508 = vsub.s32 %v3251, %v3507
      %v3509 = vrot.slane %v2707, %v3508
      %v3510 = vsel %vm3256, %v3509, %v3505
      %v3511 = vlaneseq
      %v3512 = vshrl.u32 %v3511, 7
      %v3513 = vsub.s32 %v3258, %v3512
      %v3514 = vrot.slane %v2708, %v3513
      %v3515 = vsel %vm3263, %v3514, %v3510
      %v3516 = vlaneseq
      %v3517 = vshrl.u32 %v3516, 7
      %v3518 = vsub.s32 %v3265, %v3517
      %v3519 = vrot.slane %v2709, %v3518
      %v3520 = vsel %vm3270, %v3519, %v3515
      %v3521 = vlaneseq
      %v3522 = vshrl.u32 %v3521, 7
      %v3523 = vsub.s32 %v3272, %v3522
      %v3524 = vrot.slane %v2710, %v3523
      %v3525 = vsel %vm3277, %v3524, %v3520
      %v3526 = vlaneseq
      %v3527 = vshrl.u32 %v3526, 7
      %v3528 = vsub.s32 %v3279, %v3527
      %v3529 = vrot.slane %v2711, %v3528
      %v3530 = vsel %vm3284, %v3529, %v3525
      %v3531 = vlaneseq
      %v3532 = vshrl.u32 %v3531, 7
      %v3533 = vsub.s32 %v3286, %v3532
      %v3534 = vrot.slane %v2712, %v3533
      %v3535 = vsel %vm3291, %v3534, %v3530
      %v3536 = vlaneseq
      %v3537 = vshrl.u32 %v3536, 7
      %v3538 = vsub.s32 %v3293, %v3537
      %v3539 = vrot.slane %v2713, %v3538
      %v3540 = vsel %vm3298, %v3539, %v3535
      %v3541 = vlaneseq
      %v3542 = vshrl.u32 %v3541, 7
      %v3543 = vsub.s32 %v3300, %v3542
      %v3544 = vrot.slane %v2714, %v3543
      %v3545 = vsel %vm3305, %v3544, %v3540
      %v3546 = vlaneseq
      %v3547 = vshrl.u32 %v3546, 7
      %v3548 = vsub.s32 %v3307, %v3547
      %v3549 = vrot.slane %v2715, %v3548
      %v3550 = vsel %vm3312, %v3549, %v3545
      %v3551 = vlaneseq
      %v3552 = vshrl.u32 %v3551, 7
      %v3553 = vsub.s32 %v3204, %v3552
      %v3554 = vrot.slane %v2716, %v3553
      %v3555 = vlaneseq
      %v3556 = vshrl.u32 %v3555, 7
      %v3557 = vsub.s32 %v3209, %v3556
      %v3558 = vrot.slane %v2717, %v3557
      %v3559 = vsel %vm3214, %v3558, %v3554
      %v3560 = vlaneseq
      %v3561 = vshrl.u32 %v3560, 7
      %v3562 = vsub.s32 %v3216, %v3561
      %v3563 = vrot.slane %v2718, %v3562
      %v3564 = vsel %vm3221, %v3563, %v3559
      %v3565 = vlaneseq
      %v3566 = vshrl.u32 %v3565, 7
      %v3567 = vsub.s32 %v3223, %v3566
      %v3568 = vrot.slane %v2719, %v3567
      %v3569 = vsel %vm3228, %v3568, %v3564
      %v3570 = vlaneseq
      %v3571 = vshrl.u32 %v3570, 7
      %v3572 = vsub.s32 %v3230, %v3571
      %v3573 = vrot.slane %v2720, %v3572
      %v3574 = vsel %vm3235, %v3573, %v3569
      %v3575 = vlaneseq
      %v3576 = vshrl.u32 %v3575, 7
      %v3577 = vsub.s32 %v3237, %v3576
      %v3578 = vrot.slane %v2721, %v3577
      %v3579 = vsel %vm3242, %v3578, %v3574
      %v3580 = vlaneseq
      %v3581 = vshrl.u32 %v3580, 7
      %v3582 = vsub.s32 %v3244, %v3581
      %v3583 = vrot.slane %v2722, %v3582
      %v3584 = vsel %vm3249, %v3583, %v3579
      %v3585 = vlaneseq
      %v3586 = vshrl.u32 %v3585, 7
      %v3587 = vsub.s32 %v3251, %v3586
      %v3588 = vrot.slane %v2723, %v3587
      %v3589 = vsel %vm3256, %v3588, %v3584
      %v3590 = vlaneseq
      %v3591 = vshrl.u32 %v3590, 7
      %v3592 = vsub.s32 %v3258, %v3591
      %v3593 = vrot.slane %v2724, %v3592
      %v3594 = vsel %vm3263, %v3593, %v3589
      %v3595 = vlaneseq
      %v3596 = vshrl.u32 %v3595, 7
      %v3597 = vsub.s32 %v3265, %v3596
      %v3598 = vrot.slane %v2725, %v3597
      %v3599 = vsel %vm3270, %v3598, %v3594
      %v3600 = vlaneseq
      %v3601 = vshrl.u32 %v3600, 7
      %v3602 = vsub.s32 %v3272, %v3601
      %v3603 = vrot.slane %v2726, %v3602
      %v3604 = vsel %vm3277, %v3603, %v3599
      %v3605 = vlaneseq
      %v3606 = vshrl.u32 %v3605, 7
      %v3607 = vsub.s32 %v3279, %v3606
      %v3608 = vrot.slane %v2727, %v3607
      %v3609 = vsel %vm3284, %v3608, %v3604
      %v3610 = vlaneseq
      %v3611 = vshrl.u32 %v3610, 7
      %v3612 = vsub.s32 %v3286, %v3611
      %v3613 = vrot.slane %v2728, %v3612
      %v3614 = vsel %vm3291, %v3613, %v3609
      %v3615 = vlaneseq
      %v3616 = vshrl.u32 %v3615, 7
      %v3617 = vsub.s32 %v3293, %v3616
      %v3618 = vrot.slane %v2729, %v3617
      %v3619 = vsel %vm3298, %v3618, %v3614
      %v3620 = vlaneseq
      %v3621 = vshrl.u32 %v3620, 7
      %v3622 = vsub.s32 %v3300, %v3621
      %v3623 = vrot.slane %v2730, %v3622
      %v3624 = vsel %vm3305, %v3623, %v3619
      %v3625 = vlaneseq
      %v3626 = vshrl.u32 %v3625, 7
      %v3627 = vsub.s32 %v3307, %v3626
      %v3628 = vrot.slane %v2731, %v3627
      %v3629 = vsel %vm3312, %v3628, %v3624
      %v3630 = vlaneseq
      %v3631 = vshrl.u32 %v3630, 7
      %v3632 = vsub.s32 %v3204, %v3631
      %v3633 = vrot.slane %v2732, %v3632
      %v3634 = vlaneseq
      %v3635 = vshrl.u32 %v3634, 7
      %v3636 = vsub.s32 %v3209, %v3635
      %v3637 = vrot.slane %v2733, %v3636
      %v3638 = vsel %vm3214, %v3637, %v3633
      %v3639 = vlaneseq
      %v3640 = vshrl.u32 %v3639, 7
      %v3641 = vsub.s32 %v3216, %v3640
      %v3642 = vrot.slane %v2734, %v3641
      %v3643 = vsel %vm3221, %v3642, %v3638
      %v3644 = vlaneseq
      %v3645 = vshrl.u32 %v3644, 7
      %v3646 = vsub.s32 %v3223, %v3645
      %v3647 = vrot.slane %v2735, %v3646
      %v3648 = vsel %vm3228, %v3647, %v3643
      %v3649 = vlaneseq
      %v3650 = vshrl.u32 %v3649, 7
      %v3651 = vsub.s32 %v3230, %v3650
      %v3652 = vrot.slane %v2736, %v3651
      %v3653 = vsel %vm3235, %v3652, %v3648
      %v3654 = vlaneseq
      %v3655 = vshrl.u32 %v3654, 7
      %v3656 = vsub.s32 %v3237, %v3655
      %v3657 = vrot.slane %v2737, %v3656
      %v3658 = vsel %vm3242, %v3657, %v3653
      %v3659 = vlaneseq
      %v3660 = vshrl.u32 %v3659, 7
      %v3661 = vsub.s32 %v3244, %v3660
      %v3662 = vrot.slane %v2738, %v3661
      %v3663 = vsel %vm3249, %v3662, %v3658
      %v3664 = vlaneseq
      %v3665 = vshrl.u32 %v3664, 7
      %v3666 = vsub.s32 %v3251, %v3665
      %v3667 = vrot.slane %v2739, %v3666
      %v3668 = vsel %vm3256, %v3667, %v3663
      %v3669 = vlaneseq
      %v3670 = vshrl.u32 %v3669, 7
      %v3671 = vsub.s32 %v3258, %v3670
      %v3672 = vrot.slane %v2740, %v3671
      %v3673 = vsel %vm3263, %v3672, %v3668
      %v3674 = vlaneseq
      %v3675 = vshrl.u32 %v3674, 7
      %v3676 = vsub.s32 %v3265, %v3675
      %v3677 = vrot.slane %v2741, %v3676
      %v3678 = vsel %vm3270, %v3677, %v3673
      %v3679 = vlaneseq
      %v3680 = vshrl.u32 %v3679, 7
      %v3681 = vsub.s32 %v3272, %v3680
      %v3682 = vrot.slane %v2742, %v3681
      %v3683 = vsel %vm3277, %v3682, %v3678
      %v3684 = vlaneseq
      %v3685 = vshrl.u32 %v3684, 7
      %v3686 = vsub.s32 %v3279, %v3685
      %v3687 = vrot.slane %v2743, %v3686
      %v3688 = vsel %vm3284, %v3687, %v3683
      %v3689 = vlaneseq
      %v3690 = vshrl.u32 %v3689, 7
      %v3691 = vsub.s32 %v3286, %v3690
      %v3692 = vrot.slane %v2744, %v3691
      %v3693 = vsel %vm3291, %v3692, %v3688
      %v3694 = vlaneseq
      %v3695 = vshrl.u32 %v3694, 7
      %v3696 = vsub.s32 %v3293, %v3695
      %v3697 = vrot.slane %v2745, %v3696
      %v3698 = vsel %vm3298, %v3697, %v3693
      %v3699 = vlaneseq
      %v3700 = vshrl.u32 %v3699, 7
      %v3701 = vsub.s32 %v3300, %v3700
      %v3702 = vrot.slane %v2746, %v3701
      %v3703 = vsel %vm3305, %v3702, %v3698
      %v3704 = vlaneseq
      %v3705 = vshrl.u32 %v3704, 7
      %v3706 = vsub.s32 %v3307, %v3705
      %v3707 = vrot.slane %v2747, %v3706
      %v3708 = vsel %vm3312, %v3707, %v3703
      %v3709 = vlaneseq
      %v3710 = vshrl.u32 %v3709, 7
      %v3711 = vsub.s32 %v3204, %v3710
      %v3712 = vrot.slane %v2748, %v3711
      %v3713 = vlaneseq
      %v3714 = vshrl.u32 %v3713, 7
      %v3715 = vsub.s32 %v3209, %v3714
      %v3716 = vrot.slane %v2749, %v3715
      %v3717 = vsel %vm3214, %v3716, %v3712
      %v3718 = vlaneseq
      %v3719 = vshrl.u32 %v3718, 7
      %v3720 = vsub.s32 %v3216, %v3719
      %v3721 = vrot.slane %v2750, %v3720
      %v3722 = vsel %vm3221, %v3721, %v3717
      %v3723 = vlaneseq
      %v3724 = vshrl.u32 %v3723, 7
      %v3725 = vsub.s32 %v3223, %v3724
      %v3726 = vrot.slane %v2751, %v3725
      %v3727 = vsel %vm3228, %v3726, %v3722
      %v3728 = vlaneseq
      %v3729 = vshrl.u32 %v3728, 7
      %v3730 = vsub.s32 %v3230, %v3729
      %v3731 = vrot.slane %v2752, %v3730
      %v3732 = vsel %vm3235, %v3731, %v3727
      %v3733 = vlaneseq
      %v3734 = vshrl.u32 %v3733, 7
      %v3735 = vsub.s32 %v3237, %v3734
      %v3736 = vrot.slane %v2753, %v3735
      %v3737 = vsel %vm3242, %v3736, %v3732
      %v3738 = vlaneseq
      %v3739 = vshrl.u32 %v3738, 7
      %v3740 = vsub.s32 %v3244, %v3739
      %v3741 = vrot.slane %v2754, %v3740
      %v3742 = vsel %vm3249, %v3741, %v3737
      %v3743 = vlaneseq
      %v3744 = vshrl.u32 %v3743, 7
      %v3745 = vsub.s32 %v3251, %v3744
      %v3746 = vrot.slane %v2755, %v3745
      %v3747 = vsel %vm3256, %v3746, %v3742
      %v3748 = vlaneseq
      %v3749 = vshrl.u32 %v3748, 7
      %v3750 = vsub.s32 %v3258, %v3749
      %v3751 = vrot.slane %v2756, %v3750
      %v3752 = vsel %vm3263, %v3751, %v3747
      %v3753 = vlaneseq
      %v3754 = vshrl.u32 %v3753, 7
      %v3755 = vsub.s32 %v3265, %v3754
      %v3756 = vrot.slane %v2757, %v3755
      %v3757 = vsel %vm3270, %v3756, %v3752
      %v3758 = vlaneseq
      %v3759 = vshrl.u32 %v3758, 7
      %v3760 = vsub.s32 %v3272, %v3759
      %v3761 = vrot.slane %v2758, %v3760
      %v3762 = vsel %vm3277, %v3761, %v3757
      %v3763 = vlaneseq
      %v3764 = vshrl.u32 %v3763, 7
      %v3765 = vsub.s32 %v3279, %v3764
      %v3766 = vrot.slane %v2759, %v3765
      %v3767 = vsel %vm3284, %v3766, %v3762
      %v3768 = vlaneseq
      %v3769 = vshrl.u32 %v3768, 7
      %v3770 = vsub.s32 %v3286, %v3769
      %v3771 = vrot.slane %v2760, %v3770
      %v3772 = vsel %vm3291, %v3771, %v3767
      %v3773 = vlaneseq
      %v3774 = vshrl.u32 %v3773, 7
      %v3775 = vsub.s32 %v3293, %v3774
      %v3776 = vrot.slane %v2761, %v3775
      %v3777 = vsel %vm3298, %v3776, %v3772
      %v3778 = vlaneseq
      %v3779 = vshrl.u32 %v3778, 7
      %v3780 = vsub.s32 %v3300, %v3779
      %v3781 = vrot.slane %v2762, %v3780
      %v3782 = vsel %vm3305, %v3781, %v3777
      %v3783 = vlaneseq
      %v3784 = vshrl.u32 %v3783, 7
      %v3785 = vsub.s32 %v3307, %v3784
      %v3786 = vrot.slane %v2763, %v3785
      %v3787 = vsel %vm3312, %v3786, %v3782
      %v3788 = vlaneseq
      %v3789 = vshrl.u32 %v3788, 7
      %v3790 = vsub.s32 %v3204, %v3789
      %v3791 = vrot.slane %v2764, %v3790
      %v3792 = vlaneseq
      %v3793 = vshrl.u32 %v3792, 7
      %v3794 = vsub.s32 %v3209, %v3793
      %v3795 = vrot.slane %v2765, %v3794
      %v3796 = vsel %vm3214, %v3795, %v3791
      %v3797 = vlaneseq
      %v3798 = vshrl.u32 %v3797, 7
      %v3799 = vsub.s32 %v3216, %v3798
      %v3800 = vrot.slane %v2766, %v3799
      %v3801 = vsel %vm3221, %v3800, %v3796
      %v3802 = vlaneseq
      %v3803 = vshrl.u32 %v3802, 7
      %v3804 = vsub.s32 %v3223, %v3803
      %v3805 = vrot.slane %v2767, %v3804
      %v3806 = vsel %vm3228, %v3805, %v3801
      %v3807 = vlaneseq
      %v3808 = vshrl.u32 %v3807, 7
      %v3809 = vsub.s32 %v3230, %v3808
      %v3810 = vrot.slane %v2768, %v3809
      %v3811 = vsel %vm3235, %v3810, %v3806
      %v3812 = vlaneseq
      %v3813 = vshrl.u32 %v3812, 7
      %v3814 = vsub.s32 %v3237, %v3813
      %v3815 = vrot.slane %v2769, %v3814
      %v3816 = vsel %vm3242, %v3815, %v3811
      %v3817 = vlaneseq
      %v3818 = vshrl.u32 %v3817, 7
      %v3819 = vsub.s32 %v3244, %v3818
      %v3820 = vrot.slane %v2770, %v3819
      %v3821 = vsel %vm3249, %v3820, %v3816
      %v3822 = vlaneseq
      %v3823 = vshrl.u32 %v3822, 7
      %v3824 = vsub.s32 %v3251, %v3823
      %v3825 = vrot.slane %v2771, %v3824
      %v3826 = vsel %vm3256, %v3825, %v3821
      %v3827 = vlaneseq
      %v3828 = vshrl.u32 %v3827, 7
      %v3829 = vsub.s32 %v3258, %v3828
      %v3830 = vrot.slane %v2772, %v3829
      %v3831 = vsel %vm3263, %v3830, %v3826
      %v3832 = vlaneseq
      %v3833 = vshrl.u32 %v3832, 7
      %v3834 = vsub.s32 %v3265, %v3833
      %v3835 = vrot.slane %v2773, %v3834
      %v3836 = vsel %vm3270, %v3835, %v3831
      %v3837 = vlaneseq
      %v3838 = vshrl.u32 %v3837, 7
      %v3839 = vsub.s32 %v3272, %v3838
      %v3840 = vrot.slane %v2774, %v3839
      %v3841 = vsel %vm3277, %v3840, %v3836
      %v3842 = vlaneseq
      %v3843 = vshrl.u32 %v3842, 7
      %v3844 = vsub.s32 %v3279, %v3843
      %v3845 = vrot.slane %v2775, %v3844
      %v3846 = vsel %vm3284, %v3845, %v3841
      %v3847 = vlaneseq
      %v3848 = vshrl.u32 %v3847, 7
      %v3849 = vsub.s32 %v3286, %v3848
      %v3850 = vrot.slane %v2776, %v3849
      %v3851 = vsel %vm3291, %v3850, %v3846
      %v3852 = vlaneseq
      %v3853 = vshrl.u32 %v3852, 7
      %v3854 = vsub.s32 %v3293, %v3853
      %v3855 = vrot.slane %v2777, %v3854
      %v3856 = vsel %vm3298, %v3855, %v3851
      %v3857 = vlaneseq
      %v3858 = vshrl.u32 %v3857, 7
      %v3859 = vsub.s32 %v3300, %v3858
      %v3860 = vrot.slane %v2778, %v3859
      %v3861 = vsel %vm3305, %v3860, %v3856
      %v3862 = vlaneseq
      %v3863 = vshrl.u32 %v3862, 7
      %v3864 = vsub.s32 %v3307, %v3863
      %v3865 = vrot.slane %v2779, %v3864
      %v3866 = vsel %vm3312, %v3865, %v3861
      %v3867 = vlaneseq
      %v3868 = vshrl.u32 %v3867, 7
      %v3869 = vsub.s32 %v3204, %v3868
      %v3870 = vrot.slane %v2780, %v3869
      %v3871 = vlaneseq
      %v3872 = vshrl.u32 %v3871, 7
      %v3873 = vsub.s32 %v3209, %v3872
      %v3874 = vrot.slane %v2781, %v3873
      %v3875 = vsel %vm3214, %v3874, %v3870
      %v3876 = vlaneseq
      %v3877 = vshrl.u32 %v3876, 7
      %v3878 = vsub.s32 %v3216, %v3877
      %v3879 = vrot.slane %v2782, %v3878
      %v3880 = vsel %vm3221, %v3879, %v3875
      %v3881 = vlaneseq
      %v3882 = vshrl.u32 %v3881, 7
      %v3883 = vsub.s32 %v3223, %v3882
      %v3884 = vrot.slane %v2783, %v3883
      %v3885 = vsel %vm3228, %v3884, %v3880
      %v3886 = vlaneseq
      %v3887 = vshrl.u32 %v3886, 7
      %v3888 = vsub.s32 %v3230, %v3887
      %v3889 = vrot.slane %v2784, %v3888
      %v3890 = vsel %vm3235, %v3889, %v3885
      %v3891 = vlaneseq
      %v3892 = vshrl.u32 %v3891, 7
      %v3893 = vsub.s32 %v3237, %v3892
      %v3894 = vrot.slane %v2785, %v3893
      %v3895 = vsel %vm3242, %v3894, %v3890
      %v3896 = vlaneseq
      %v3897 = vshrl.u32 %v3896, 7
      %v3898 = vsub.s32 %v3244, %v3897
      %v3899 = vrot.slane %v2786, %v3898
      %v3900 = vsel %vm3249, %v3899, %v3895
      %v3901 = vlaneseq
      %v3902 = vshrl.u32 %v3901, 7
      %v3903 = vsub.s32 %v3251, %v3902
      %v3904 = vrot.slane %v2787, %v3903
      %v3905 = vsel %vm3256, %v3904, %v3900
      %v3906 = vlaneseq
      %v3907 = vshrl.u32 %v3906, 7
      %v3908 = vsub.s32 %v3258, %v3907
      %v3909 = vrot.slane %v2788, %v3908
      %v3910 = vsel %vm3263, %v3909, %v3905
      %v3911 = vlaneseq
      %v3912 = vshrl.u32 %v3911, 7
      %v3913 = vsub.s32 %v3265, %v3912
      %v3914 = vrot.slane %v2789, %v3913
      %v3915 = vsel %vm3270, %v3914, %v3910
      %v3916 = vlaneseq
      %v3917 = vshrl.u32 %v3916, 7
      %v3918 = vsub.s32 %v3272, %v3917
      %v3919 = vrot.slane %v2790, %v3918
      %v3920 = vsel %vm3277, %v3919, %v3915
      %v3921 = vlaneseq
      %v3922 = vshrl.u32 %v3921, 7
      %v3923 = vsub.s32 %v3279, %v3922
      %v3924 = vrot.slane %v2791, %v3923
      %v3925 = vsel %vm3284, %v3924, %v3920
      %v3926 = vlaneseq
      %v3927 = vshrl.u32 %v3926, 7
      %v3928 = vsub.s32 %v3286, %v3927
      %v3929 = vrot.slane %v2792, %v3928
      %v3930 = vsel %vm3291, %v3929, %v3925
      %v3931 = vlaneseq
      %v3932 = vshrl.u32 %v3931, 7
      %v3933 = vsub.s32 %v3293, %v3932
      %v3934 = vrot.slane %v2793, %v3933
      %v3935 = vsel %vm3298, %v3934, %v3930
      %v3936 = vlaneseq
      %v3937 = vshrl.u32 %v3936, 7
      %v3938 = vsub.s32 %v3300, %v3937
      %v3939 = vrot.slane %v2794, %v3938
      %v3940 = vsel %vm3305, %v3939, %v3935
      %v3941 = vlaneseq
      %v3942 = vshrl.u32 %v3941, 7
      %v3943 = vsub.s32 %v3307, %v3942
      %v3944 = vrot.slane %v2795, %v3943
      %v3945 = vsel %vm3312, %v3944, %v3940
      %v3946 = vlaneseq
      %v3947 = vshrl.u32 %v3946, 7
      %v3948 = vsub.s32 %v3204, %v3947
      %v3949 = vrot.slane %v2796, %v3948
      %v3950 = vlaneseq
      %v3951 = vshrl.u32 %v3950, 7
      %v3952 = vsub.s32 %v3209, %v3951
      %v3953 = vrot.slane %v2797, %v3952
      %v3954 = vsel %vm3214, %v3953, %v3949
      %v3955 = vlaneseq
      %v3956 = vshrl.u32 %v3955, 7
      %v3957 = vsub.s32 %v3216, %v3956
      %v3958 = vrot.slane %v2798, %v3957
      %v3959 = vsel %vm3221, %v3958, %v3954
      %v3960 = vlaneseq
      %v3961 = vshrl.u32 %v3960, 7
      %v3962 = vsub.s32 %v3223, %v3961
      %v3963 = vrot.slane %v2799, %v3962
      %v3964 = vsel %vm3228, %v3963, %v3959
      %v3965 = vlaneseq
      %v3966 = vshrl.u32 %v3965, 7
      %v3967 = vsub.s32 %v3230, %v3966
      %v3968 = vrot.slane %v2800, %v3967
      %v3969 = vsel %vm3235, %v3968, %v3964
      %v3970 = vlaneseq
      %v3971 = vshrl.u32 %v3970, 7
      %v3972 = vsub.s32 %v3237, %v3971
      %v3973 = vrot.slane %v2801, %v3972
      %v3974 = vsel %vm3242, %v3973, %v3969
      %v3975 = vlaneseq
      %v3976 = vshrl.u32 %v3975, 7
      %v3977 = vsub.s32 %v3244, %v3976
      %v3978 = vrot.slane %v2802, %v3977
      %v3979 = vsel %vm3249, %v3978, %v3974
      %v3980 = vlaneseq
      %v3981 = vshrl.u32 %v3980, 7
      %v3982 = vsub.s32 %v3251, %v3981
      %v3983 = vrot.slane %v2803, %v3982
      %v3984 = vsel %vm3256, %v3983, %v3979
      %v3985 = vlaneseq
      %v3986 = vshrl.u32 %v3985, 7
      %v3987 = vsub.s32 %v3258, %v3986
      %v3988 = vrot.slane %v2804, %v3987
      %v3989 = vsel %vm3263, %v3988, %v3984
      %v3990 = vlaneseq
      %v3991 = vshrl.u32 %v3990, 7
      %v3992 = vsub.s32 %v3265, %v3991
      %v3993 = vrot.slane %v2805, %v3992
      %v3994 = vsel %vm3270, %v3993, %v3989
      %v3995 = vlaneseq
      %v3996 = vshrl.u32 %v3995, 7
      %v3997 = vsub.s32 %v3272, %v3996
      %v3998 = vrot.slane %v2806, %v3997
      %v3999 = vsel %vm3277, %v3998, %v3994
      %v4000 = vlaneseq
      %v4001 = vshrl.u32 %v4000, 7
      %v4002 = vsub.s32 %v3279, %v4001
      %v4003 = vrot.slane %v2807, %v4002
      %v4004 = vsel %vm3284, %v4003, %v3999
      %v4005 = vlaneseq
      %v4006 = vshrl.u32 %v4005, 7
      %v4007 = vsub.s32 %v3286, %v4006
      %v4008 = vrot.slane %v2808, %v4007
      %v4009 = vsel %vm3291, %v4008, %v4004
      %v4010 = vlaneseq
      %v4011 = vshrl.u32 %v4010, 7
      %v4012 = vsub.s32 %v3293, %v4011
      %v4013 = vrot.slane %v2809, %v4012
      %v4014 = vsel %vm3298, %v4013, %v4009
      %v4015 = vlaneseq
      %v4016 = vshrl.u32 %v4015, 7
      %v4017 = vsub.s32 %v3300, %v4016
      %v4018 = vrot.slane %v2810, %v4017
      %v4019 = vsel %vm3305, %v4018, %v4014
      %v4020 = vlaneseq
      %v4021 = vshrl.u32 %v4020, 7
      %v4022 = vsub.s32 %v3307, %v4021
      %v4023 = vrot.slane %v2811, %v4022
      %v4024 = vsel %vm3312, %v4023, %v4019
      %v4025 = vlaneseq
      %v4026 = vshrl.u32 %v4025, 7
      %v4027 = vsub.s32 %v3204, %v4026
      %v4028 = vrot.slane %v2812, %v4027
      %v4029 = vlaneseq
      %v4030 = vshrl.u32 %v4029, 7
      %v4031 = vsub.s32 %v3209, %v4030
      %v4032 = vrot.slane %v2813, %v4031
      %v4033 = vsel %vm3214, %v4032, %v4028
      %v4034 = vlaneseq
      %v4035 = vshrl.u32 %v4034, 7
      %v4036 = vsub.s32 %v3216, %v4035
      %v4037 = vrot.slane %v2814, %v4036
      %v4038 = vsel %vm3221, %v4037, %v4033
      %v4039 = vlaneseq
      %v4040 = vshrl.u32 %v4039, 7
      %v4041 = vsub.s32 %v3223, %v4040
      %v4042 = vrot.slane %v2815, %v4041
      %v4043 = vsel %vm3228, %v4042, %v4038
      %v4044 = vlaneseq
      %v4045 = vshrl.u32 %v4044, 7
      %v4046 = vsub.s32 %v3230, %v4045
      %v4047 = vrot.slane %v2816, %v4046
      %v4048 = vsel %vm3235, %v4047, %v4043
      %v4049 = vlaneseq
      %v4050 = vshrl.u32 %v4049, 7
      %v4051 = vsub.s32 %v3237, %v4050
      %v4052 = vrot.slane %v2817, %v4051
      %v4053 = vsel %vm3242, %v4052, %v4048
      %v4054 = vlaneseq
      %v4055 = vshrl.u32 %v4054, 7
      %v4056 = vsub.s32 %v3244, %v4055
      %v4057 = vrot.slane %v2818, %v4056
      %v4058 = vsel %vm3249, %v4057, %v4053
      %v4059 = vlaneseq
      %v4060 = vshrl.u32 %v4059, 7
      %v4061 = vsub.s32 %v3251, %v4060
      %v4062 = vrot.slane %v2819, %v4061
      %v4063 = vsel %vm3256, %v4062, %v4058
      %v4064 = vlaneseq
      %v4065 = vshrl.u32 %v4064, 7
      %v4066 = vsub.s32 %v3258, %v4065
      %v4067 = vrot.slane %v2820, %v4066
      %v4068 = vsel %vm3263, %v4067, %v4063
      %v4069 = vlaneseq
      %v4070 = vshrl.u32 %v4069, 7
      %v4071 = vsub.s32 %v3265, %v4070
      %v4072 = vrot.slane %v2821, %v4071
      %v4073 = vsel %vm3270, %v4072, %v4068
      %v4074 = vlaneseq
      %v4075 = vshrl.u32 %v4074, 7
      %v4076 = vsub.s32 %v3272, %v4075
      %v4077 = vrot.slane %v2822, %v4076
      %v4078 = vsel %vm3277, %v4077, %v4073
      %v4079 = vlaneseq
      %v4080 = vshrl.u32 %v4079, 7
      %v4081 = vsub.s32 %v3279, %v4080
      %v4082 = vrot.slane %v2823, %v4081
      %v4083 = vsel %vm3284, %v4082, %v4078
      %v4084 = vlaneseq
      %v4085 = vshrl.u32 %v4084, 7
      %v4086 = vsub.s32 %v3286, %v4085
      %v4087 = vrot.slane %v2824, %v4086
      %v4088 = vsel %vm3291, %v4087, %v4083
      %v4089 = vlaneseq
      %v4090 = vshrl.u32 %v4089, 7
      %v4091 = vsub.s32 %v3293, %v4090
      %v4092 = vrot.slane %v2825, %v4091
      %v4093 = vsel %vm3298, %v4092, %v4088
      %v4094 = vlaneseq
      %v4095 = vshrl.u32 %v4094, 7
      %v4096 = vsub.s32 %v3300, %v4095
      %v4097 = vrot.slane %v2826, %v4096
      %v4098 = vsel %vm3305, %v4097, %v4093
      %v4099 = vlaneseq
      %v4100 = vshrl.u32 %v4099, 7
      %v4101 = vsub.s32 %v3307, %v4100
      %v4102 = vrot.slane %v2827, %v4101
      %v4103 = vsel %vm3312, %v4102, %v4098
      %v4104 = vlaneseq
      %v4105 = vshrl.u32 %v4104, 7
      %v4106 = vsub.s32 %v3204, %v4105
      %v4107 = vrot.slane %v2828, %v4106
      %v4108 = vlaneseq
      %v4109 = vshrl.u32 %v4108, 7
      %v4110 = vsub.s32 %v3209, %v4109
      %v4111 = vrot.slane %v2829, %v4110
      %v4112 = vsel %vm3214, %v4111, %v4107
      %v4113 = vlaneseq
      %v4114 = vshrl.u32 %v4113, 7
      %v4115 = vsub.s32 %v3216, %v4114
      %v4116 = vrot.slane %v2830, %v4115
      %v4117 = vsel %vm3221, %v4116, %v4112
      %v4118 = vlaneseq
      %v4119 = vshrl.u32 %v4118, 7
      %v4120 = vsub.s32 %v3223, %v4119
      %v4121 = vrot.slane %v2831, %v4120
      %v4122 = vsel %vm3228, %v4121, %v4117
      %v4123 = vlaneseq
      %v4124 = vshrl.u32 %v4123, 7
      %v4125 = vsub.s32 %v3230, %v4124
      %v4126 = vrot.slane %v2832, %v4125
      %v4127 = vsel %vm3235, %v4126, %v4122
      %v4128 = vlaneseq
      %v4129 = vshrl.u32 %v4128, 7
      %v4130 = vsub.s32 %v3237, %v4129
      %v4131 = vrot.slane %v2833, %v4130
      %v4132 = vsel %vm3242, %v4131, %v4127
      %v4133 = vlaneseq
      %v4134 = vshrl.u32 %v4133, 7
      %v4135 = vsub.s32 %v3244, %v4134
      %v4136 = vrot.slane %v2834, %v4135
      %v4137 = vsel %vm3249, %v4136, %v4132
      %v4138 = vlaneseq
      %v4139 = vshrl.u32 %v4138, 7
      %v4140 = vsub.s32 %v3251, %v4139
      %v4141 = vrot.slane %v2835, %v4140
      %v4142 = vsel %vm3256, %v4141, %v4137
      %v4143 = vlaneseq
      %v4144 = vshrl.u32 %v4143, 7
      %v4145 = vsub.s32 %v3258, %v4144
      %v4146 = vrot.slane %v2836, %v4145
      %v4147 = vsel %vm3263, %v4146, %v4142
      %v4148 = vlaneseq
      %v4149 = vshrl.u32 %v4148, 7
      %v4150 = vsub.s32 %v3265, %v4149
      %v4151 = vrot.slane %v2837, %v4150
      %v4152 = vsel %vm3270, %v4151, %v4147
      %v4153 = vlaneseq
      %v4154 = vshrl.u32 %v4153, 7
      %v4155 = vsub.s32 %v3272, %v4154
      %v4156 = vrot.slane %v2838, %v4155
      %v4157 = vsel %vm3277, %v4156, %v4152
      %v4158 = vlaneseq
      %v4159 = vshrl.u32 %v4158, 7
      %v4160 = vsub.s32 %v3279, %v4159
      %v4161 = vrot.slane %v2839, %v4160
      %v4162 = vsel %vm3284, %v4161, %v4157
      %v4163 = vlaneseq
      %v4164 = vshrl.u32 %v4163, 7
      %v4165 = vsub.s32 %v3286, %v4164
      %v4166 = vrot.slane %v2840, %v4165
      %v4167 = vsel %vm3291, %v4166, %v4162
      %v4168 = vlaneseq
      %v4169 = vshrl.u32 %v4168, 7
      %v4170 = vsub.s32 %v3293, %v4169
      %v4171 = vrot.slane %v2841, %v4170
      %v4172 = vsel %vm3298, %v4171, %v4167
      %v4173 = vlaneseq
      %v4174 = vshrl.u32 %v4173, 7
      %v4175 = vsub.s32 %v3300, %v4174
      %v4176 = vrot.slane %v2842, %v4175
      %v4177 = vsel %vm3305, %v4176, %v4172
      %v4178 = vlaneseq
      %v4179 = vshrl.u32 %v4178, 7
      %v4180 = vsub.s32 %v3307, %v4179
      %v4181 = vrot.slane %v2843, %v4180
      %v4182 = vsel %vm3312, %v4181, %v4177
      %v4183 = vlaneseq
      %v4184 = vshrl.u32 %v4183, 7
      %v4185 = vsub.s32 %v3204, %v4184
      %v4186 = vrot.slane %v2844, %v4185
      %v4187 = vlaneseq
      %v4188 = vshrl.u32 %v4187, 7
      %v4189 = vsub.s32 %v3209, %v4188
      %v4190 = vrot.slane %v2845, %v4189
      %v4191 = vsel %vm3214, %v4190, %v4186
      %v4192 = vlaneseq
      %v4193 = vshrl.u32 %v4192, 7
      %v4194 = vsub.s32 %v3216, %v4193
      %v4195 = vrot.slane %v2846, %v4194
      %v4196 = vsel %vm3221, %v4195, %v4191
      %v4197 = vlaneseq
      %v4198 = vshrl.u32 %v4197, 7
      %v4199 = vsub.s32 %v3223, %v4198
      %v4200 = vrot.slane %v2847, %v4199
      %v4201 = vsel %vm3228, %v4200, %v4196
      %v4202 = vlaneseq
      %v4203 = vshrl.u32 %v4202, 7
      %v4204 = vsub.s32 %v3230, %v4203
      %v4205 = vrot.slane %v2848, %v4204
      %v4206 = vsel %vm3235, %v4205, %v4201
      %v4207 = vlaneseq
      %v4208 = vshrl.u32 %v4207, 7
      %v4209 = vsub.s32 %v3237, %v4208
      %v4210 = vrot.slane %v2849, %v4209
      %v4211 = vsel %vm3242, %v4210, %v4206
      %v4212 = vlaneseq
      %v4213 = vshrl.u32 %v4212, 7
      %v4214 = vsub.s32 %v3244, %v4213
      %v4215 = vrot.slane %v2850, %v4214
      %v4216 = vsel %vm3249, %v4215, %v4211
      %v4217 = vlaneseq
      %v4218 = vshrl.u32 %v4217, 7
      %v4219 = vsub.s32 %v3251, %v4218
      %v4220 = vrot.slane %v2851, %v4219
      %v4221 = vsel %vm3256, %v4220, %v4216
      %v4222 = vlaneseq
      %v4223 = vshrl.u32 %v4222, 7
      %v4224 = vsub.s32 %v3258, %v4223
      %v4225 = vrot.slane %v2852, %v4224
      %v4226 = vsel %vm3263, %v4225, %v4221
      %v4227 = vlaneseq
      %v4228 = vshrl.u32 %v4227, 7
      %v4229 = vsub.s32 %v3265, %v4228
      %v4230 = vrot.slane %v2853, %v4229
      %v4231 = vsel %vm3270, %v4230, %v4226
      %v4232 = vlaneseq
      %v4233 = vshrl.u32 %v4232, 7
      %v4234 = vsub.s32 %v3272, %v4233
      %v4235 = vrot.slane %v2854, %v4234
      %v4236 = vsel %vm3277, %v4235, %v4231
      %v4237 = vlaneseq
      %v4238 = vshrl.u32 %v4237, 7
      %v4239 = vsub.s32 %v3279, %v4238
      %v4240 = vrot.slane %v2855, %v4239
      %v4241 = vsel %vm3284, %v4240, %v4236
      %v4242 = vlaneseq
      %v4243 = vshrl.u32 %v4242, 7
      %v4244 = vsub.s32 %v3286, %v4243
      %v4245 = vrot.slane %v2856, %v4244
      %v4246 = vsel %vm3291, %v4245, %v4241
      %v4247 = vlaneseq
      %v4248 = vshrl.u32 %v4247, 7
      %v4249 = vsub.s32 %v3293, %v4248
      %v4250 = vrot.slane %v2857, %v4249
      %v4251 = vsel %vm3298, %v4250, %v4246
      %v4252 = vlaneseq
      %v4253 = vshrl.u32 %v4252, 7
      %v4254 = vsub.s32 %v3300, %v4253
      %v4255 = vrot.slane %v2858, %v4254
      %v4256 = vsel %vm3305, %v4255, %v4251
      %v4257 = vlaneseq
      %v4258 = vshrl.u32 %v4257, 7
      %v4259 = vsub.s32 %v3307, %v4258
      %v4260 = vrot.slane %v2859, %v4259
      %v4261 = vsel %vm3312, %v4260, %v4256
      %v4262 = vlaneseq
      %v4263 = vshrl.u32 %v4262, 7
      %v4264 = vsub.s32 %v3204, %v4263
      %v4265 = vrot.slane %v2860, %v4264
      %v4266 = vlaneseq
      %v4267 = vshrl.u32 %v4266, 7
      %v4268 = vsub.s32 %v3209, %v4267
      %v4269 = vrot.slane %v2861, %v4268
      %v4270 = vsel %vm3214, %v4269, %v4265
      %v4271 = vlaneseq
      %v4272 = vshrl.u32 %v4271, 7
      %v4273 = vsub.s32 %v3216, %v4272
      %v4274 = vrot.slane %v2862, %v4273
      %v4275 = vsel %vm3221, %v4274, %v4270
      %v4276 = vlaneseq
      %v4277 = vshrl.u32 %v4276, 7
      %v4278 = vsub.s32 %v3223, %v4277
      %v4279 = vrot.slane %v2863, %v4278
      %v4280 = vsel %vm3228, %v4279, %v4275
      %v4281 = vlaneseq
      %v4282 = vshrl.u32 %v4281, 7
      %v4283 = vsub.s32 %v3230, %v4282
      %v4284 = vrot.slane %v2864, %v4283
      %v4285 = vsel %vm3235, %v4284, %v4280
      %v4286 = vlaneseq
      %v4287 = vshrl.u32 %v4286, 7
      %v4288 = vsub.s32 %v3237, %v4287
      %v4289 = vrot.slane %v2865, %v4288
      %v4290 = vsel %vm3242, %v4289, %v4285
      %v4291 = vlaneseq
      %v4292 = vshrl.u32 %v4291, 7
      %v4293 = vsub.s32 %v3244, %v4292
      %v4294 = vrot.slane %v2866, %v4293
      %v4295 = vsel %vm3249, %v4294, %v4290
      %v4296 = vlaneseq
      %v4297 = vshrl.u32 %v4296, 7
      %v4298 = vsub.s32 %v3251, %v4297
      %v4299 = vrot.slane %v2867, %v4298
      %v4300 = vsel %vm3256, %v4299, %v4295
      %v4301 = vlaneseq
      %v4302 = vshrl.u32 %v4301, 7
      %v4303 = vsub.s32 %v3258, %v4302
      %v4304 = vrot.slane %v2868, %v4303
      %v4305 = vsel %vm3263, %v4304, %v4300
      %v4306 = vlaneseq
      %v4307 = vshrl.u32 %v4306, 7
      %v4308 = vsub.s32 %v3265, %v4307
      %v4309 = vrot.slane %v2869, %v4308
      %v4310 = vsel %vm3270, %v4309, %v4305
      %v4311 = vlaneseq
      %v4312 = vshrl.u32 %v4311, 7
      %v4313 = vsub.s32 %v3272, %v4312
      %v4314 = vrot.slane %v2870, %v4313
      %v4315 = vsel %vm3277, %v4314, %v4310
      %v4316 = vlaneseq
      %v4317 = vshrl.u32 %v4316, 7
      %v4318 = vsub.s32 %v3279, %v4317
      %v4319 = vrot.slane %v2871, %v4318
      %v4320 = vsel %vm3284, %v4319, %v4315
      %v4321 = vlaneseq
      %v4322 = vshrl.u32 %v4321, 7
      %v4323 = vsub.s32 %v3286, %v4322
      %v4324 = vrot.slane %v2872, %v4323
      %v4325 = vsel %vm3291, %v4324, %v4320
      %v4326 = vlaneseq
      %v4327 = vshrl.u32 %v4326, 7
      %v4328 = vsub.s32 %v3293, %v4327
      %v4329 = vrot.slane %v2873, %v4328
      %v4330 = vsel %vm3298, %v4329, %v4325
      %v4331 = vlaneseq
      %v4332 = vshrl.u32 %v4331, 7
      %v4333 = vsub.s32 %v3300, %v4332
      %v4334 = vrot.slane %v2874, %v4333
      %v4335 = vsel %vm3305, %v4334, %v4330
      %v4336 = vlaneseq
      %v4337 = vshrl.u32 %v4336, 7
      %v4338 = vsub.s32 %v3307, %v4337
      %v4339 = vrot.slane %v2875, %v4338
      %v4340 = vsel %vm3312, %v4339, %v4335
      %v4341 = vlaneseq
      %v4342 = vshrl.u32 %v4341, 7
      %v4343 = vsub.s32 %v3204, %v4342
      %v4344 = vrot.slane %v2876, %v4343
      %v4345 = vlaneseq
      %v4346 = vshrl.u32 %v4345, 7
      %v4347 = vsub.s32 %v3209, %v4346
      %v4348 = vrot.slane %v2877, %v4347
      %v4349 = vsel %vm3214, %v4348, %v4344
      %v4350 = vlaneseq
      %v4351 = vshrl.u32 %v4350, 7
      %v4352 = vsub.s32 %v3216, %v4351
      %v4353 = vrot.slane %v2878, %v4352
      %v4354 = vsel %vm3221, %v4353, %v4349
      %v4355 = vlaneseq
      %v4356 = vshrl.u32 %v4355, 7
      %v4357 = vsub.s32 %v3223, %v4356
      %v4358 = vrot.slane %v2879, %v4357
      %v4359 = vsel %vm3228, %v4358, %v4354
      %v4360 = vlaneseq
      %v4361 = vshrl.u32 %v4360, 7
      %v4362 = vsub.s32 %v3230, %v4361
      %v4363 = vrot.slane %v2880, %v4362
      %v4364 = vsel %vm3235, %v4363, %v4359
      %v4365 = vlaneseq
      %v4366 = vshrl.u32 %v4365, 7
      %v4367 = vsub.s32 %v3237, %v4366
      %v4368 = vrot.slane %v2881, %v4367
      %v4369 = vsel %vm3242, %v4368, %v4364
      %v4370 = vlaneseq
      %v4371 = vshrl.u32 %v4370, 7
      %v4372 = vsub.s32 %v3244, %v4371
      %v4373 = vrot.slane %v2882, %v4372
      %v4374 = vsel %vm3249, %v4373, %v4369
      %v4375 = vlaneseq
      %v4376 = vshrl.u32 %v4375, 7
      %v4377 = vsub.s32 %v3251, %v4376
      %v4378 = vrot.slane %v2883, %v4377
      %v4379 = vsel %vm3256, %v4378, %v4374
      %v4380 = vlaneseq
      %v4381 = vshrl.u32 %v4380, 7
      %v4382 = vsub.s32 %v3258, %v4381
      %v4383 = vrot.slane %v2884, %v4382
      %v4384 = vsel %vm3263, %v4383, %v4379
      %v4385 = vlaneseq
      %v4386 = vshrl.u32 %v4385, 7
      %v4387 = vsub.s32 %v3265, %v4386
      %v4388 = vrot.slane %v2885, %v4387
      %v4389 = vsel %vm3270, %v4388, %v4384
      %v4390 = vlaneseq
      %v4391 = vshrl.u32 %v4390, 7
      %v4392 = vsub.s32 %v3272, %v4391
      %v4393 = vrot.slane %v2886, %v4392
      %v4394 = vsel %vm3277, %v4393, %v4389
      %v4395 = vlaneseq
      %v4396 = vshrl.u32 %v4395, 7
      %v4397 = vsub.s32 %v3279, %v4396
      %v4398 = vrot.slane %v2887, %v4397
      %v4399 = vsel %vm3284, %v4398, %v4394
      %v4400 = vlaneseq
      %v4401 = vshrl.u32 %v4400, 7
      %v4402 = vsub.s32 %v3286, %v4401
      %v4403 = vrot.slane %v2888, %v4402
      %v4404 = vsel %vm3291, %v4403, %v4399
      %v4405 = vlaneseq
      %v4406 = vshrl.u32 %v4405, 7
      %v4407 = vsub.s32 %v3293, %v4406
      %v4408 = vrot.slane %v2889, %v4407
      %v4409 = vsel %vm3298, %v4408, %v4404
      %v4410 = vlaneseq
      %v4411 = vshrl.u32 %v4410, 7
      %v4412 = vsub.s32 %v3300, %v4411
      %v4413 = vrot.slane %v2890, %v4412
      %v4414 = vsel %vm3305, %v4413, %v4409
      %v4415 = vlaneseq
      %v4416 = vshrl.u32 %v4415, 7
      %v4417 = vsub.s32 %v3307, %v4416
      %v4418 = vrot.slane %v2891, %v4417
      %v4419 = vsel %vm3312, %v4418, %v4414
      %v4420 = vlaneseq
      %v4421 = vshrl.u32 %v4420, 7
      %v4422 = vsub.s32 %v3204, %v4421
      %v4423 = vrot.slane %v2892, %v4422
      %v4424 = vlaneseq
      %v4425 = vshrl.u32 %v4424, 7
      %v4426 = vsub.s32 %v3209, %v4425
      %v4427 = vrot.slane %v2893, %v4426
      %v4428 = vsel %vm3214, %v4427, %v4423
      %v4429 = vlaneseq
      %v4430 = vshrl.u32 %v4429, 7
      %v4431 = vsub.s32 %v3216, %v4430
      %v4432 = vrot.slane %v2894, %v4431
      %v4433 = vsel %vm3221, %v4432, %v4428
      %v4434 = vlaneseq
      %v4435 = vshrl.u32 %v4434, 7
      %v4436 = vsub.s32 %v3223, %v4435
      %v4437 = vrot.slane %v2895, %v4436
      %v4438 = vsel %vm3228, %v4437, %v4433
      %v4439 = vlaneseq
      %v4440 = vshrl.u32 %v4439, 7
      %v4441 = vsub.s32 %v3230, %v4440
      %v4442 = vrot.slane %v2896, %v4441
      %v4443 = vsel %vm3235, %v4442, %v4438
      %v4444 = vlaneseq
      %v4445 = vshrl.u32 %v4444, 7
      %v4446 = vsub.s32 %v3237, %v4445
      %v4447 = vrot.slane %v2897, %v4446
      %v4448 = vsel %vm3242, %v4447, %v4443
      %v4449 = vlaneseq
      %v4450 = vshrl.u32 %v4449, 7
      %v4451 = vsub.s32 %v3244, %v4450
      %v4452 = vrot.slane %v2898, %v4451
      %v4453 = vsel %vm3249, %v4452, %v4448
      %v4454 = vlaneseq
      %v4455 = vshrl.u32 %v4454, 7
      %v4456 = vsub.s32 %v3251, %v4455
      %v4457 = vrot.slane %v2899, %v4456
      %v4458 = vsel %vm3256, %v4457, %v4453
      %v4459 = vlaneseq
      %v4460 = vshrl.u32 %v4459, 7
      %v4461 = vsub.s32 %v3258, %v4460
      %v4462 = vrot.slane %v2900, %v4461
      %v4463 = vsel %vm3263, %v4462, %v4458
      %v4464 = vlaneseq
      %v4465 = vshrl.u32 %v4464, 7
      %v4466 = vsub.s32 %v3265, %v4465
      %v4467 = vrot.slane %v2901, %v4466
      %v4468 = vsel %vm3270, %v4467, %v4463
      %v4469 = vlaneseq
      %v4470 = vshrl.u32 %v4469, 7
      %v4471 = vsub.s32 %v3272, %v4470
      %v4472 = vrot.slane %v2902, %v4471
      %v4473 = vsel %vm3277, %v4472, %v4468
      %v4474 = vlaneseq
      %v4475 = vshrl.u32 %v4474, 7
      %v4476 = vsub.s32 %v3279, %v4475
      %v4477 = vrot.slane %v2903, %v4476
      %v4478 = vsel %vm3284, %v4477, %v4473
      %v4479 = vlaneseq
      %v4480 = vshrl.u32 %v4479, 7
      %v4481 = vsub.s32 %v3286, %v4480
      %v4482 = vrot.slane %v2904, %v4481
      %v4483 = vsel %vm3291, %v4482, %v4478
      %v4484 = vlaneseq
      %v4485 = vshrl.u32 %v4484, 7
      %v4486 = vsub.s32 %v3293, %v4485
      %v4487 = vrot.slane %v2905, %v4486
      %v4488 = vsel %vm3298, %v4487, %v4483
      %v4489 = vlaneseq
      %v4490 = vshrl.u32 %v4489, 7
      %v4491 = vsub.s32 %v3300, %v4490
      %v4492 = vrot.slane %v2906, %v4491
      %v4493 = vsel %vm3305, %v4492, %v4488
      %v4494 = vlaneseq
      %v4495 = vshrl.u32 %v4494, 7
      %v4496 = vsub.s32 %v3307, %v4495
      %v4497 = vrot.slane %v2907, %v4496
      %v4498 = vsel %vm3312, %v4497, %v4493
      %vm4499 = vcmask 1041409
      %v4500 = vsel %vm4499, %v3471, %v3313
      %vm4501 = vcmask 1042434
      %v4502 = vsel %vm4501, %v3629, %v4500
      %vm4503 = vcmask 1043459
      %v4504 = vsel %vm4503, %v3787, %v4502
      %vm4505 = vcmask 1044484
      %v4506 = vsel %vm4505, %v3945, %v4504
      %vm4507 = vcmask 1045509
      %v4508 = vsel %vm4507, %v4103, %v4506
      %vm4509 = vcmask 1046534
      %v4510 = vsel %vm4509, %v4261, %v4508
      %vm4511 = vcmask 1047559
      %v4512 = vsel %vm4511, %v4419, %v4510
      %v4513 = vsel %vm4499, %v3550, %v3392
      %v4514 = vsel %vm4501, %v3708, %v4513
      %v4515 = vsel %vm4503, %v3866, %v4514
      %v4516 = vsel %vm4505, %v4024, %v4515
      %v4517 = vsel %vm4507, %v4182, %v4516
      %v4518 = vsel %vm4509, %v4340, %v4517
      %v4519 = vsel %vm4511, %v4498, %v4518
      %4522 = vmatprep.subr.mxu0 0.0
      %4523 = vmatpush1.msra.mxu0 %v2923
      %4524 = vmatprep.subr.mxu0 0.0
      %4525 = vmatpush1.msra.mxu0 %v2922
      %4526 = vmatprep.subr.mxu0 0.0
      %4527 = vmatpush1.msra.mxu0 %v2921
      %4528 = vmatprep.subr.mxu0 0.0
      %4529 = vmatpush1.msra.mxu0 %v2920
      %4530 = vmatprep.subr.mxu0 0.0
      %4531 = vmatpush1.msra.mxu0 %v2919
      %4532 = vmatprep.subr.mxu0 0.0
      %4533 = vmatpush1.msra.mxu0 %v2918
      %4534 = vmatprep.subr.mxu0 0.0
      %4535 = vmatpush1.msra.mxu0 %v2917
      %4536 = vmatprep.subr.mxu0 0.0
      %4537 = vmatpush1.msra.mxu0 %v2916
      %4538 = vmatprep.subr.mxu0 0.0
      %4539 = vmatpush1.msra.mxu0 %v2915
      %4540 = vmatprep.subr.mxu0 0.0
      %4541 = vmatpush1.msra.mxu0 %v2914
      %4542 = vmatprep.subr.mxu0 0.0
      %4543 = vmatpush1.msra.mxu0 %v2913
      %4544 = vmatprep.subr.mxu0 0.0
      %4545 = vmatpush1.msra.mxu0 %v2912
      %4546 = vmatprep.subr.mxu0 0.0
      %4547 = vmatpush1.msra.mxu0 %v2911
      %4548 = vmatprep.subr.mxu0 0.0
      %4549 = vmatpush1.msra.mxu0 %v2910
      %4550 = vmatprep.subr.mxu0 0.0
      %4551 = vmatpush1.msra.mxu0 %v2909
      %4552 = vmatprep.subr.mxu0 0.0
      %4553 = vmatpush1.msra.mxu0 %v2908
      %4554 = vmatprep.subr.mxu0 0.0
      %4555 = vmatpush2.msra.mxu0 %v2939
      %4556 = vmatprep.subr.mxu0 0.0
      %4557 = vmatpush2.msra.mxu0 %v2938
      %4558 = vmatprep.subr.mxu0 0.0
      %4559 = vmatpush2.msra.mxu0 %v2937
      %4560 = vmatprep.subr.mxu0 0.0
      %4561 = vmatpush2.msra.mxu0 %v2936
      %4562 = vmatprep.subr.mxu0 0.0
      %4563 = vmatpush2.msra.mxu0 %v2935
      %4564 = vmatprep.subr.mxu0 0.0
      %4565 = vmatpush2.msra.mxu0 %v2934
      %4566 = vmatprep.subr.mxu0 0.0
      %4567 = vmatpush2.msra.mxu0 %v2933
      %4568 = vmatprep.subr.mxu0 0.0
      %4569 = vmatpush2.msra.mxu0 %v2932
      %4570 = vmatprep.subr.mxu0 0.0
      %4571 = vmatpush2.msra.mxu0 %v2931
      %4572 = vmatprep.subr.mxu0 0.0
      %4573 = vmatpush2.msra.mxu0 %v2930
      %4574 = vmatprep.subr.mxu0 0.0
      %4575 = vmatpush2.msra.mxu0 %v2929
      %4576 = vmatprep.subr.mxu0 0.0
      %4577 = vmatpush2.msra.mxu0 %v2928
      %4578 = vmatprep.subr.mxu0 0.0
      %4579 = vmatpush2.msra.mxu0 %v2927
      %4580 = vmatprep.subr.mxu0 0.0
      %4581 = vmatpush2.msra.mxu0 %v2926
      %4582 = vmatprep.subr.mxu0 0.0
      %4583 = vmatpush2.msra.mxu0 %v2925
      %4584 = vmatprep.subr.mxu0 0.0
      %4585 = vmatpush2.msra.mxu0 %v2924
      %4586 = vmatprep.mubr.f32.mxu0 %v4519
      %4587 = vmatmul.mubr.f32.gmra.mxu0 %v4512
      %v4588 = vpop.f32.mrf.mxu0
      %v4589 = vadd.f32 %v2945, %v4588
      %v4590 = vpop.f32.mrf.mxu0
      %4591 = vdwg.mxu0
      %v4592 = vld [vmem:[#allocation9] sm:$0xff]
      %v4593 = vld [vmem:[#allocation9 + $0x8] sm:$0xff]
      %v4594 = vld [vmem:[#allocation9 + $0x10] sm:$0xff]
      %v4595 = vld [vmem:[#allocation9 + $0x18] sm:$0xff]
      %v4596 = vld [vmem:[#allocation9 + $0x20] sm:$0xff]
      %v4597 = vld [vmem:[#allocation9 + $0x28] sm:$0xff]
      %v4598 = vld [vmem:[#allocation9 + $0x30] sm:$0xff]
      %v4599 = vld [vmem:[#allocation9 + $0x38] sm:$0xff]
      %v4600 = vld [vmem:[#allocation9 + $0x40] sm:$0xff]
      %v4601 = vld [vmem:[#allocation9 + $0x48] sm:$0xff]
      %v4602 = vld [vmem:[#allocation9 + $0x50] sm:$0xff]
      %v4603 = vld [vmem:[#allocation9 + $0x58] sm:$0xff]
      %v4604 = vld [vmem:[#allocation9 + $0x60] sm:$0xff]
      %v4605 = vld [vmem:[#allocation9 + $0x68] sm:$0xff]
      %v4606 = vld [vmem:[#allocation9 + $0x70] sm:$0xff]
      %v4607 = vld [vmem:[#allocation9 + $0x78] sm:$0xff]
      %v4608 = vld [vmem:[#allocation11] sm:$0x1]
      %v4610 = vlaneseq
      %v4611 = vshrl.u32 %v4610, 7
      %v4612 = vsub.s32 0, %v4611
      %v4613 = vrot.slane %v4608, %v4612
      %4615 = vmatprep.subr.mxu0 0.0
      %4616 = vmatpush1.msra.mxu0 %v4607
      %4617 = vmatprep.subr.mxu0 0.0
      %4618 = vmatpush1.msra.mxu0 %v4606
      %4619 = vmatprep.subr.mxu0 0.0
      %4620 = vmatpush1.msra.mxu0 %v4605
      %4621 = vmatprep.subr.mxu0 0.0
      %4622 = vmatpush1.msra.mxu0 %v4604
      %4623 = vmatprep.subr.mxu0 0.0
      %4624 = vmatpush1.msra.mxu0 %v4603
      %4625 = vmatprep.subr.mxu0 0.0
      %4626 = vmatpush1.msra.mxu0 %v4602
      %4627 = vmatprep.subr.mxu0 0.0
      %4628 = vmatpush1.msra.mxu0 %v4601
      %4629 = vmatprep.subr.mxu0 0.0
      %4630 = vmatpush1.msra.mxu0 %v4600
      %4631 = vmatprep.subr.mxu0 0.0
      %4632 = vmatpush1.msra.mxu0 %v4599
      %4633 = vmatprep.subr.mxu0 0.0
      %4634 = vmatpush1.msra.mxu0 %v4598
      %4635 = vmatprep.subr.mxu0 0.0
      %4636 = vmatpush1.msra.mxu0 %v4597
      %4637 = vmatprep.subr.mxu0 0.0
      %4638 = vmatpush1.msra.mxu0 %v4596
      %4639 = vmatprep.subr.mxu0 0.0
      %4640 = vmatpush1.msra.mxu0 %v4595
      %4641 = vmatprep.subr.mxu0 0.0
      %4642 = vmatpush1.msra.mxu0 %v4594
      %4643 = vmatprep.subr.mxu0 0.0
      %4644 = vmatpush1.msra.mxu0 %v4593
      %4645 = vmatprep.subr.mxu0 0.0
      %4646 = vmatpush1.msra.mxu0 %v4592
      %4647 = vmatprep.subr.mxu0 0.0
      %4648 = vmatpush2.msra.mxu0 0.0
      %4649 = vmatprep.subr.mxu0 0.0
      %4650 = vmatpush2.msra.mxu0 0.0
      %4651 = vmatprep.subr.mxu0 0.0
      %4652 = vmatpush2.msra.mxu0 0.0
      %4653 = vmatprep.subr.mxu0 0.0
      %4654 = vmatpush2.msra.mxu0 0.0
      %4655 = vmatprep.subr.mxu0 0.0
      %4656 = vmatpush2.msra.mxu0 0.0
      %4657 = vmatprep.subr.mxu0 0.0
      %4658 = vmatpush2.msra.mxu0 0.0
      %4659 = vmatprep.subr.mxu0 0.0
      %4660 = vmatpush2.msra.mxu0 0.0
      %4661 = vmatprep.subr.mxu0 0.0
      %4662 = vmatpush2.msra.mxu0 0.0
      %4663 = vmatprep.subr.mxu0 0.0
      %4664 = vmatpush2.msra.mxu0 0.0
      %4665 = vmatprep.subr.mxu0 0.0
      %4666 = vmatpush2.msra.mxu0 0.0
      %4667 = vmatprep.subr.mxu0 0.0
      %4668 = vmatpush2.msra.mxu0 0.0
      %4669 = vmatprep.subr.mxu0 0.0
      %4670 = vmatpush2.msra.mxu0 0.0
      %4671 = vmatprep.subr.mxu0 0.0
      %4672 = vmatpush2.msra.mxu0 0.0
      %4673 = vmatprep.subr.mxu0 0.0
      %4674 = vmatpush2.msra.mxu0 0.0
      %4675 = vmatprep.subr.mxu0 0.0
      %4676 = vmatpush2.msra.mxu0 0.0
      %4677 = vmatprep.subr.mxu0 0.0
      %4678 = vmatpush2.msra.mxu0 0.0
      %4679 = vmatprep.mubr.f32.mxu0 0.0
      %4680 = vmatmul.mubr.f32.gmra.mxu0 %v4589
      %v4681 = vpop.f32.mrf.mxu0
      %v4682 = vadd.f32 %v4613, %v4681
      %v4683 = vpop.f32.mrf.mxu0
      %4684 = vdwg.mxu0
      %4685 = vst [vmem:[#allocation12] sm:$0xff] %v4682
    $region49: #{tpu_custom_call.1} parent=1 // pred_fallthru
      _
    // Predicated region
    $region50: #{tpu_custom_call.1} parent=1 // pred_check
      _
    $region51: #{tpu_custom_call.1} parent=1 // pred_check_branch
      %4687 = sbr.rel (0) target = $region53
    $region52: #{tpu_custom_call.1} parent=1 // pred_region
      %s4689 = ssub.s32 128, 128
      %4690 = vsyncadd [#allocation5], %s4689
      %s4692 = sshll.u32 [#allocation12], 4
      %s4693 = int_to_ptr.vmem [resolvable:$true] %s4692
      %4695 = dma.vmem_to_hbm [thread:$0]  %s4693, 128, %s5, [#allocation5]
    $region53: #{tpu_custom_call.1} parent=1 // pred_fallthru
      _
    // Predicated region
    $region54: #{tpu_custom_call.1} parent=1 // pred_check
      _
    $region55: #{tpu_custom_call.1} parent=1 // pred_check_branch
      %4697 = sbr.rel (0) target = $region57
    $region56: #{tpu_custom_call.1} parent=1 // pred_region
      %4698 = dma.done [#allocation5], 128
    $region57: #{tpu_custom_call.1} parent=1 // pred_fallthru
      _
    %4699 = vsyncpa [#allocation4], 1
    %4700 = vsyncpa [#allocation7], 1
    %4701 = vsyncpa [#allocation10], 1
    %4702 = vsyncpa [#allocation5], 1

</llo_original>
